<compile_context>
chip_gen: v7x
topology: tpu7x:2x2x1
jax: 0.10.0
libtpu: 0.0.40
codegen_flags: <defaults>
</compile_context>

<pallas_src>
import functools

import jax
import jax.numpy as jnp
import numpy as np
from jax import lax
from jax.experimental import pallas as pl
from jax.experimental.pallas import tpu as pltpu

_LANE = 128


def _round_up(x, m):
    return (x + m - 1) // m * m


def _refinement_block_kernel(
    hidx_ref,   # (1, Sp) int32   flat spatial position -> row index h
    widx_ref,   # (1, Sp) int32   flat spatial position -> col index w
    x_ref,      # (1, Cip, Sp)    input, channel-major, lanes = H*W (padded)
    w1_ref,     # (Cop, Cip)      1x1 conv weight (out, in)
    b1_ref,     # (Cop, 1)
    w2_ref,     # (3, 3, Cop, Cop) 3x3 conv, pad=1  (kh, kw, out, in), BN folded
    b2_ref,     # (Cop, 1)
    w3_ref,     # (3, 3, Cop, Cop) 3x3 conv, pad=2, dilation=2, BN folded
    b3_ref,     # (Cop, 1)
    o_ref,      # (1, Cop, Sp)
    *,
    H, W,
):
    Sp = x_ref.shape[-1]
    h_idx = hidx_ref[...]
    w_idx = widx_ref[...]

    def shift(arr, off):
        """shift(arr)[:, p] == arr[:, (p + off) % Sp]  (XLU lane rotation)."""
        if off == 0:
            return arr
        return pltpu.roll(arr, (-off) % Sp, axis=1)

    def border_mask(idx, extent, off):
        """1.0 where 0 <= idx + off < extent, else 0.0; shape (1, Sp)."""
        if off == 0:
            return None
        m = (idx >= -off) if off < 0 else (idx < extent - off)
        return m.astype(jnp.float32)

    # ---- initial: 1x1 conv = channel matmul on the MXU, + bias + ReLU ------
    t0 = jnp.dot(w1_ref[...], x_ref[0], preferred_element_type=jnp.float32)
    t0 = jnp.maximum(t0 + b1_ref[...], 0.0)                  # (Cop, Sp)

    def conv3x3(t, w_ref, b_ref, dil):
        # W-axis shifted + border-masked copies, shared by all 3 kernel rows.
        cols = []
        for kw in range(3):
            off = (kw - 1) * dil
            src = shift(t, off)
            m = border_mask(w_idx, W, off)
            cols.append(src if m is None else src * m)
        acc = None
        for kh in range(3):
            # Row partial for kernel row kh: 3 MXU matmuls, f32 accumulate.
            row = None
            for kw in range(3):
                r = jnp.dot(w_ref[kh, kw], cols[kw],
                            preferred_element_type=jnp.float32)
                row = r if row is None else row + r
            # Shift the row partial along H and mask the top/bottom border.
            row = shift(row, (kh - 1) * dil * W)
            m = border_mask(h_idx, H, (kh - 1) * dil)
            if m is not None:
                row = row * m
            acc = row if acc is None else acc + row
        return jnp.maximum(acc + b_ref[...], 0.0)

    t1 = conv3x3(t0, w2_ref, b2_ref, dil=1)   # 3x3, padding=1
    t2 = conv3x3(t1, w3_ref, b3_ref, dil=2)   # 3x3, padding=2, dilation=2

    # ---- residual add -------------------------------------------------------
    o_ref[0] = (t0 + t2).astype(o_ref.dtype)


def refinement_stage_block(x_nchw, w1, b1, w2, b2, w3, b3):
    """RefinementStageBlock forward.

    Args (PyTorch conventions; BatchNorm already folded into w2/b2, w3/b3):
      x_nchw: (B, Cin, H, W) f32
      w1: (Cout, Cin)         1x1 conv weight,            b1: (Cout,)
      w2: (Cout, Cout, 3, 3)  3x3 conv (pad=1),           b2: (Cout,)
      w3: (Cout, Cout, 3, 3)  3x3 conv (pad=2, dil=2),    b3: (Cout,)
    Returns: (B, Cout, H, W) f32
    """
    f32 = jnp.float32
    B, Cin, H, W = x_nchw.shape
    Cout = w1.shape[0]
    S = H * W
    Sp = _round_up(S, _LANE)
    Cip = _round_up(Cin, _LANE)
    Cop = _round_up(Cout, _LANE)

    # Lane-dense, channel-major activations: (B, C, H*W), spatial on lanes.
    x = jnp.pad(x_nchw.astype(f32).reshape(B, Cin, S),
                ((0, 0), (0, Cip - Cin), (0, Sp - S)))

    # (kh, kw, out, in) layout so each tap is a plain (Cout, Cin) x (Cin, H*W)
    # matmul.  Zero channel padding is an exact no-op for the math.
    w1p = jnp.pad(w1.astype(f32), ((0, Cop - Cout), (0, Cip - Cin)))
    w2p = jnp.pad(jnp.transpose(w2.astype(f32), (2, 3, 0, 1)),
                  ((0, 0), (0, 0), (0, Cop - Cout), (0, Cop - Cout)))
    w3p = jnp.pad(jnp.transpose(w3.astype(f32), (2, 3, 0, 1)),
                  ((0, 0), (0, 0), (0, Cop - Cout), (0, Cop - Cout)))
    b1p = jnp.pad(b1.astype(f32), (0, Cop - Cout))[:, None]
    b2p = jnp.pad(b2.astype(f32), (0, Cop - Cout))[:, None]
    b3p = jnp.pad(b3.astype(f32), (0, Cop - Cout))[:, None]

    # (h, w) decode of each flattened spatial position, used for border masks.
    p = jnp.arange(Sp, dtype=jnp.int32)
    h_idx = (p // W)[None, :]
    w_idx = (p % W)[None, :]

    kernel = functools.partial(_refinement_block_kernel, H=H, W=W)
    out = pl.pallas_call(
        kernel,
        out_shape=jax.ShapeDtypeStruct((B, Cop, Sp), f32),
        grid_spec=pltpu.PrefetchScalarGridSpec(
            num_scalar_prefetch=0,
            grid=(B,),
            in_specs=[
                pl.BlockSpec((1, Sp), lambda b: (0, 0)),                 # h_idx
                pl.BlockSpec((1, Sp), lambda b: (0, 0)),                 # w_idx
                pl.BlockSpec((1, Cip, Sp), lambda b: (b, 0, 0)),         # x
                pl.BlockSpec((Cop, Cip), lambda b: (0, 0)),              # w1
                pl.BlockSpec((Cop, 1), lambda b: (0, 0)),                # b1
                pl.BlockSpec((3, 3, Cop, Cop), lambda b: (0, 0, 0, 0)),  # w2
                pl.BlockSpec((Cop, 1), lambda b: (0, 0)),                # b2
                pl.BlockSpec((3, 3, Cop, Cop), lambda b: (0, 0, 0, 0)),  # w3
                pl.BlockSpec((Cop, 1), lambda b: (0, 0)),                # b3
            ],
            out_specs=pl.BlockSpec((1, Cop, Sp), lambda b: (b, 0, 0)),
        ),
        compiler_params=pltpu.CompilerParams(
            dimension_semantics=("parallel",),
            vmem_limit_bytes=32 * 1024 * 1024,
        ),
    )(h_idx, w_idx, x, w1p, b1p, w2p, b2p, w3p, b3p)

    # Strip channel / spatial padding, back to NCHW.
    return out[:, :Cout, :S].reshape(B, Cout, H, W)


def _fold_bn(w, b_conv, gamma, beta, mean, var, eps=1e-5):
    """Fold eval-mode BatchNorm into a conv weight (Cout, Cin, kh, kw) + bias."""
    scale = gamma / jnp.sqrt(var + eps)
    w_f = w * scale[:, None, None, None]
    b_f = (b_conv - mean) * scale + beta
    return w_f, b_f


def _reference(x, w1, b1, w2, b2, w3, b3):
    """Pure-JAX reference with the same (BN-folded) parameters, NCHW/OIHW."""
    dn = ("NCHW", "OIHW", "NCHW")
    t0 = jnp.maximum(
        jnp.einsum("oi,bihw->bohw", w1, x) + b1[None, :, None, None], 0.0)
    t1 = jnp.maximum(
        lax.conv_general_dilated(t0, w2, (1, 1), [(1, 1), (1, 1)],
                                 dimension_numbers=dn)
        + b2[None, :, None, None], 0.0)
    t2 = jnp.maximum(
        lax.conv_general_dilated(t1, w3, (1, 1), [(2, 2), (2, 2)],
                                 rhs_dilation=(2, 2), dimension_numbers=dn)
        + b3[None, :, None, None], 0.0)
    return t0 + t2


if __name__ == "__main__":
    B, Cin, Cout, H, W = 2, 4, 8, 16, 16

    key = jax.random.PRNGKey(0)
    ks = jax.random.split(key, 10)

    # PyTorch-convention input (NCHW).
    x = jax.random.normal(ks[0], (B, Cin, H, W), jnp.float32)

    # Synthetic parameters following the nn.Module __init__ (PyTorch layouts).
    w1 = jax.random.normal(ks[1], (Cout, Cin), jnp.float32) * 0.1     # 1x1, no BN
    b1 = jax.random.normal(ks[2], (Cout,), jnp.float32) * 0.1

    w2_raw = jax.random.normal(ks[3], (Cout, Cout, 3, 3), jnp.float32) * 0.1
    b2_raw = jax.random.normal(ks[4], (Cout,), jnp.float32) * 0.1
    gamma2 = 1.0 + 0.1 * jax.random.normal(ks[5], (Cout,), jnp.float32)
    beta2 = 0.1 * jax.random.normal(ks[6], (Cout,), jnp.float32)
    mean2 = 0.05 * jnp.arange(Cout, dtype=jnp.float32)
    var2 = 1.0 + 0.02 * jnp.arange(Cout, dtype=jnp.float32)

    w3_raw = jax.random.normal(ks[7], (Cout, Cout, 3, 3), jnp.float32) * 0.1
    b3_raw = jax.random.normal(ks[8], (Cout,), jnp.float32) * 0.1
    gamma3 = 1.0 + 0.1 * jax.random.normal(ks[9], (Cout,), jnp.float32)
    beta3 = 0.05 * jnp.ones((Cout,), jnp.float32)
    mean3 = -0.03 * jnp.arange(Cout, dtype=jnp.float32)
    var3 = 1.5 + 0.01 * jnp.arange(Cout, dtype=jnp.float32)

    # Fold eval-mode BatchNorm into the trunk convs (exact equivalence).
    w2, b2 = _fold_bn(w2_raw, b2_raw, gamma2, beta2, mean2, var2)
    w3, b3 = _fold_bn(w3_raw, b3_raw, gamma3, beta3, mean3, var3)

    out = refinement_stage_block(x, w1, b1, w2, b2, w3, b3)
    out = jax.block_until_ready(out)
    assert out.shape == (B, Cout, H, W)

    ref = _reference(x, w1, b1, w2, b2, w3, b3)
    np.testing.assert_allclose(np.asarray(out), np.asarray(ref),
                               rtol=1e-4, atol=1e-4)

    print("KERNEL_OK")
</pallas_src>

<mosaic_0001>
module attributes {stable_mosaic.version = 11 : i64} {
  func.func @_refinement_block_kernel(%arg0: i32, %arg1: memref<1x256xi32, #tpu.memory_space<vmem>>, %arg2: memref<1x256xi32, #tpu.memory_space<vmem>>, %arg3: memref<1x128x256xf32, #tpu.memory_space<vmem>>, %arg4: memref<128x128xf32, #tpu.memory_space<vmem>>, %arg5: memref<128x1xf32, #tpu.memory_space<vmem>>, %arg6: memref<3x3x128x128xf32, #tpu.memory_space<vmem>>, %arg7: memref<128x1xf32, #tpu.memory_space<vmem>>, %arg8: memref<3x3x128x128xf32, #tpu.memory_space<vmem>>, %arg9: memref<128x1xf32, #tpu.memory_space<vmem>>, %arg10: memref<1x128x256xf32, #tpu.memory_space<vmem>>) attributes {dimension_semantics = [#tpu.dimension_semantics<parallel>], iteration_bounds = array<i64: 2>, scalar_prefetch = 0 : i64, scratch_operands = 0 : i64, tpu.core_type = #tpu.core_type<tc>, window_params = [{pipeline_mode = #tpu.pipeline_mode<synchronous>, transform_indices = @transform_0, window_bounds = array<i64: 1, 256>}, {pipeline_mode = #tpu.pipeline_mode<synchronous>, transform_indices = @transform_1, window_bounds = array<i64: 1, 256>}, {transform_indices = @transform_2, window_bounds = array<i64: 1, 128, 256>}, {pipeline_mode = #tpu.pipeline_mode<synchronous>, transform_indices = @transform_3, window_bounds = array<i64: 128, 128>}, {pipeline_mode = #tpu.pipeline_mode<synchronous>, transform_indices = @transform_4, window_bounds = array<i64: 128, 1>}, {pipeline_mode = #tpu.pipeline_mode<synchronous>, transform_indices = @transform_5, window_bounds = array<i64: 3, 3, 128, 128>}, {pipeline_mode = #tpu.pipeline_mode<synchronous>, transform_indices = @transform_6, window_bounds = array<i64: 128, 1>}, {pipeline_mode = #tpu.pipeline_mode<synchronous>, transform_indices = @transform_7, window_bounds = array<i64: 3, 3, 128, 128>}, {pipeline_mode = #tpu.pipeline_mode<synchronous>, transform_indices = @transform_8, window_bounds = array<i64: 128, 1>}, {transform_indices = @transform_9, window_bounds = array<i64: 1, 128, 256>}]} {
    %c0 = arith.constant 0 : index
    %c0_0 = arith.constant 0 : index
    %0 = vector.load %arg1[%c0, %c0_0] : memref<1x256xi32, #tpu.memory_space<vmem>>, vector<1x256xi32>
    %c0_1 = arith.constant 0 : index
    %c0_2 = arith.constant 0 : index
    %1 = vector.load %arg2[%c0_1, %c0_2] : memref<1x256xi32, #tpu.memory_space<vmem>>, vector<1x256xi32>
    %c0_3 = arith.constant 0 : index
    %c0_4 = arith.constant 0 : index
    %2 = vector.load %arg4[%c0_3, %c0_4] : memref<128x128xf32, #tpu.memory_space<vmem>>, vector<128x128xf32>
    %c0_5 = arith.constant 0 : index
    %c0_6 = arith.constant 0 : index
    %c0_7 = arith.constant 0 : index
    %3 = vector.load %arg3[%c0_5, %c0_6, %c0_7] : memref<1x128x256xf32, #tpu.memory_space<vmem>>, vector<1x128x256xf32>
    %4 = vector.shape_cast %3 : vector<1x128x256xf32> to vector<128x256xf32>
    %cst = arith.constant dense<0.000000e+00> : vector<128x256xf32>
    %5 = tpu.matmul %2, %4, %cst {dimension_numbers = #tpu.dot_dimension_numbers<[1], [0], [0], [1], [0, 0, 1, 1], [], []>} : vector<128x128xf32>, vector<128x256xf32>, vector<128x256xf32> -> vector<128x256xf32>
    %c0_8 = arith.constant 0 : index
    %c0_9 = arith.constant 0 : index
    %6 = vector.load %arg5[%c0_8, %c0_9] : memref<128x1xf32, #tpu.memory_space<vmem>>, vector<128x1xf32>
    %7 = vector.broadcast %6 : vector<128x1xf32> to vector<128x256xf32>
    %8 = arith.addf %5, %7 : vector<128x256xf32>
    %cst_10 = arith.constant 0.000000e+00 : f32
    %9 = vector.broadcast %cst_10 : f32 to vector<128x256xf32>
    %10 = arith.maximumf %8, %9 : vector<128x256xf32>
    %c1_i32 = arith.constant 1 : i32
    %11 = tpu.dynamic_rotate %10 by %c1_i32 dim 1 : vector<128x256xf32>, i32 -> vector<128x256xf32>
    %c1_i32_11 = arith.constant 1 : i32
    %12 = vector.broadcast %c1_i32_11 : i32 to vector<1x256xi32>
    %13 = arith.cmpi sge, %1, %12 : vector<1x256xi32>
    %14 = arith.extui %13 : vector<1x256xi1> to vector<1x256xi32>
    %15 = arith.sitofp %14 : vector<1x256xi32> to vector<1x256xf32>
    %16 = vector.broadcast %15 : vector<1x256xf32> to vector<128x256xf32>
    %17 = arith.mulf %11, %16 : vector<128x256xf32>
    %c255_i32 = arith.constant 255 : i32
    %18 = tpu.dynamic_rotate %10 by %c255_i32 dim 1 : vector<128x256xf32>, i32 -> vector<128x256xf32>
    %c15_i32 = arith.constant 15 : i32
    %19 = vector.broadcast %c15_i32 : i32 to vector<1x256xi32>
    %20 = arith.cmpi slt, %1, %19 : vector<1x256xi32>
    %21 = arith.extui %20 : vector<1x256xi1> to vector<1x256xi32>
    %22 = arith.sitofp %21 : vector<1x256xi32> to vector<1x256xf32>
    %23 = vector.broadcast %22 : vector<1x256xf32> to vector<128x256xf32>
    %24 = arith.mulf %18, %23 : vector<128x256xf32>
    %c0_12 = arith.constant 0 : index
    %c0_13 = arith.constant 0 : index
    %c0_14 = arith.constant 0 : index
    %c0_15 = arith.constant 0 : index
    %25 = vector.load %arg6[%c0_12, %c0_13, %c0_14, %c0_15] : memref<3x3x128x128xf32, #tpu.memory_space<vmem>>, vector<1x1x128x128xf32>
    %26 = vector.shape_cast %25 : vector<1x1x128x128xf32> to vector<128x128xf32>
    %cst_16 = arith.constant dense<0.000000e+00> : vector<128x256xf32>
    %27 = tpu.matmul %26, %17, %cst_16 {dimension_numbers = #tpu.dot_dimension_numbers<[1], [0], [0], [1], [0, 0, 1, 1], [], []>} : vector<128x128xf32>, vector<128x256xf32>, vector<128x256xf32> -> vector<128x256xf32>
    %c0_17 = arith.constant 0 : index
    %c1 = arith.constant 1 : index
    %c0_18 = arith.constant 0 : index
    %c0_19 = arith.constant 0 : index
    %28 = vector.load %arg6[%c0_17, %c1, %c0_18, %c0_19] : memref<3x3x128x128xf32, #tpu.memory_space<vmem>>, vector<1x1x128x128xf32>
    %29 = vector.shape_cast %28 : vector<1x1x128x128xf32> to vector<128x128xf32>
    %cst_20 = arith.constant dense<0.000000e+00> : vector<128x256xf32>
    %30 = tpu.matmul %29, %10, %cst_20 {dimension_numbers = #tpu.dot_dimension_numbers<[1], [0], [0], [1], [0, 0, 1, 1], [], []>} : vector<128x128xf32>, vector<128x256xf32>, vector<128x256xf32> -> vector<128x256xf32>
    %31 = arith.addf %27, %30 : vector<128x256xf32>
    %c0_21 = arith.constant 0 : index
    %c2 = arith.constant 2 : index
    %c0_22 = arith.constant 0 : index
    %c0_23 = arith.constant 0 : index
    %32 = vector.load %arg6[%c0_21, %c2, %c0_22, %c0_23] : memref<3x3x128x128xf32, #tpu.memory_space<vmem>>, vector<1x1x128x128xf32>
    %33 = vector.shape_cast %32 : vector<1x1x128x128xf32> to vector<128x128xf32>
    %cst_24 = arith.constant dense<0.000000e+00> : vector<128x256xf32>
    %34 = tpu.matmul %33, %24, %cst_24 {dimension_numbers = #tpu.dot_dimension_numbers<[1], [0], [0], [1], [0, 0, 1, 1], [], []>} : vector<128x128xf32>, vector<128x256xf32>, vector<128x256xf32> -> vector<128x256xf32>
    %35 = arith.addf %31, %34 : vector<128x256xf32>
    %c16_i32 = arith.constant 16 : i32
    %36 = tpu.dynamic_rotate %35 by %c16_i32 dim 1 : vector<128x256xf32>, i32 -> vector<128x256xf32>
    %c1_i32_25 = arith.constant 1 : i32
    %37 = vector.broadcast %c1_i32_25 : i32 to vector<1x256xi32>
    %38 = arith.cmpi sge, %0, %37 : vector<1x256xi32>
    %39 = arith.extui %38 : vector<1x256xi1> to vector<1x256xi32>
    %40 = arith.sitofp %39 : vector<1x256xi32> to vector<1x256xf32>
    %41 = vector.broadcast %40 : vector<1x256xf32> to vector<128x256xf32>
    %42 = arith.mulf %36, %41 : vector<128x256xf32>
    %c1_26 = arith.constant 1 : index
    %c0_27 = arith.constant 0 : index
    %c0_28 = arith.constant 0 : index
    %c0_29 = arith.constant 0 : index
    %43 = vector.load %arg6[%c1_26, %c0_27, %c0_28, %c0_29] : memref<3x3x128x128xf32, #tpu.memory_space<vmem>>, vector<1x1x128x128xf32>
    %44 = vector.shape_cast %43 : vector<1x1x128x128xf32> to vector<128x128xf32>
    %cst_30 = arith.constant dense<0.000000e+00> : vector<128x256xf32>
    %45 = tpu.matmul %44, %17, %cst_30 {dimension_numbers = #tpu.dot_dimension_numbers<[1], [0], [0], [1], [0, 0, 1, 1], [], []>} : vector<128x128xf32>, vector<128x256xf32>, vector<128x256xf32> -> vector<128x256xf32>
    %c1_31 = arith.constant 1 : index
    %c1_32 = arith.constant 1 : index
    %c0_33 = arith.constant 0 : index
    %c0_34 = arith.constant 0 : index
    %46 = vector.load %arg6[%c1_31, %c1_32, %c0_33, %c0_34] : memref<3x3x128x128xf32, #tpu.memory_space<vmem>>, vector<1x1x128x128xf32>
    %47 = vector.shape_cast %46 : vector<1x1x128x128xf32> to vector<128x128xf32>
    %cst_35 = arith.constant dense<0.000000e+00> : vector<128x256xf32>
    %48 = tpu.matmul %47, %10, %cst_35 {dimension_numbers = #tpu.dot_dimension_numbers<[1], [0], [0], [1], [0, 0, 1, 1], [], []>} : vector<128x128xf32>, vector<128x256xf32>, vector<128x256xf32> -> vector<128x256xf32>
    %49 = arith.addf %45, %48 : vector<128x256xf32>
    %c1_36 = arith.constant 1 : index
    %c2_37 = arith.constant 2 : index
    %c0_38 = arith.constant 0 : index
    %c0_39 = arith.constant 0 : index
    %50 = vector.load %arg6[%c1_36, %c2_37, %c0_38, %c0_39] : memref<3x3x128x128xf32, #tpu.memory_space<vmem>>, vector<1x1x128x128xf32>
    %51 = vector.shape_cast %50 : vector<1x1x128x128xf32> to vector<128x128xf32>
    %cst_40 = arith.constant dense<0.000000e+00> : vector<128x256xf32>
    %52 = tpu.matmul %51, %24, %cst_40 {dimension_numbers = #tpu.dot_dimension_numbers<[1], [0], [0], [1], [0, 0, 1, 1], [], []>} : vector<128x128xf32>, vector<128x256xf32>, vector<128x256xf32> -> vector<128x256xf32>
    %53 = arith.addf %49, %52 : vector<128x256xf32>
    %54 = arith.addf %42, %53 : vector<128x256xf32>
    %c2_41 = arith.constant 2 : index
    %c0_42 = arith.constant 0 : index
    %c0_43 = arith.constant 0 : index
    %c0_44 = arith.constant 0 : index
    %55 = vector.load %arg6[%c2_41, %c0_42, %c0_43, %c0_44] : memref<3x3x128x128xf32, #tpu.memory_space<vmem>>, vector<1x1x128x128xf32>
    %56 = vector.shape_cast %55 : vector<1x1x128x128xf32> to vector<128x128xf32>
    %cst_45 = arith.constant dense<0.000000e+00> : vector<128x256xf32>
    %57 = tpu.matmul %56, %17, %cst_45 {dimension_numbers = #tpu.dot_dimension_numbers<[1], [0], [0], [1], [0, 0, 1, 1], [], []>} : vector<128x128xf32>, vector<128x256xf32>, vector<128x256xf32> -> vector<128x256xf32>
    %c2_46 = arith.constant 2 : index
    %c1_47 = arith.constant 1 : index
    %c0_48 = arith.constant 0 : index
    %c0_49 = arith.constant 0 : index
    %58 = vector.load %arg6[%c2_46, %c1_47, %c0_48, %c0_49] : memref<3x3x128x128xf32, #tpu.memory_space<vmem>>, vector<1x1x128x128xf32>
    %59 = vector.shape_cast %58 : vector<1x1x128x128xf32> to vector<128x128xf32>
    %cst_50 = arith.constant dense<0.000000e+00> : vector<128x256xf32>
    %60 = tpu.matmul %59, %10, %cst_50 {dimension_numbers = #tpu.dot_dimension_numbers<[1], [0], [0], [1], [0, 0, 1, 1], [], []>} : vector<128x128xf32>, vector<128x256xf32>, vector<128x256xf32> -> vector<128x256xf32>
    %61 = arith.addf %57, %60 : vector<128x256xf32>
    %c2_51 = arith.constant 2 : index
    %c2_52 = arith.constant 2 : index
    %c0_53 = arith.constant 0 : index
    %c0_54 = arith.constant 0 : index
    %62 = vector.load %arg6[%c2_51, %c2_52, %c0_53, %c0_54] : memref<3x3x128x128xf32, #tpu.memory_space<vmem>>, vector<1x1x128x128xf32>
    %63 = vector.shape_cast %62 : vector<1x1x128x128xf32> to vector<128x128xf32>
    %cst_55 = arith.constant dense<0.000000e+00> : vector<128x256xf32>
    %64 = tpu.matmul %63, %24, %cst_55 {dimension_numbers = #tpu.dot_dimension_numbers<[1], [0], [0], [1], [0, 0, 1, 1], [], []>} : vector<128x128xf32>, vector<128x256xf32>, vector<128x256xf32> -> vector<128x256xf32>
    %65 = arith.addf %61, %64 : vector<128x256xf32>
    %c240_i32 = arith.constant 240 : i32
    %66 = tpu.dynamic_rotate %65 by %c240_i32 dim 1 : vector<128x256xf32>, i32 -> vector<128x256xf32>
    %c15_i32_56 = arith.constant 15 : i32
    %67 = vector.broadcast %c15_i32_56 : i32 to vector<1x256xi32>
    %68 = arith.cmpi slt, %0, %67 : vector<1x256xi32>
    %69 = arith.extui %68 : vector<1x256xi1> to vector<1x256xi32>
    %70 = arith.sitofp %69 : vector<1x256xi32> to vector<1x256xf32>
    %71 = vector.broadcast %70 : vector<1x256xf32> to vector<128x256xf32>
    %72 = arith.mulf %66, %71 : vector<128x256xf32>
    %73 = arith.addf %54, %72 : vector<128x256xf32>
    %c0_57 = arith.constant 0 : index
    %c0_58 = arith.constant 0 : index
    %74 = vector.load %arg7[%c0_57, %c0_58] : memref<128x1xf32, #tpu.memory_space<vmem>>, vector<128x1xf32>
    %75 = vector.broadcast %74 : vector<128x1xf32> to vector<128x256xf32>
    %76 = arith.addf %73, %75 : vector<128x256xf32>
    %cst_59 = arith.constant 0.000000e+00 : f32
    %77 = vector.broadcast %cst_59 : f32 to vector<128x256xf32>
    %78 = arith.maximumf %76, %77 : vector<128x256xf32>
    %c2_i32 = arith.constant 2 : i32
    %79 = tpu.dynamic_rotate %78 by %c2_i32 dim 1 : vector<128x256xf32>, i32 -> vector<128x256xf32>
    %c2_i32_60 = arith.constant 2 : i32
    %80 = vector.broadcast %c2_i32_60 : i32 to vector<1x256xi32>
    %81 = arith.cmpi sge, %1, %80 : vector<1x256xi32>
    %82 = arith.extui %81 : vector<1x256xi1> to vector<1x256xi32>
    %83 = arith.sitofp %82 : vector<1x256xi32> to vector<1x256xf32>
    %84 = vector.broadcast %83 : vector<1x256xf32> to vector<128x256xf32>
    %85 = arith.mulf %79, %84 : vector<128x256xf32>
    %c254_i32 = arith.constant 254 : i32
    %86 = tpu.dynamic_rotate %78 by %c254_i32 dim 1 : vector<128x256xf32>, i32 -> vector<128x256xf32>
    %c14_i32 = arith.constant 14 : i32
    %87 = vector.broadcast %c14_i32 : i32 to vector<1x256xi32>
    %88 = arith.cmpi slt, %1, %87 : vector<1x256xi32>
    %89 = arith.extui %88 : vector<1x256xi1> to vector<1x256xi32>
    %90 = arith.sitofp %89 : vector<1x256xi32> to vector<1x256xf32>
    %91 = vector.broadcast %90 : vector<1x256xf32> to vector<128x256xf32>
    %92 = arith.mulf %86, %91 : vector<128x256xf32>
    %c0_61 = arith.constant 0 : index
    %c0_62 = arith.constant 0 : index
    %c0_63 = arith.constant 0 : index
    %c0_64 = arith.constant 0 : index
    %93 = vector.load %arg8[%c0_61, %c0_62, %c0_63, %c0_64] : memref<3x3x128x128xf32, #tpu.memory_space<vmem>>, vector<1x1x128x128xf32>
    %94 = vector.shape_cast %93 : vector<1x1x128x128xf32> to vector<128x128xf32>
    %cst_65 = arith.constant dense<0.000000e+00> : vector<128x256xf32>
    %95 = tpu.matmul %94, %85, %cst_65 {dimension_numbers = #tpu.dot_dimension_numbers<[1], [0], [0], [1], [0, 0, 1, 1], [], []>} : vector<128x128xf32>, vector<128x256xf32>, vector<128x256xf32> -> vector<128x256xf32>
    %c0_66 = arith.constant 0 : index
    %c1_67 = arith.constant 1 : index
    %c0_68 = arith.constant 0 : index
    %c0_69 = arith.constant 0 : index
    %96 = vector.load %arg8[%c0_66, %c1_67, %c0_68, %c0_69] : memref<3x3x128x128xf32, #tpu.memory_space<vmem>>, vector<1x1x128x128xf32>
    %97 = vector.shape_cast %96 : vector<1x1x128x128xf32> to vector<128x128xf32>
    %cst_70 = arith.constant dense<0.000000e+00> : vector<128x256xf32>
    %98 = tpu.matmul %97, %78, %cst_70 {dimension_numbers = #tpu.dot_dimension_numbers<[1], [0], [0], [1], [0, 0, 1, 1], [], []>} : vector<128x128xf32>, vector<128x256xf32>, vector<128x256xf32> -> vector<128x256xf32>
    %99 = arith.addf %95, %98 : vector<128x256xf32>
    %c0_71 = arith.constant 0 : index
    %c2_72 = arith.constant 2 : index
    %c0_73 = arith.constant 0 : index
    %c0_74 = arith.constant 0 : index
    %100 = vector.load %arg8[%c0_71, %c2_72, %c0_73, %c0_74] : memref<3x3x128x128xf32, #tpu.memory_space<vmem>>, vector<1x1x128x128xf32>
    %101 = vector.shape_cast %100 : vector<1x1x128x128xf32> to vector<128x128xf32>
    %cst_75 = arith.constant dense<0.000000e+00> : vector<128x256xf32>
    %102 = tpu.matmul %101, %92, %cst_75 {dimension_numbers = #tpu.dot_dimension_numbers<[1], [0], [0], [1], [0, 0, 1, 1], [], []>} : vector<128x128xf32>, vector<128x256xf32>, vector<128x256xf32> -> vector<128x256xf32>
    %103 = arith.addf %99, %102 : vector<128x256xf32>
    %c32_i32 = arith.constant 32 : i32
    %104 = tpu.dynamic_rotate %103 by %c32_i32 dim 1 : vector<128x256xf32>, i32 -> vector<128x256xf32>
    %c2_i32_76 = arith.constant 2 : i32
    %105 = vector.broadcast %c2_i32_76 : i32 to vector<1x256xi32>
    %106 = arith.cmpi sge, %0, %105 : vector<1x256xi32>
    %107 = arith.extui %106 : vector<1x256xi1> to vector<1x256xi32>
    %108 = arith.sitofp %107 : vector<1x256xi32> to vector<1x256xf32>
    %109 = vector.broadcast %108 : vector<1x256xf32> to vector<128x256xf32>
    %110 = arith.mulf %104, %109 : vector<128x256xf32>
    %c1_77 = arith.constant 1 : index
    %c0_78 = arith.constant 0 : index
    %c0_79 = arith.constant 0 : index
    %c0_80 = arith.constant 0 : index
    %111 = vector.load %arg8[%c1_77, %c0_78, %c0_79, %c0_80] : memref<3x3x128x128xf32, #tpu.memory_space<vmem>>, vector<1x1x128x128xf32>
    %112 = vector.shape_cast %111 : vector<1x1x128x128xf32> to vector<128x128xf32>
    %cst_81 = arith.constant dense<0.000000e+00> : vector<128x256xf32>
    %113 = tpu.matmul %112, %85, %cst_81 {dimension_numbers = #tpu.dot_dimension_numbers<[1], [0], [0], [1], [0, 0, 1, 1], [], []>} : vector<128x128xf32>, vector<128x256xf32>, vector<128x256xf32> -> vector<128x256xf32>
    %c1_82 = arith.constant 1 : index
    %c1_83 = arith.constant 1 : index
    %c0_84 = arith.constant 0 : index
    %c0_85 = arith.constant 0 : index
    %114 = vector.load %arg8[%c1_82, %c1_83, %c0_84, %c0_85] : memref<3x3x128x128xf32, #tpu.memory_space<vmem>>, vector<1x1x128x128xf32>
    %115 = vector.shape_cast %114 : vector<1x1x128x128xf32> to vector<128x128xf32>
    %cst_86 = arith.constant dense<0.000000e+00> : vector<128x256xf32>
    %116 = tpu.matmul %115, %78, %cst_86 {dimension_numbers = #tpu.dot_dimension_numbers<[1], [0], [0], [1], [0, 0, 1, 1], [], []>} : vector<128x128xf32>, vector<128x256xf32>, vector<128x256xf32> -> vector<128x256xf32>
    %117 = arith.addf %113, %116 : vector<128x256xf32>
    %c1_87 = arith.constant 1 : index
    %c2_88 = arith.constant 2 : index
    %c0_89 = arith.constant 0 : index
    %c0_90 = arith.constant 0 : index
    %118 = vector.load %arg8[%c1_87, %c2_88, %c0_89, %c0_90] : memref<3x3x128x128xf32, #tpu.memory_space<vmem>>, vector<1x1x128x128xf32>
    %119 = vector.shape_cast %118 : vector<1x1x128x128xf32> to vector<128x128xf32>
    %cst_91 = arith.constant dense<0.000000e+00> : vector<128x256xf32>
    %120 = tpu.matmul %119, %92, %cst_91 {dimension_numbers = #tpu.dot_dimension_numbers<[1], [0], [0], [1], [0, 0, 1, 1], [], []>} : vector<128x128xf32>, vector<128x256xf32>, vector<128x256xf32> -> vector<128x256xf32>
    %121 = arith.addf %117, %120 : vector<128x256xf32>
    %122 = arith.addf %110, %121 : vector<128x256xf32>
    %c2_92 = arith.constant 2 : index
    %c0_93 = arith.constant 0 : index
    %c0_94 = arith.constant 0 : index
    %c0_95 = arith.constant 0 : index
    %123 = vector.load %arg8[%c2_92, %c0_93, %c0_94, %c0_95] : memref<3x3x128x128xf32, #tpu.memory_space<vmem>>, vector<1x1x128x128xf32>
    %124 = vector.shape_cast %123 : vector<1x1x128x128xf32> to vector<128x128xf32>
    %cst_96 = arith.constant dense<0.000000e+00> : vector<128x256xf32>
    %125 = tpu.matmul %124, %85, %cst_96 {dimension_numbers = #tpu.dot_dimension_numbers<[1], [0], [0], [1], [0, 0, 1, 1], [], []>} : vector<128x128xf32>, vector<128x256xf32>, vector<128x256xf32> -> vector<128x256xf32>
    %c2_97 = arith.constant 2 : index
    %c1_98 = arith.constant 1 : index
    %c0_99 = arith.constant 0 : index
    %c0_100 = arith.constant 0 : index
    %126 = vector.load %arg8[%c2_97, %c1_98, %c0_99, %c0_100] : memref<3x3x128x128xf32, #tpu.memory_space<vmem>>, vector<1x1x128x128xf32>
    %127 = vector.shape_cast %126 : vector<1x1x128x128xf32> to vector<128x128xf32>
    %cst_101 = arith.constant dense<0.000000e+00> : vector<128x256xf32>
    %128 = tpu.matmul %127, %78, %cst_101 {dimension_numbers = #tpu.dot_dimension_numbers<[1], [0], [0], [1], [0, 0, 1, 1], [], []>} : vector<128x128xf32>, vector<128x256xf32>, vector<128x256xf32> -> vector<128x256xf32>
    %129 = arith.addf %125, %128 : vector<128x256xf32>
    %c2_102 = arith.constant 2 : index
    %c2_103 = arith.constant 2 : index
    %c0_104 = arith.constant 0 : index
    %c0_105 = arith.constant 0 : index
    %130 = vector.load %arg8[%c2_102, %c2_103, %c0_104, %c0_105] : memref<3x3x128x128xf32, #tpu.memory_space<vmem>>, vector<1x1x128x128xf32>
    %131 = vector.shape_cast %130 : vector<1x1x128x128xf32> to vector<128x128xf32>
    %cst_106 = arith.constant dense<0.000000e+00> : vector<128x256xf32>
    %132 = tpu.matmul %131, %92, %cst_106 {dimension_numbers = #tpu.dot_dimension_numbers<[1], [0], [0], [1], [0, 0, 1, 1], [], []>} : vector<128x128xf32>, vector<128x256xf32>, vector<128x256xf32> -> vector<128x256xf32>
    %133 = arith.addf %129, %132 : vector<128x256xf32>
    %c224_i32 = arith.constant 224 : i32
    %134 = tpu.dynamic_rotate %133 by %c224_i32 dim 1 : vector<128x256xf32>, i32 -> vector<128x256xf32>
    %c14_i32_107 = arith.constant 14 : i32
    %135 = vector.broadcast %c14_i32_107 : i32 to vector<1x256xi32>
    %136 = arith.cmpi slt, %0, %135 : vector<1x256xi32>
    %137 = arith.extui %136 : vector<1x256xi1> to vector<1x256xi32>
    %138 = arith.sitofp %137 : vector<1x256xi32> to vector<1x256xf32>
    %139 = vector.broadcast %138 : vector<1x256xf32> to vector<128x256xf32>
    %140 = arith.mulf %134, %139 : vector<128x256xf32>
    %141 = arith.addf %122, %140 : vector<128x256xf32>
    %c0_108 = arith.constant 0 : index
    %c0_109 = arith.constant 0 : index
    %142 = vector.load %arg9[%c0_108, %c0_109] : memref<128x1xf32, #tpu.memory_space<vmem>>, vector<128x1xf32>
    %143 = vector.broadcast %142 : vector<128x1xf32> to vector<128x256xf32>
    %144 = arith.addf %141, %143 : vector<128x256xf32>
    %cst_110 = arith.constant 0.000000e+00 : f32
    %145 = vector.broadcast %cst_110 : f32 to vector<128x256xf32>
    %146 = arith.maximumf %144, %145 : vector<128x256xf32>
    %147 = arith.addf %10, %146 : vector<128x256xf32>
    %c0_111 = arith.constant 0 : index
    %c0_112 = arith.constant 0 : index
    %c0_113 = arith.constant 0 : index
    %148 = vector.load %arg10[%c0_111, %c0_112, %c0_113] : memref<1x128x256xf32, #tpu.memory_space<vmem>>, vector<1x128x256xf32>
    %149 = vector.shape_cast %148 : vector<1x128x256xf32> to vector<128x256xf32>
    %150 = vector.shape_cast %147 : vector<128x256xf32> to vector<1x128x256xf32>
    tpu.vector_store %arg10[%c0_111, %c0_112, %c0_113], %150 {strides = array<i32>} : memref<1x128x256xf32, #tpu.memory_space<vmem>>, vector<1x128x256xf32>,
    return
  }
  func.func @transform_0(%arg0: i32) -> (i32, i32) {
    %c0_i32 = arith.constant 0 : i32
    %c0_i32_0 = arith.constant 0 : i32
    %c0_i32_1 = arith.constant 0 : i32
    return %c0_i32, %c0_i32_0 : i32, i32
  }
  func.func @transform_1(%arg0: i32) -> (i32, i32) {
    %c0_i32 = arith.constant 0 : i32
    %c0_i32_0 = arith.constant 0 : i32
    %c0_i32_1 = arith.constant 0 : i32
    return %c0_i32, %c0_i32_0 : i32, i32
  }
  func.func @transform_2(%arg0: i32) -> (i32, i32, i32) {
    %c0_i32 = arith.constant 0 : i32
    %c0_i32_0 = arith.constant 0 : i32
    %c0_i32_1 = arith.constant 0 : i32
    return %arg0, %c0_i32, %c0_i32_0 : i32, i32, i32
  }
  func.func @transform_3(%arg0: i32) -> (i32, i32) {
    %c0_i32 = arith.constant 0 : i32
    %c0_i32_0 = arith.constant 0 : i32
    %c0_i32_1 = arith.constant 0 : i32
    return %c0_i32, %c0_i32_0 : i32, i32
  }
  func.func @transform_4(%arg0: i32) -> (i32, i32) {
    %c0_i32 = arith.constant 0 : i32
    %c0_i32_0 = arith.constant 0 : i32
    %c0_i32_1 = arith.constant 0 : i32
    return %c0_i32, %c0_i32_0 : i32, i32
  }
  func.func @transform_5(%arg0: i32) -> (i32, i32, i32, i32) {
    %c0_i32 = arith.constant 0 : i32
    %c0_i32_0 = arith.constant 0 : i32
    %c0_i32_1 = arith.constant 0 : i32
    %c0_i32_2 = arith.constant 0 : i32
    %c0_i32_3 = arith.constant 0 : i32
    return %c0_i32, %c0_i32_0, %c0_i32_1, %c0_i32_2 : i32, i32, i32, i32
  }
  func.func @transform_6(%arg0: i32) -> (i32, i32) {
    %c0_i32 = arith.constant 0 : i32
    %c0_i32_0 = arith.constant 0 : i32
    %c0_i32_1 = arith.constant 0 : i32
    return %c0_i32, %c0_i32_0 : i32, i32
  }
  func.func @transform_7(%arg0: i32) -> (i32, i32, i32, i32) {
    %c0_i32 = arith.constant 0 : i32
    %c0_i32_0 = arith.constant 0 : i32
    %c0_i32_1 = arith.constant 0 : i32
    %c0_i32_2 = arith.constant 0 : i32
    %c0_i32_3 = arith.constant 0 : i32
    return %c0_i32, %c0_i32_0, %c0_i32_1, %c0_i32_2 : i32, i32, i32, i32
  }
  func.func @transform_8(%arg0: i32) -> (i32, i32) {
    %c0_i32 = arith.constant 0 : i32
    %c0_i32_0 = arith.constant 0 : i32
    %c0_i32_1 = arith.constant 0 : i32
    return %c0_i32, %c0_i32_0 : i32, i32
  }
  func.func @transform_9(%arg0: i32) -> (i32, i32, i32) {
    %c0_i32 = arith.constant 0 : i32
    %c0_i32_0 = arith.constant 0 : i32
    %c0_i32_1 = arith.constant 0 : i32
    return %arg0, %c0_i32, %c0_i32_0 : i32, i32, i32
  }
}

</mosaic_0001>

<llo_original>
// kernel: tpu_custom_call.1
$region0: #{tpu_custom_call.1}
  #allocation0 [shape = 'u32[]', space=smem, size = 0x4, offset = 0x4, fixed_abs, tag = 'smem constant byte address 0x4 - core index']
  #allocation1 [shape = 'u32[144,128]{1,0:T(1,128)}', space=vmem, size = 0x12000, scoped, tag = 'internal scratch']
  %s0 = inlined_call_operand.vmem [shape: s32[1,256], index: 0, kind: input, shape index: {}]
  %s1 = inlined_call_operand.vmem [shape: s32[1,256], index: 1, kind: input, shape index: {}]
  %s2 = inlined_call_operand.hbm [shape: f32[2,128,256], index: 2, kind: input, shape index: {}]
  %s3 = inlined_call_operand.vmem [shape: f32[128,128], index: 3, kind: input, shape index: {}]
  %s4 = inlined_call_operand.vmem [shape: f32[128,1], index: 4, kind: input, shape index: {}]
  %s5 = inlined_call_operand.hbm [shape: f32[3,3,128,128], index: 5, kind: input, shape index: {}]
  %s6 = inlined_call_operand.vmem [shape: f32[128,1], index: 6, kind: input, shape index: {}]
  %s7 = inlined_call_operand.hbm [shape: f32[3,3,128,128], index: 7, kind: input, shape index: {}]
  %s8 = inlined_call_operand.vmem [shape: f32[128,1], index: 8, kind: input, shape index: {}]
  %s9 = inlined_call_operand.hbm [shape: f32[2,128,256], index: 9, kind: output, shape index: {}]
  %s10 = sld [smem:[#allocation0]]
  $region81: #{tpu_custom_call.1} parent=0
    _
  %s12 = ssub.s32 1, %s10
  %s13 = scalar_select 0, %s12, %s10
  $region1: #{tpu_custom_call.1} parent=0
    #allocation2 [shape = 'u8[262144]{0}', space=vmem, size = 0x40000, scoped, tag = 'input window, operand 2']
    #allocation3 [shape = 's32[2]{0}', space=sflag, size = 0x8, scoped, tag = 'scoped memory for tpu_custom_call.1']
    #allocation4 [shape = 's32[2]{0}', space=sflag, size = 0x8, scoped, tag = 'scoped memory for tpu_custom_call.1']
    #allocation5 [shape = 'u8[589824]{0}', space=vmem, size = 0x90000, scoped, tag = 'input window, operand 5, single buffered']
    #allocation6 [shape = 's32[1]{0}', space=sflag, size = 0x4, scoped, tag = 'scoped memory for tpu_custom_call.1']
    #allocation7 [shape = 'u8[589824]{0}', space=vmem, size = 0x90000, scoped, tag = 'input window, operand 7, single buffered']
    #allocation8 [shape = 'u8[262144]{0}', space=vmem, size = 0x40000, scoped, tag = 'output window, operand 0']
    %14 = vsyncpa [#allocation3], 0
    %s15 = scalar_lea.sflag [#allocation3], 1
    %16 = vsyncpa %s15, 0
    %17 = vsyncpa [#allocation6], 0
    %18 = vsyncpa [#allocation4], 0
    %s19 = scalar_lea.sflag [#allocation4], 1
    %20 = vsyncpa %s19, 0
    loop: start=0, step=1, limit=4
    $region2: #{tpu_custom_call.1} parent=1 // loop_pre_header
      _
    $region3: #{tpu_custom_call.1} parent=1 // loop_header
      %s22 = sphi 0, %s26
      %p23 = scmp.ge.s32.totalorder %s22, 4
      %s30 = sphi 0, %s30
      %s32 = sphi 0, %s30
      %s33 = sphi 0, %s32
      %s47 = sphi 0, %s33
      %s51 = sphi 0, %s51
      %s53 = sphi 0, %s51
      %s54 = sphi 0, %s53
      %s68 = sphi 0, %s54
      %s74 = sphi 0, %s76
      %s77 = sphi 0, %s74
      %s78 = sphi 0, %s77
      %s94 = sphi 0, %s78
      %s98 = sphi 0, %s98
      %s100 = sphi 0, %s98
      %s101 = sphi 0, %s100
      %s115 = sphi 0, %s101
      %s119 = sphi 0, %s119
      %s121 = sphi 0, %s119
      %s122 = sphi 0, %s121
      %s136 = sphi 0, %s122
      %s140 = sphi 0, %s140
      %s142 = sphi 0, %s140
      %s143 = sphi 0, %s142
      %s157 = sphi 0, %s143
      %s161 = sphi 0, %s161
      %s163 = sphi 0, %s161
      %s164 = sphi 0, %s163
      %s178 = sphi 0, %s164
      %s182 = sphi 0, %s182
      %s184 = sphi 0, %s182
      %s185 = sphi 0, %s184
      %s199 = sphi 0, %s185
      %s203 = sphi 0, %s203
      %s205 = sphi 0, %s203
      %s206 = sphi 0, %s205
      %s220 = sphi 0, %s206
      %s226 = sphi 0, %s228
      %s229 = sphi 0, %s226
      %s230 = sphi 0, %s229
      %s246 = sphi 0, %s230
    $region4: #{tpu_custom_call.1} parent=1 // loop_header_branch
      %25 = sbr.rel (%p23) target = $region8
    $region5: #{tpu_custom_call.1} parent=1 // loop_body
      %s27 = ssub.s32 %s22, 1
      %s28 = ssub.s32 %s22, 2
      %s29 = sadd.s32 %s22, 1
      %s31 = sadd.s32 %s30, 1
      %p34 = scmp.eq.s32.totalorder %s22, 1
      %p35 = scmp.ne.s32.totalorder %s30, %s32
      %p36 = scmp.eq.s32.totalorder %s22, 0
      %p37 = por %p35, %p36
      %p38 = scmp.ne.s32.totalorder %s30, %s32
      %p39 = scmp.eq.s32.totalorder %s27, 1
      %p40 = por %p38, %p39
      %p41 = scmp.ne.s32.totalorder %s32, %s33
      %p42 = scmp.eq.s32.totalorder %s27, 0
      %p43 = por %p41, %p42
      %p44 = scmp.ne.s32.totalorder %s32, %s33
      %p45 = scmp.eq.s32.totalorder %s28, 1
      %p46 = por %p44, %p45
      %p48 = scmp.ne.s32.totalorder %s33, %s47
      %p49 = scmp.eq.s32.totalorder %s28, 0
      %p50 = por %p48, %p49
      %s52 = sadd.s32 %s51, 1
      %p55 = scmp.eq.s32.totalorder %s22, 1
      %p56 = scmp.ne.s32.totalorder %s51, %s53
      %p57 = scmp.eq.s32.totalorder %s22, 0
      %p58 = por %p56, %p57
      %p59 = scmp.ne.s32.totalorder %s51, %s53
      %p60 = scmp.eq.s32.totalorder %s27, 1
      %p61 = por %p59, %p60
      %p62 = scmp.ne.s32.totalorder %s53, %s54
      %p63 = scmp.eq.s32.totalorder %s27, 0
      %p64 = por %p62, %p63
      %p65 = scmp.ne.s32.totalorder %s53, %s54
      %p66 = scmp.eq.s32.totalorder %s28, 1
      %p67 = por %p65, %p66
      %p69 = scmp.ne.s32.totalorder %s54, %s68
      %p70 = scmp.eq.s32.totalorder %s28, 0
      %p71 = por %p69, %p70
      %s72 = ssub.s32 %s22, %s29
      %p73 = scmp.eq.s32.totalorder %s72, 0
      %s75 = sadd.s32 %s74, 1
      %s76 = scalar_select %p73, %s74, %s75
      %p79 = pneg %p73
      %p80 = scmp.eq.s32.totalorder %s22, 1
      %p81 = por %p79, %p80
      %p82 = scmp.ne.s32.totalorder %s74, %s77
      %p83 = scmp.eq.s32.totalorder %s22, 0
      %p84 = por %p82, %p83
      %p85 = scmp.ne.s32.totalorder %s74, %s77
      %p86 = scmp.eq.s32.totalorder %s27, 1
      %p87 = por %p85, %p86
      %p88 = scmp.ne.s32.totalorder %s77, %s78
      %p89 = scmp.eq.s32.totalorder %s27, 0
      %p90 = por %p88, %p89
      %p91 = scmp.ne.s32.totalorder %s77, %s78
      %p92 = scmp.eq.s32.totalorder %s28, 1
      %p93 = por %p91, %p92
      %p95 = scmp.ne.s32.totalorder %s78, %s94
      %p96 = scmp.eq.s32.totalorder %s28, 0
      %p97 = por %p95, %p96
      %s99 = sadd.s32 %s98, 1
      %p102 = scmp.eq.s32.totalorder %s22, 1
      %p103 = scmp.ne.s32.totalorder %s98, %s100
      %p104 = scmp.eq.s32.totalorder %s22, 0
      %p105 = por %p103, %p104
      %p106 = scmp.ne.s32.totalorder %s98, %s100
      %p107 = scmp.eq.s32.totalorder %s27, 1
      %p108 = por %p106, %p107
      %p109 = scmp.ne.s32.totalorder %s100, %s101
      %p110 = scmp.eq.s32.totalorder %s27, 0
      %p111 = por %p109, %p110
      %p112 = scmp.ne.s32.totalorder %s100, %s101
      %p113 = scmp.eq.s32.totalorder %s28, 1
      %p114 = por %p112, %p113
      %p116 = scmp.ne.s32.totalorder %s101, %s115
      %p117 = scmp.eq.s32.totalorder %s28, 0
      %p118 = por %p116, %p117
      %s120 = sadd.s32 %s119, 1
      %p123 = scmp.eq.s32.totalorder %s22, 1
      %p124 = scmp.ne.s32.totalorder %s119, %s121
      %p125 = scmp.eq.s32.totalorder %s22, 0
      %p126 = por %p124, %p125
      %p127 = scmp.ne.s32.totalorder %s119, %s121
      %p128 = scmp.eq.s32.totalorder %s27, 1
      %p129 = por %p127, %p128
      %p130 = scmp.ne.s32.totalorder %s121, %s122
      %p131 = scmp.eq.s32.totalorder %s27, 0
      %p132 = por %p130, %p131
      %p133 = scmp.ne.s32.totalorder %s121, %s122
      %p134 = scmp.eq.s32.totalorder %s28, 1
      %p135 = por %p133, %p134
      %p137 = scmp.ne.s32.totalorder %s122, %s136
      %p138 = scmp.eq.s32.totalorder %s28, 0
      %p139 = por %p137, %p138
      %s141 = sadd.s32 %s140, 1
      %p144 = scmp.eq.s32.totalorder %s22, 1
      %p145 = scmp.ne.s32.totalorder %s140, %s142
      %p146 = scmp.eq.s32.totalorder %s22, 0
      %p147 = por %p145, %p146
      %p148 = scmp.ne.s32.totalorder %s140, %s142
      %p149 = scmp.eq.s32.totalorder %s27, 1
      %p150 = por %p148, %p149
      %p151 = scmp.ne.s32.totalorder %s142, %s143
      %p152 = scmp.eq.s32.totalorder %s27, 0
      %p153 = por %p151, %p152
      %p154 = scmp.ne.s32.totalorder %s142, %s143
      %p155 = scmp.eq.s32.totalorder %s28, 1
      %p156 = por %p154, %p155
      %p158 = scmp.ne.s32.totalorder %s143, %s157
      %p159 = scmp.eq.s32.totalorder %s28, 0
      %p160 = por %p158, %p159
      %s162 = sadd.s32 %s161, 1
      %p165 = scmp.eq.s32.totalorder %s22, 1
      %p166 = scmp.ne.s32.totalorder %s161, %s163
      %p167 = scmp.eq.s32.totalorder %s22, 0
      %p168 = por %p166, %p167
      %p169 = scmp.ne.s32.totalorder %s161, %s163
      %p170 = scmp.eq.s32.totalorder %s27, 1
      %p171 = por %p169, %p170
      %p172 = scmp.ne.s32.totalorder %s163, %s164
      %p173 = scmp.eq.s32.totalorder %s27, 0
      %p174 = por %p172, %p173
      %p175 = scmp.ne.s32.totalorder %s163, %s164
      %p176 = scmp.eq.s32.totalorder %s28, 1
      %p177 = por %p175, %p176
      %p179 = scmp.ne.s32.totalorder %s164, %s178
      %p180 = scmp.eq.s32.totalorder %s28, 0
      %p181 = por %p179, %p180
      %s183 = sadd.s32 %s182, 1
      %p186 = scmp.eq.s32.totalorder %s22, 1
      %p187 = scmp.ne.s32.totalorder %s182, %s184
      %p188 = scmp.eq.s32.totalorder %s22, 0
      %p189 = por %p187, %p188
      %p190 = scmp.ne.s32.totalorder %s182, %s184
      %p191 = scmp.eq.s32.totalorder %s27, 1
      %p192 = por %p190, %p191
      %p193 = scmp.ne.s32.totalorder %s184, %s185
      %p194 = scmp.eq.s32.totalorder %s27, 0
      %p195 = por %p193, %p194
      %p196 = scmp.ne.s32.totalorder %s184, %s185
      %p197 = scmp.eq.s32.totalorder %s28, 1
      %p198 = por %p196, %p197
      %p200 = scmp.ne.s32.totalorder %s185, %s199
      %p201 = scmp.eq.s32.totalorder %s28, 0
      %p202 = por %p200, %p201
      %s204 = sadd.s32 %s203, 1
      %p207 = scmp.eq.s32.totalorder %s22, 1
      %p208 = scmp.ne.s32.totalorder %s203, %s205
      %p209 = scmp.eq.s32.totalorder %s22, 0
      %p210 = por %p208, %p209
      %p211 = scmp.ne.s32.totalorder %s203, %s205
      %p212 = scmp.eq.s32.totalorder %s27, 1
      %p213 = por %p211, %p212
      %p214 = scmp.ne.s32.totalorder %s205, %s206
      %p215 = scmp.eq.s32.totalorder %s27, 0
      %p216 = por %p214, %p215
      %p217 = scmp.ne.s32.totalorder %s205, %s206
      %p218 = scmp.eq.s32.totalorder %s28, 1
      %p219 = por %p217, %p218
      %p221 = scmp.ne.s32.totalorder %s206, %s220
      %p222 = scmp.eq.s32.totalorder %s28, 0
      %p223 = por %p221, %p222
      %s224 = ssub.s32 %s22, %s29
      %p225 = scmp.eq.s32.totalorder %s224, 0
      %s227 = sadd.s32 %s226, 1
      %s228 = scalar_select %p225, %s226, %s227
      %p231 = pneg %p225
      %p232 = scmp.eq.s32.totalorder %s22, 1
      %p233 = por %p231, %p232
      %p234 = scmp.ne.s32.totalorder %s226, %s229
      %p235 = scmp.eq.s32.totalorder %s22, 0
      %p236 = por %p234, %p235
      %p237 = scmp.ne.s32.totalorder %s226, %s229
      %p238 = scmp.eq.s32.totalorder %s27, 1
      %p239 = por %p237, %p238
      %p240 = scmp.ne.s32.totalorder %s229, %s230
      %p241 = scmp.eq.s32.totalorder %s27, 0
      %p242 = por %p240, %p241
      %p243 = scmp.ne.s32.totalorder %s229, %s230
      %p244 = scmp.eq.s32.totalorder %s28, 1
      %p245 = por %p243, %p244
      %p247 = scmp.ne.s32.totalorder %s230, %s246
      %p248 = scmp.eq.s32.totalorder %s28, 0
      %p249 = por %p247, %p248
      %p250 = scmp.le.s32.totalorder 1, %s22
      %p251 = scmp.lt.s32.totalorder %s22, 3
      %p252 = pnand %p250, %p251
      %p253 = pneg %p252
      // Predicated region
      $region9: #{tpu_custom_call.1} parent=5 // pred_check
        _
      $region10: #{tpu_custom_call.1} parent=5 // pred_check_branch
        %255 = sbr.rel (%p252) target = $region12
      $region11: #{tpu_custom_call.1} parent=5 // pred_region
        %s256 = ssub.s32 %s22, 1
        // Predicated region
        $region13: #{tpu_custom_call.1} parent=11 // pred_check
          %p257 = pneg %p43
        $region14: #{tpu_custom_call.1} parent=11 // pred_check_branch
          %259 = sbr.rel (%p257) target = $region16
        $region15: #{tpu_custom_call.1} parent=11 // pred_region
          _
        $region16: #{tpu_custom_call.1} parent=11 // pred_fallthru
          _
        // Predicated region
        $region17: #{tpu_custom_call.1} parent=11 // pred_check
          %p260 = pneg %p64
        $region18: #{tpu_custom_call.1} parent=11 // pred_check_branch
          %262 = sbr.rel (%p260) target = $region20
        $region19: #{tpu_custom_call.1} parent=11 // pred_region
          _
        $region20: #{tpu_custom_call.1} parent=11 // pred_fallthru
          _
        // Predicated region
        $region21: #{tpu_custom_call.1} parent=11 // pred_check
          %p263 = pneg %p111
        $region22: #{tpu_custom_call.1} parent=11 // pred_check_branch
          %265 = sbr.rel (%p263) target = $region24
        $region23: #{tpu_custom_call.1} parent=11 // pred_region
          _
        $region24: #{tpu_custom_call.1} parent=11 // pred_fallthru
          _
        // Predicated region
        $region25: #{tpu_custom_call.1} parent=11 // pred_check
          %p266 = pneg %p132
        $region26: #{tpu_custom_call.1} parent=11 // pred_check_branch
          %268 = sbr.rel (%p266) target = $region28
        $region27: #{tpu_custom_call.1} parent=11 // pred_region
          _
        $region28: #{tpu_custom_call.1} parent=11 // pred_fallthru
          _
        // Predicated region
        $region29: #{tpu_custom_call.1} parent=11 // pred_check
          %p269 = pneg %p153
        $region30: #{tpu_custom_call.1} parent=11 // pred_check_branch
          %271 = sbr.rel (%p269) target = $region32
        $region31: #{tpu_custom_call.1} parent=11 // pred_region
          %s273 = ssub.s32 18432, 18432
          %274 = vsyncadd [#allocation6], %s273
          %s275 = sshll.u32 [#allocation5], 4
          %s276 = int_to_ptr.vmem [resolvable:$true] %s275
          %281 = dma.hbm_to_vmem [thread:$0]  %s5, 18432, %s276, [#allocation6], 128, 128, 8
        $region32: #{tpu_custom_call.1} parent=11 // pred_fallthru
          _
        // Predicated region
        $region33: #{tpu_custom_call.1} parent=11 // pred_check
          %p282 = pneg %p174
        $region34: #{tpu_custom_call.1} parent=11 // pred_check_branch
          %284 = sbr.rel (%p282) target = $region36
        $region35: #{tpu_custom_call.1} parent=11 // pred_region
          _
        $region36: #{tpu_custom_call.1} parent=11 // pred_fallthru
          _
        // Predicated region
        $region37: #{tpu_custom_call.1} parent=11 // pred_check
          %p285 = pneg %p195
        $region38: #{tpu_custom_call.1} parent=11 // pred_check_branch
          %287 = sbr.rel (%p285) target = $region40
        $region39: #{tpu_custom_call.1} parent=11 // pred_region
          %s289 = ssub.s32 18432, 18432
          %290 = vsyncadd [#allocation6], %s289
          %s291 = sshll.u32 [#allocation7], 4
          %s292 = int_to_ptr.vmem [resolvable:$true] %s291
          %297 = dma.hbm_to_vmem [thread:$0]  %s7, 18432, %s292, [#allocation6], 128, 128, 8
        $region40: #{tpu_custom_call.1} parent=11 // pred_fallthru
          _
        // Predicated region
        $region41: #{tpu_custom_call.1} parent=11 // pred_check
          %p298 = pneg %p216
        $region42: #{tpu_custom_call.1} parent=11 // pred_check_branch
          %300 = sbr.rel (%p298) target = $region44
        $region43: #{tpu_custom_call.1} parent=11 // pred_region
          _
        $region44: #{tpu_custom_call.1} parent=11 // pred_fallthru
          _
      $region12: #{tpu_custom_call.1} parent=5 // pred_fallthru
        _
      %p301 = scmp.lt.s32.totalorder %s22, 2
      // Predicated region
      $region45: #{tpu_custom_call.1} parent=5 // pred_check
        %p302 = pneg %p301
      $region46: #{tpu_custom_call.1} parent=5 // pred_check_branch
        %304 = sbr.rel (%p302) target = $region48
      $region47: #{tpu_custom_call.1} parent=5 // pred_region
        // Predicated region
        $region49: #{tpu_custom_call.1} parent=47 // pred_check
          %p305 = pneg %p84
        $region50: #{tpu_custom_call.1} parent=47 // pred_check_branch
          %307 = sbr.rel (%p305) target = $region52
        $region51: #{tpu_custom_call.1} parent=47 // pred_region
          %s308 = sand.u32 %s74, 1
          %s309 = scalar_lea.sflag [#allocation3], %s308
          %s310 = sand.u32 %s74, 1
          %s311 = smul.addr %s310, 256
          %s312 = scalar_lea.vmem [#allocation2], %s311
          %s314 = ssub.s32 4096, 4096
          %315 = vsyncadd %s309, %s314
          %s316 = smul.addr %s22, 32
          %s317 = smul.addr %s316, 128
          %s318 = scalar_lea.hbm %s2, %s317
          %s319 = sshll.u32 %s312, 4
          %s320 = int_to_ptr.vmem [resolvable:$true] %s319
          %325 = dma.hbm_to_vmem [thread:$0]  %s318, 4096, %s320, %s309, 256, 256, 16
        $region52: #{tpu_custom_call.1} parent=47 // pred_fallthru
          _
      $region48: #{tpu_custom_call.1} parent=5 // pred_fallthru
        _
      %p326 = scmp.le.s32.totalorder 1, %s22
      %p327 = scmp.lt.s32.totalorder %s22, 3
      %p328 = pnand %p326, %p327
      %p329 = pneg %p328
      // Predicated region
      $region53: #{tpu_custom_call.1} parent=5 // pred_check
        _
      $region54: #{tpu_custom_call.1} parent=5 // pred_check_branch
        %331 = sbr.rel (%p328) target = $region56
      $region55: #{tpu_custom_call.1} parent=5 // pred_region
        %s332 = ssub.s32 %s22, 1
        %s333 = sand.u32 %s77, 1
        %s334 = scalar_lea.sflag [#allocation3], %s333
        %s335 = sand.u32 %s77, 1
        %s336 = smul.addr %s335, 256
        %s337 = scalar_lea.vmem [#allocation2], %s336
        // Predicated region
        $region57: #{tpu_custom_call.1} parent=55 // pred_check
          %p338 = pneg %p90
        $region58: #{tpu_custom_call.1} parent=55 // pred_check_branch
          %340 = sbr.rel (%p338) target = $region60
        $region59: #{tpu_custom_call.1} parent=55 // pred_region
          %341 = dma.done %s334, 4096
        $region60: #{tpu_custom_call.1} parent=55 // pred_fallthru
          _
        // Predicated region
        $region61: #{tpu_custom_call.1} parent=55 // pred_check
          %p342 = pneg %p153
        $region62: #{tpu_custom_call.1} parent=55 // pred_check_branch
          %344 = sbr.rel (%p342) target = $region64
        $region63: #{tpu_custom_call.1} parent=55 // pred_region
          %345 = dma.done [#allocation6], 18432
        $region64: #{tpu_custom_call.1} parent=55 // pred_fallthru
          _
        // Predicated region
        $region65: #{tpu_custom_call.1} parent=55 // pred_check
          %p346 = pneg %p195
        $region66: #{tpu_custom_call.1} parent=55 // pred_check_branch
          %348 = sbr.rel (%p346) target = $region68
        $region67: #{tpu_custom_call.1} parent=55 // pred_region
          %349 = dma.done [#allocation6], 18432
        $region68: #{tpu_custom_call.1} parent=55 // pred_fallthru
          _
        %p350 = pneg %p43
        %p351 = pneg %p40
        %p352 = pneg %p64
        %p353 = pneg %p61
        %s354 = sand.u32 %s77, 1
        %s355 = scalar_lea.sflag [#allocation3], %s354
        %s356 = sand.u32 %s77, 1
        %s357 = smul.addr %s356, 256
        %s358 = scalar_lea.vmem [#allocation2], %s357
        %p359 = pneg %p90
        %p360 = pneg %p87
        %p361 = pneg %p111
        %p362 = pneg %p108
        %p363 = pneg %p132
        %p364 = pneg %p129
        %p365 = pneg %p153
        %p366 = pneg %p150
        %p367 = pneg %p174
        %p368 = pneg %p171
        %p369 = pneg %p195
        %p370 = pneg %p192
        %p371 = pneg %p216
        %p372 = pneg %p213
        %p373 = pneg %p242
        %p374 = pneg %p239
        %s375 = sand.u32 %s229, 1
        %s376 = scalar_lea.sflag [#allocation4], %s375
        %s377 = sand.u32 %s229, 1
        %s378 = smul.addr %s377, 256
        %s379 = scalar_lea.vmem [#allocation8], %s378
        %v380 = vld [vmem:[%s0] sm:$0x3]
        %v381 = vld [vmem:[%s1] sm:$0x3]
        %v382 = vld [vmem:[%s3] sm:$0xff]
        %v383 = vld [vmem:[%s3 + $0x8] sm:$0xff]
        %v384 = vld [vmem:[%s3 + $0x10] sm:$0xff]
        %v385 = vld [vmem:[%s3 + $0x18] sm:$0xff]
        %v386 = vld [vmem:[%s3 + $0x20] sm:$0xff]
        %v387 = vld [vmem:[%s3 + $0x28] sm:$0xff]
        %v388 = vld [vmem:[%s3 + $0x30] sm:$0xff]
        %v389 = vld [vmem:[%s3 + $0x38] sm:$0xff]
        %v390 = vld [vmem:[%s3 + $0x40] sm:$0xff]
        %v391 = vld [vmem:[%s3 + $0x48] sm:$0xff]
        %v392 = vld [vmem:[%s3 + $0x50] sm:$0xff]
        %v393 = vld [vmem:[%s3 + $0x58] sm:$0xff]
        %v394 = vld [vmem:[%s3 + $0x60] sm:$0xff]
        %v395 = vld [vmem:[%s3 + $0x68] sm:$0xff]
        %v396 = vld [vmem:[%s3 + $0x70] sm:$0xff]
        %v397 = vld [vmem:[%s3 + $0x78] sm:$0xff]
        %v398 = vld [vmem:[%s337] sm:$0xff]
        %v399 = vld [vmem:[%s337 + $0x8] sm:$0xff]
        %v400 = vld [vmem:[%s337 + $0x10] sm:$0xff]
        %v401 = vld [vmem:[%s337 + $0x18] sm:$0xff]
        %v402 = vld [vmem:[%s337 + $0x20] sm:$0xff]
        %v403 = vld [vmem:[%s337 + $0x28] sm:$0xff]
        %v404 = vld [vmem:[%s337 + $0x30] sm:$0xff]
        %v405 = vld [vmem:[%s337 + $0x38] sm:$0xff]
        %v406 = vld [vmem:[%s337 + $0x40] sm:$0xff]
        %v407 = vld [vmem:[%s337 + $0x48] sm:$0xff]
        %v408 = vld [vmem:[%s337 + $0x50] sm:$0xff]
        %v409 = vld [vmem:[%s337 + $0x58] sm:$0xff]
        %v410 = vld [vmem:[%s337 + $0x60] sm:$0xff]
        %v411 = vld [vmem:[%s337 + $0x68] sm:$0xff]
        %v412 = vld [vmem:[%s337 + $0x70] sm:$0xff]
        %v413 = vld [vmem:[%s337 + $0x78] sm:$0xff]
        %v414 = vld [vmem:[%s337 + $0x80] sm:$0xff]
        %v415 = vld [vmem:[%s337 + $0x88] sm:$0xff]
        %v416 = vld [vmem:[%s337 + $0x90] sm:$0xff]
        %v417 = vld [vmem:[%s337 + $0x98] sm:$0xff]
        %v418 = vld [vmem:[%s337 + $0xa0] sm:$0xff]
        %v419 = vld [vmem:[%s337 + $0xa8] sm:$0xff]
        %v420 = vld [vmem:[%s337 + $0xb0] sm:$0xff]
        %v421 = vld [vmem:[%s337 + $0xb8] sm:$0xff]
        %v422 = vld [vmem:[%s337 + $0xc0] sm:$0xff]
        %v423 = vld [vmem:[%s337 + $0xc8] sm:$0xff]
        %v424 = vld [vmem:[%s337 + $0xd0] sm:$0xff]
        %v425 = vld [vmem:[%s337 + $0xd8] sm:$0xff]
        %v426 = vld [vmem:[%s337 + $0xe0] sm:$0xff]
        %v427 = vld [vmem:[%s337 + $0xe8] sm:$0xff]
        %v428 = vld [vmem:[%s337 + $0xf0] sm:$0xff]
        %v429 = vld [vmem:[%s337 + $0xf8] sm:$0xff]
        %v430 = vld [vmem:[%s4] sm:$0xff]
        %v431 = vld [vmem:[%s4 + $0x8] sm:$0xff]
        %v432 = vld [vmem:[%s4 + $0x10] sm:$0xff]
        %v433 = vld [vmem:[%s4 + $0x18] sm:$0xff]
        %v434 = vld [vmem:[%s4 + $0x20] sm:$0xff]
        %v435 = vld [vmem:[%s4 + $0x28] sm:$0xff]
        %v436 = vld [vmem:[%s4 + $0x30] sm:$0xff]
        %v437 = vld [vmem:[%s4 + $0x38] sm:$0xff]
        %v438 = vld [vmem:[%s4 + $0x40] sm:$0xff]
        %v439 = vld [vmem:[%s4 + $0x48] sm:$0xff]
        %v440 = vld [vmem:[%s4 + $0x50] sm:$0xff]
        %v441 = vld [vmem:[%s4 + $0x58] sm:$0xff]
        %v442 = vld [vmem:[%s4 + $0x60] sm:$0xff]
        %v443 = vld [vmem:[%s4 + $0x68] sm:$0xff]
        %v444 = vld [vmem:[%s4 + $0x70] sm:$0xff]
        %v445 = vld [vmem:[%s4 + $0x78] sm:$0xff]
        %447 = vset.pattern.permute.xlu0 0
        %448 = vperm.xlu0 %447, %v430
        %v449 = vpop.permute.xlu0 %448
        %452 = vset.pattern.permute.xlu0 0
        %453 = vperm.xlu0 %452, %v431
        %v454 = vpop.permute.xlu0 %453
        %457 = vset.pattern.permute.xlu0 0
        %458 = vperm.xlu0 %457, %v432
        %v459 = vpop.permute.xlu0 %458
        %462 = vset.pattern.permute.xlu0 0
        %463 = vperm.xlu0 %462, %v433
        %v464 = vpop.permute.xlu0 %463
        %467 = vset.pattern.permute.xlu0 0
        %468 = vperm.xlu0 %467, %v434
        %v469 = vpop.permute.xlu0 %468
        %472 = vset.pattern.permute.xlu0 0
        %473 = vperm.xlu0 %472, %v435
        %v474 = vpop.permute.xlu0 %473
        %477 = vset.pattern.permute.xlu0 0
        %478 = vperm.xlu0 %477, %v436
        %v479 = vpop.permute.xlu0 %478
        %482 = vset.pattern.permute.xlu0 0
        %483 = vperm.xlu0 %482, %v437
        %v484 = vpop.permute.xlu0 %483
        %487 = vset.pattern.permute.xlu0 0
        %488 = vperm.xlu0 %487, %v438
        %v489 = vpop.permute.xlu0 %488
        %492 = vset.pattern.permute.xlu0 0
        %493 = vperm.xlu0 %492, %v439
        %v494 = vpop.permute.xlu0 %493
        %497 = vset.pattern.permute.xlu0 0
        %498 = vperm.xlu0 %497, %v440
        %v499 = vpop.permute.xlu0 %498
        %502 = vset.pattern.permute.xlu0 0
        %503 = vperm.xlu0 %502, %v441
        %v504 = vpop.permute.xlu0 %503
        %507 = vset.pattern.permute.xlu0 0
        %508 = vperm.xlu0 %507, %v442
        %v509 = vpop.permute.xlu0 %508
        %512 = vset.pattern.permute.xlu0 0
        %513 = vperm.xlu0 %512, %v443
        %v514 = vpop.permute.xlu0 %513
        %517 = vset.pattern.permute.xlu0 0
        %518 = vperm.xlu0 %517, %v444
        %v519 = vpop.permute.xlu0 %518
        %522 = vset.pattern.permute.xlu0 0
        %523 = vperm.xlu0 %522, %v445
        %v524 = vpop.permute.xlu0 %523
        %526 = vmatprep.subr.mxu0 %v399
        %527 = vmatpush1.msra.mxu0 %v398
        %528 = vmatprep.subr.mxu0 %v401
        %529 = vmatpush1.msra.mxu0 %v400
        %530 = vmatprep.subr.mxu0 %v403
        %531 = vmatpush1.msra.mxu0 %v402
        %532 = vmatprep.subr.mxu0 %v405
        %533 = vmatpush1.msra.mxu0 %v404
        %534 = vmatprep.subr.mxu0 %v407
        %535 = vmatpush1.msra.mxu0 %v406
        %536 = vmatprep.subr.mxu0 %v409
        %537 = vmatpush1.msra.mxu0 %v408
        %538 = vmatprep.subr.mxu0 %v411
        %539 = vmatpush1.msra.mxu0 %v410
        %540 = vmatprep.subr.mxu0 %v413
        %541 = vmatpush1.msra.mxu0 %v412
        %542 = vmatprep.subr.mxu0 %v415
        %543 = vmatpush1.msra.mxu0 %v414
        %544 = vmatprep.subr.mxu0 %v417
        %545 = vmatpush1.msra.mxu0 %v416
        %546 = vmatprep.subr.mxu0 %v419
        %547 = vmatpush1.msra.mxu0 %v418
        %548 = vmatprep.subr.mxu0 %v421
        %549 = vmatpush1.msra.mxu0 %v420
        %550 = vmatprep.subr.mxu0 %v423
        %551 = vmatpush1.msra.mxu0 %v422
        %552 = vmatprep.subr.mxu0 %v425
        %553 = vmatpush1.msra.mxu0 %v424
        %554 = vmatprep.subr.mxu0 %v427
        %555 = vmatpush1.msra.mxu0 %v426
        %556 = vmatprep.subr.mxu0 %v429
        %557 = vmatpush1.msra.mxu0 %v428
        %558 = vmatprep.subr.mxu0 0.0
        %559 = vmatpush1.msra.mxu0 0.0
        %560 = vmatprep.subr.mxu0 0.0
        %561 = vmatpush1.msra.mxu0 0.0
        %562 = vmatprep.subr.mxu0 0.0
        %563 = vmatpush1.msra.mxu0 0.0
        %564 = vmatprep.subr.mxu0 0.0
        %565 = vmatpush1.msra.mxu0 0.0
        %566 = vmatprep.subr.mxu0 0.0
        %567 = vmatpush1.msra.mxu0 0.0
        %568 = vmatprep.subr.mxu0 0.0
        %569 = vmatpush1.msra.mxu0 0.0
        %570 = vmatprep.subr.mxu0 0.0
        %571 = vmatpush1.msra.mxu0 0.0
        %572 = vmatprep.subr.mxu0 0.0
        %573 = vmatpush1.msra.mxu0 0.0
        %574 = vmatprep.subr.mxu0 0.0
        %575 = vmatpush1.msra.mxu0 0.0
        %576 = vmatprep.subr.mxu0 0.0
        %577 = vmatpush1.msra.mxu0 0.0
        %578 = vmatprep.subr.mxu0 0.0
        %579 = vmatpush1.msra.mxu0 0.0
        %580 = vmatprep.subr.mxu0 0.0
        %581 = vmatpush1.msra.mxu0 0.0
        %582 = vmatprep.subr.mxu0 0.0
        %583 = vmatpush1.msra.mxu0 0.0
        %584 = vmatprep.subr.mxu0 0.0
        %585 = vmatpush1.msra.mxu0 0.0
        %586 = vmatprep.subr.mxu0 0.0
        %587 = vmatpush1.msra.mxu0 0.0
        %588 = vmatprep.subr.mxu0 0.0
        %589 = vmatpush1.msra.mxu0 0.0
        %590 = vmatprep.mubr.f32.mxu0 0.0
        %591 = vmatmul.mubr.f32.gmra.mrb[0].mxu0 %v382
        %v592 = vpop.f32.mrb[0].mxu0
        %v593 = vadd.f32 %v449, %v592
        %v594 = vpop.f32.mrb[0].mxu0
        %v595 = vadd.f32 %v449, %v594
        %596 = vmatprep.mubr.f32.mxu0 0.0
        %597 = vmatmul.mubr.f32.gmra.mrb[0].mxu0 %v383
        %v598 = vpop.f32.mrb[0].mxu0
        %v599 = vadd.f32 %v454, %v598
        %v600 = vpop.f32.mrb[0].mxu0
        %v601 = vadd.f32 %v454, %v600
        %602 = vmatprep.mubr.f32.mxu0 0.0
        %603 = vmatmul.mubr.f32.gmra.mrb[0].mxu0 %v384
        %v604 = vpop.f32.mrb[0].mxu0
        %v605 = vadd.f32 %v459, %v604
        %v606 = vpop.f32.mrb[0].mxu0
        %v607 = vadd.f32 %v459, %v606
        %608 = vmatprep.mubr.f32.mxu0 0.0
        %609 = vmatmul.mubr.f32.gmra.mrb[0].mxu0 %v385
        %v610 = vpop.f32.mrb[0].mxu0
        %v611 = vadd.f32 %v464, %v610
        %v612 = vpop.f32.mrb[0].mxu0
        %v613 = vadd.f32 %v464, %v612
        %614 = vmatprep.mubr.f32.mxu0 0.0
        %615 = vmatmul.mubr.f32.gmra.mrb[0].mxu0 %v386
        %v616 = vpop.f32.mrb[0].mxu0
        %v617 = vadd.f32 %v469, %v616
        %v618 = vpop.f32.mrb[0].mxu0
        %v619 = vadd.f32 %v469, %v618
        %620 = vmatprep.mubr.f32.mxu0 0.0
        %621 = vmatmul.mubr.f32.gmra.mrb[0].mxu0 %v387
        %v622 = vpop.f32.mrb[0].mxu0
        %v623 = vadd.f32 %v474, %v622
        %v624 = vpop.f32.mrb[0].mxu0
        %v625 = vadd.f32 %v474, %v624
        %626 = vmatprep.mubr.f32.mxu0 0.0
        %627 = vmatmul.mubr.f32.gmra.mrb[0].mxu0 %v388
        %v628 = vpop.f32.mrb[0].mxu0
        %v629 = vadd.f32 %v479, %v628
        %v630 = vpop.f32.mrb[0].mxu0
        %v631 = vadd.f32 %v479, %v630
        %632 = vmatprep.mubr.f32.mxu0 0.0
        %633 = vmatmul.mubr.f32.gmra.mrb[0].mxu0 %v389
        %v634 = vpop.f32.mrb[0].mxu0
        %v635 = vadd.f32 %v484, %v634
        %v636 = vpop.f32.mrb[0].mxu0
        %v637 = vadd.f32 %v484, %v636
        %638 = vmatprep.mubr.f32.mxu0 0.0
        %639 = vmatmul.mubr.f32.gmra.mrb[0].mxu0 %v390
        %v640 = vpop.f32.mrb[0].mxu0
        %v641 = vadd.f32 %v489, %v640
        %v642 = vpop.f32.mrb[0].mxu0
        %v643 = vadd.f32 %v489, %v642
        %644 = vmatprep.mubr.f32.mxu0 0.0
        %645 = vmatmul.mubr.f32.gmra.mrb[0].mxu0 %v391
        %v646 = vpop.f32.mrb[0].mxu0
        %v647 = vadd.f32 %v494, %v646
        %v648 = vpop.f32.mrb[0].mxu0
        %v649 = vadd.f32 %v494, %v648
        %650 = vmatprep.mubr.f32.mxu0 0.0
        %651 = vmatmul.mubr.f32.gmra.mrb[0].mxu0 %v392
        %v652 = vpop.f32.mrb[0].mxu0
        %v653 = vadd.f32 %v499, %v652
        %v654 = vpop.f32.mrb[0].mxu0
        %v655 = vadd.f32 %v499, %v654
        %656 = vmatprep.mubr.f32.mxu0 0.0
        %657 = vmatmul.mubr.f32.gmra.mrb[0].mxu0 %v393
        %v658 = vpop.f32.mrb[0].mxu0
        %v659 = vadd.f32 %v504, %v658
        %v660 = vpop.f32.mrb[0].mxu0
        %v661 = vadd.f32 %v504, %v660
        %662 = vmatprep.mubr.f32.mxu0 0.0
        %663 = vmatmul.mubr.f32.gmra.mrb[0].mxu0 %v394
        %v664 = vpop.f32.mrb[0].mxu0
        %v665 = vadd.f32 %v509, %v664
        %v666 = vpop.f32.mrb[0].mxu0
        %v667 = vadd.f32 %v509, %v666
        %668 = vmatprep.mubr.f32.mxu0 0.0
        %669 = vmatmul.mubr.f32.gmra.mrb[0].mxu0 %v395
        %v670 = vpop.f32.mrb[0].mxu0
        %v671 = vadd.f32 %v514, %v670
        %v672 = vpop.f32.mrb[0].mxu0
        %v673 = vadd.f32 %v514, %v672
        %674 = vmatprep.mubr.f32.mxu0 0.0
        %675 = vmatmul.mubr.f32.gmra.mrb[0].mxu0 %v396
        %v676 = vpop.f32.mrb[0].mxu0
        %v677 = vadd.f32 %v519, %v676
        %v678 = vpop.f32.mrb[0].mxu0
        %v679 = vadd.f32 %v519, %v678
        %680 = vmatprep.mubr.f32.mxu0 0.0
        %681 = vmatmul.mubr.f32.gmra.mrb[0].mxu0 %v397
        %v682 = vpop.f32.mrb[0].mxu0
        %v683 = vadd.f32 %v524, %v682
        %v684 = vpop.f32.mrb[0].mxu0
        %v685 = vadd.f32 %v524, %v684
        %686 = vdwg.mxu0
        %v687 = vmax.f32 %v593, 0.0
        %v688 = vmax.f32 %v595, 0.0
        %v689 = vmax.f32 %v599, 0.0
        %v690 = vmax.f32 %v601, 0.0
        %v691 = vmax.f32 %v605, 0.0
        %v692 = vmax.f32 %v607, 0.0
        %v693 = vmax.f32 %v611, 0.0
        %v694 = vmax.f32 %v613, 0.0
        %v695 = vmax.f32 %v617, 0.0
        %v696 = vmax.f32 %v619, 0.0
        %v697 = vmax.f32 %v623, 0.0
        %v698 = vmax.f32 %v625, 0.0
        %v699 = vmax.f32 %v629, 0.0
        %v700 = vmax.f32 %v631, 0.0
        %v701 = vmax.f32 %v635, 0.0
        %v702 = vmax.f32 %v637, 0.0
        %v703 = vmax.f32 %v641, 0.0
        %v704 = vmax.f32 %v643, 0.0
        %v705 = vmax.f32 %v647, 0.0
        %v706 = vmax.f32 %v649, 0.0
        %v707 = vmax.f32 %v653, 0.0
        %v708 = vmax.f32 %v655, 0.0
        %v709 = vmax.f32 %v659, 0.0
        %v710 = vmax.f32 %v661, 0.0
        %v711 = vmax.f32 %v665, 0.0
        %v712 = vmax.f32 %v667, 0.0
        %v713 = vmax.f32 %v671, 0.0
        %v714 = vmax.f32 %v673, 0.0
        %v715 = vmax.f32 %v677, 0.0
        %v716 = vmax.f32 %v679, 0.0
        %v717 = vmax.f32 %v683, 0.0
        %v718 = vmax.f32 %v685, 0.0
        %719 = vrot.lane.b32.xlu0 %v687, 1
        %v720 = vpop.permute.xlu0 %719
        %721 = vrot.lane.b32.xlu0 %v689, 1
        %v722 = vpop.permute.xlu0 %721
        %723 = vrot.lane.b32.xlu0 %v691, 1
        %v724 = vpop.permute.xlu0 %723
        %725 = vrot.lane.b32.xlu0 %v693, 1
        %v726 = vpop.permute.xlu0 %725
        %727 = vrot.lane.b32.xlu0 %v695, 1
        %v728 = vpop.permute.xlu0 %727
        %729 = vrot.lane.b32.xlu0 %v697, 1
        %v730 = vpop.permute.xlu0 %729
        %731 = vrot.lane.b32.xlu0 %v699, 1
        %v732 = vpop.permute.xlu0 %731
        %733 = vrot.lane.b32.xlu0 %v701, 1
        %v734 = vpop.permute.xlu0 %733
        %735 = vrot.lane.b32.xlu0 %v703, 1
        %v736 = vpop.permute.xlu0 %735
        %737 = vrot.lane.b32.xlu0 %v705, 1
        %v738 = vpop.permute.xlu0 %737
        %739 = vrot.lane.b32.xlu0 %v707, 1
        %v740 = vpop.permute.xlu0 %739
        %741 = vrot.lane.b32.xlu0 %v709, 1
        %v742 = vpop.permute.xlu0 %741
        %743 = vrot.lane.b32.xlu0 %v711, 1
        %v744 = vpop.permute.xlu0 %743
        %745 = vrot.lane.b32.xlu0 %v713, 1
        %v746 = vpop.permute.xlu0 %745
        %747 = vrot.lane.b32.xlu0 %v715, 1
        %v748 = vpop.permute.xlu0 %747
        %749 = vrot.lane.b32.xlu0 %v717, 1
        %v750 = vpop.permute.xlu0 %749
        %751 = vrot.lane.b32.xlu0 %v688, 1
        %v752 = vpop.permute.xlu0 %751
        %753 = vrot.lane.b32.xlu0 %v690, 1
        %v754 = vpop.permute.xlu0 %753
        %755 = vrot.lane.b32.xlu0 %v692, 1
        %v756 = vpop.permute.xlu0 %755
        %757 = vrot.lane.b32.xlu0 %v694, 1
        %v758 = vpop.permute.xlu0 %757
        %759 = vrot.lane.b32.xlu0 %v696, 1
        %v760 = vpop.permute.xlu0 %759
        %761 = vrot.lane.b32.xlu0 %v698, 1
        %v762 = vpop.permute.xlu0 %761
        %763 = vrot.lane.b32.xlu0 %v700, 1
        %v764 = vpop.permute.xlu0 %763
        %765 = vrot.lane.b32.xlu0 %v702, 1
        %v766 = vpop.permute.xlu0 %765
        %767 = vrot.lane.b32.xlu0 %v704, 1
        %v768 = vpop.permute.xlu0 %767
        %769 = vrot.lane.b32.xlu0 %v706, 1
        %v770 = vpop.permute.xlu0 %769
        %771 = vrot.lane.b32.xlu0 %v708, 1
        %v772 = vpop.permute.xlu0 %771
        %773 = vrot.lane.b32.xlu0 %v710, 1
        %v774 = vpop.permute.xlu0 %773
        %775 = vrot.lane.b32.xlu0 %v712, 1
        %v776 = vpop.permute.xlu0 %775
        %777 = vrot.lane.b32.xlu0 %v714, 1
        %v778 = vpop.permute.xlu0 %777
        %779 = vrot.lane.b32.xlu0 %v716, 1
        %v780 = vpop.permute.xlu0 %779
        %781 = vrot.lane.b32.xlu0 %v718, 1
        %v782 = vpop.permute.xlu0 %781
        %v783 = vlaneseq
        %v784 = vand.u32 %v783, 127
        %vm785 = vcmp.lt.s32.totalorder %v784, 1
        %v786 = vsel %vm785, %v720, %v752
        %v787 = vsel %vm785, %v722, %v754
        %v788 = vsel %vm785, %v724, %v756
        %v789 = vsel %vm785, %v726, %v758
        %v790 = vsel %vm785, %v728, %v760
        %v791 = vsel %vm785, %v730, %v762
        %v792 = vsel %vm785, %v732, %v764
        %v793 = vsel %vm785, %v734, %v766
        %v794 = vsel %vm785, %v736, %v768
        %v795 = vsel %vm785, %v738, %v770
        %v796 = vsel %vm785, %v740, %v772
        %v797 = vsel %vm785, %v742, %v774
        %v798 = vsel %vm785, %v744, %v776
        %v799 = vsel %vm785, %v746, %v778
        %v800 = vsel %vm785, %v748, %v780
        %v801 = vsel %vm785, %v750, %v782
        %v802 = vsel %vm785, %v752, %v720
        %v803 = vsel %vm785, %v754, %v722
        %v804 = vsel %vm785, %v756, %v724
        %v805 = vsel %vm785, %v758, %v726
        %v806 = vsel %vm785, %v760, %v728
        %v807 = vsel %vm785, %v762, %v730
        %v808 = vsel %vm785, %v764, %v732
        %v809 = vsel %vm785, %v766, %v734
        %v810 = vsel %vm785, %v768, %v736
        %v811 = vsel %vm785, %v770, %v738
        %v812 = vsel %vm785, %v772, %v740
        %v813 = vsel %vm785, %v774, %v742
        %v814 = vsel %vm785, %v776, %v744
        %v815 = vsel %vm785, %v778, %v746
        %v816 = vsel %vm785, %v780, %v748
        %v817 = vsel %vm785, %v782, %v750
        %vm818 = vcmp.ge.s32.totalorder %v381, 1
        %v819 = vsel %vm818, 1, 0
        %v820 = vcvt.s32.f32 %v819
        %v822 = vlaneseq
        %v823 = vshrl.u32 %v822, 7
        %v824 = vsub.s32 0, %v823
        %v825 = vrot.slane %v820, %v824
        %v826 = vlaneseq
        %v827 = vshrl.u32 %v826, 7
        %v828 = vsub.s32 1, %v827
        %v829 = vrot.slane %v820, %v828
        %v832 = vmul.f32 %v802, %v825
        %v833 = vmul.f32 %v786, %v829
        %v834 = vmul.f32 %v803, %v825
        %v835 = vmul.f32 %v787, %v829
        %v836 = vmul.f32 %v804, %v825
        %v837 = vmul.f32 %v788, %v829
        %v838 = vmul.f32 %v805, %v825
        %v839 = vmul.f32 %v789, %v829
        %v840 = vmul.f32 %v806, %v825
        %v841 = vmul.f32 %v790, %v829
        %v842 = vmul.f32 %v807, %v825
        %v843 = vmul.f32 %v791, %v829
        %v844 = vmul.f32 %v808, %v825
        %v845 = vmul.f32 %v792, %v829
        %v846 = vmul.f32 %v809, %v825
        %v847 = vmul.f32 %v793, %v829
        %v848 = vmul.f32 %v810, %v825
        %v849 = vmul.f32 %v794, %v829
        %v850 = vmul.f32 %v811, %v825
        %v851 = vmul.f32 %v795, %v829
        %v852 = vmul.f32 %v812, %v825
        %v853 = vmul.f32 %v796, %v829
        %v854 = vmul.f32 %v813, %v825
        %v855 = vmul.f32 %v797, %v829
        %v856 = vmul.f32 %v814, %v825
        %v857 = vmul.f32 %v798, %v829
        %v858 = vmul.f32 %v815, %v825
        %v859 = vmul.f32 %v799, %v829
        %v860 = vmul.f32 %v816, %v825
        %v861 = vmul.f32 %v800, %v829
        %v862 = vmul.f32 %v817, %v825
        %v863 = vmul.f32 %v801, %v829
        %864 = vrot.lane.b32.xlu0 %v687, 127
        %v865 = vpop.permute.xlu0 %864
        %866 = vrot.lane.b32.xlu0 %v689, 127
        %v867 = vpop.permute.xlu0 %866
        %868 = vrot.lane.b32.xlu0 %v691, 127
        %v869 = vpop.permute.xlu0 %868
        %870 = vrot.lane.b32.xlu0 %v693, 127
        %v871 = vpop.permute.xlu0 %870
        %872 = vrot.lane.b32.xlu0 %v695, 127
        %v873 = vpop.permute.xlu0 %872
        %874 = vrot.lane.b32.xlu0 %v697, 127
        %v875 = vpop.permute.xlu0 %874
        %876 = vrot.lane.b32.xlu0 %v699, 127
        %v877 = vpop.permute.xlu0 %876
        %878 = vrot.lane.b32.xlu0 %v701, 127
        %v879 = vpop.permute.xlu0 %878
        %880 = vrot.lane.b32.xlu0 %v703, 127
        %v881 = vpop.permute.xlu0 %880
        %882 = vrot.lane.b32.xlu0 %v705, 127
        %v883 = vpop.permute.xlu0 %882
        %884 = vrot.lane.b32.xlu0 %v707, 127
        %v885 = vpop.permute.xlu0 %884
        %886 = vrot.lane.b32.xlu0 %v709, 127
        %v887 = vpop.permute.xlu0 %886
        %888 = vrot.lane.b32.xlu0 %v711, 127
        %v889 = vpop.permute.xlu0 %888
        %890 = vrot.lane.b32.xlu0 %v713, 127
        %v891 = vpop.permute.xlu0 %890
        %892 = vrot.lane.b32.xlu0 %v715, 127
        %v893 = vpop.permute.xlu0 %892
        %894 = vrot.lane.b32.xlu0 %v717, 127
        %v895 = vpop.permute.xlu0 %894
        %896 = vrot.lane.b32.xlu0 %v688, 127
        %v897 = vpop.permute.xlu0 %896
        %898 = vrot.lane.b32.xlu0 %v690, 127
        %v899 = vpop.permute.xlu0 %898
        %900 = vrot.lane.b32.xlu0 %v692, 127
        %v901 = vpop.permute.xlu0 %900
        %902 = vrot.lane.b32.xlu0 %v694, 127
        %v903 = vpop.permute.xlu0 %902
        %904 = vrot.lane.b32.xlu0 %v696, 127
        %v905 = vpop.permute.xlu0 %904
        %906 = vrot.lane.b32.xlu0 %v698, 127
        %v907 = vpop.permute.xlu0 %906
        %908 = vrot.lane.b32.xlu0 %v700, 127
        %v909 = vpop.permute.xlu0 %908
        %910 = vrot.lane.b32.xlu0 %v702, 127
        %v911 = vpop.permute.xlu0 %910
        %912 = vrot.lane.b32.xlu0 %v704, 127
        %v913 = vpop.permute.xlu0 %912
        %914 = vrot.lane.b32.xlu0 %v706, 127
        %v915 = vpop.permute.xlu0 %914
        %916 = vrot.lane.b32.xlu0 %v708, 127
        %v917 = vpop.permute.xlu0 %916
        %918 = vrot.lane.b32.xlu0 %v710, 127
        %v919 = vpop.permute.xlu0 %918
        %920 = vrot.lane.b32.xlu0 %v712, 127
        %v921 = vpop.permute.xlu0 %920
        %922 = vrot.lane.b32.xlu0 %v714, 127
        %v923 = vpop.permute.xlu0 %922
        %924 = vrot.lane.b32.xlu0 %v716, 127
        %v925 = vpop.permute.xlu0 %924
        %926 = vrot.lane.b32.xlu0 %v718, 127
        %v927 = vpop.permute.xlu0 %926
        %vm928 = vcmp.lt.s32.totalorder %v784, 127
        %v929 = vsel %vm928, %v865, %v897
        %v930 = vsel %vm928, %v867, %v899
        %v931 = vsel %vm928, %v869, %v901
        %v932 = vsel %vm928, %v871, %v903
        %v933 = vsel %vm928, %v873, %v905
        %v934 = vsel %vm928, %v875, %v907
        %v935 = vsel %vm928, %v877, %v909
        %v936 = vsel %vm928, %v879, %v911
        %v937 = vsel %vm928, %v881, %v913
        %v938 = vsel %vm928, %v883, %v915
        %v939 = vsel %vm928, %v885, %v917
        %v940 = vsel %vm928, %v887, %v919
        %v941 = vsel %vm928, %v889, %v921
        %v942 = vsel %vm928, %v891, %v923
        %v943 = vsel %vm928, %v893, %v925
        %v944 = vsel %vm928, %v895, %v927
        %v945 = vsel %vm928, %v897, %v865
        %v946 = vsel %vm928, %v899, %v867
        %v947 = vsel %vm928, %v901, %v869
        %v948 = vsel %vm928, %v903, %v871
        %v949 = vsel %vm928, %v905, %v873
        %v950 = vsel %vm928, %v907, %v875
        %v951 = vsel %vm928, %v909, %v877
        %v952 = vsel %vm928, %v911, %v879
        %v953 = vsel %vm928, %v913, %v881
        %v954 = vsel %vm928, %v915, %v883
        %v955 = vsel %vm928, %v917, %v885
        %v956 = vsel %vm928, %v919, %v887
        %v957 = vsel %vm928, %v921, %v889
        %v958 = vsel %vm928, %v923, %v891
        %v959 = vsel %vm928, %v925, %v893
        %v960 = vsel %vm928, %v927, %v895
        %vm961 = vcmp.lt.s32.totalorder %v381, 15
        %v962 = vsel %vm961, 1, 0
        %v963 = vcvt.s32.f32 %v962
        %v965 = vlaneseq
        %v966 = vshrl.u32 %v965, 7
        %v967 = vsub.s32 0, %v966
        %v968 = vrot.slane %v963, %v967
        %v969 = vlaneseq
        %v970 = vshrl.u32 %v969, 7
        %v971 = vsub.s32 1, %v970
        %v972 = vrot.slane %v963, %v971
        %v975 = vmul.f32 %v929, %v968
        %v976 = vmul.f32 %v945, %v972
        %v977 = vmul.f32 %v930, %v968
        %v978 = vmul.f32 %v946, %v972
        %v979 = vmul.f32 %v931, %v968
        %v980 = vmul.f32 %v947, %v972
        %v981 = vmul.f32 %v932, %v968
        %v982 = vmul.f32 %v948, %v972
        %v983 = vmul.f32 %v933, %v968
        %v984 = vmul.f32 %v949, %v972
        %v985 = vmul.f32 %v934, %v968
        %v986 = vmul.f32 %v950, %v972
        %v987 = vmul.f32 %v935, %v968
        %v988 = vmul.f32 %v951, %v972
        %v989 = vmul.f32 %v936, %v968
        %v990 = vmul.f32 %v952, %v972
        %v991 = vmul.f32 %v937, %v968
        %v992 = vmul.f32 %v953, %v972
        %v993 = vmul.f32 %v938, %v968
        %v994 = vmul.f32 %v954, %v972
        %v995 = vmul.f32 %v939, %v968
        %v996 = vmul.f32 %v955, %v972
        %v997 = vmul.f32 %v940, %v968
        %v998 = vmul.f32 %v956, %v972
        %v999 = vmul.f32 %v941, %v968
        %v1000 = vmul.f32 %v957, %v972
        %v1001 = vmul.f32 %v942, %v968
        %v1002 = vmul.f32 %v958, %v972
        %v1003 = vmul.f32 %v943, %v968
        %v1004 = vmul.f32 %v959, %v972
        %v1005 = vmul.f32 %v944, %v968
        %v1006 = vmul.f32 %v960, %v972
        %v1007 = vld [vmem:[#allocation5] sm:$0xff]
        %v1008 = vld [vmem:[#allocation5 + $0x8] sm:$0xff]
        %v1009 = vld [vmem:[#allocation5 + $0x10] sm:$0xff]
        %v1010 = vld [vmem:[#allocation5 + $0x18] sm:$0xff]
        %v1011 = vld [vmem:[#allocation5 + $0x20] sm:$0xff]
        %v1012 = vld [vmem:[#allocation5 + $0x28] sm:$0xff]
        %v1013 = vld [vmem:[#allocation5 + $0x30] sm:$0xff]
        %v1014 = vld [vmem:[#allocation5 + $0x38] sm:$0xff]
        %v1015 = vld [vmem:[#allocation5 + $0x40] sm:$0xff]
        %v1016 = vld [vmem:[#allocation5 + $0x48] sm:$0xff]
        %v1017 = vld [vmem:[#allocation5 + $0x50] sm:$0xff]
        %v1018 = vld [vmem:[#allocation5 + $0x58] sm:$0xff]
        %v1019 = vld [vmem:[#allocation5 + $0x60] sm:$0xff]
        %v1020 = vld [vmem:[#allocation5 + $0x68] sm:$0xff]
        %v1021 = vld [vmem:[#allocation5 + $0x70] sm:$0xff]
        %v1022 = vld [vmem:[#allocation5 + $0x78] sm:$0xff]
        %s1023 = scalar_lea.vmem [#allocation5], 128
        %v1024 = vld [vmem:[%s1023] sm:$0xff]
        %v1025 = vld [vmem:[%s1023 + $0x8] sm:$0xff]
        %v1026 = vld [vmem:[%s1023 + $0x10] sm:$0xff]
        %v1027 = vld [vmem:[%s1023 + $0x18] sm:$0xff]
        %v1028 = vld [vmem:[%s1023 + $0x20] sm:$0xff]
        %v1029 = vld [vmem:[%s1023 + $0x28] sm:$0xff]
        %v1030 = vld [vmem:[%s1023 + $0x30] sm:$0xff]
        %v1031 = vld [vmem:[%s1023 + $0x38] sm:$0xff]
        %v1032 = vld [vmem:[%s1023 + $0x40] sm:$0xff]
        %v1033 = vld [vmem:[%s1023 + $0x48] sm:$0xff]
        %v1034 = vld [vmem:[%s1023 + $0x50] sm:$0xff]
        %v1035 = vld [vmem:[%s1023 + $0x58] sm:$0xff]
        %v1036 = vld [vmem:[%s1023 + $0x60] sm:$0xff]
        %v1037 = vld [vmem:[%s1023 + $0x68] sm:$0xff]
        %v1038 = vld [vmem:[%s1023 + $0x70] sm:$0xff]
        %v1039 = vld [vmem:[%s1023 + $0x78] sm:$0xff]
        %1040 = vmatprep.subr.mxu0 %v688
        %1041 = vmatpush1.msra.mxu0 %v687
        %1042 = vmatprep.subr.mxu0 %v690
        %1043 = vmatpush1.msra.mxu0 %v689
        %1044 = vmatprep.subr.mxu0 %v692
        %1045 = vmatpush1.msra.mxu0 %v691
        %1046 = vmatprep.subr.mxu0 %v694
        %1047 = vmatpush1.msra.mxu0 %v693
        %1048 = vmatprep.subr.mxu0 %v696
        %1049 = vmatpush1.msra.mxu0 %v695
        %1050 = vmatprep.subr.mxu0 %v698
        %1051 = vmatpush1.msra.mxu0 %v697
        %1052 = vmatprep.subr.mxu0 %v700
        %1053 = vmatpush1.msra.mxu0 %v699
        %1054 = vmatprep.subr.mxu0 %v702
        %1055 = vmatpush1.msra.mxu0 %v701
        %1056 = vmatprep.subr.mxu0 %v704
        %1057 = vmatpush1.msra.mxu0 %v703
        %1058 = vmatprep.subr.mxu0 %v706
        %1059 = vmatpush1.msra.mxu0 %v705
        %1060 = vmatprep.subr.mxu0 %v708
        %1061 = vmatpush1.msra.mxu0 %v707
        %1062 = vmatprep.subr.mxu0 %v710
        %1063 = vmatpush1.msra.mxu0 %v709
        %1064 = vmatprep.subr.mxu0 %v712
        %1065 = vmatpush1.msra.mxu0 %v711
        %1066 = vmatprep.subr.mxu0 %v714
        %1067 = vmatpush1.msra.mxu0 %v713
        %1068 = vmatprep.subr.mxu0 %v716
        %1069 = vmatpush1.msra.mxu0 %v715
        %1070 = vmatprep.subr.mxu0 %v718
        %1071 = vmatpush1.msra.mxu0 %v717
        %1072 = vmatprep.subr.mxu0 0.0
        %1073 = vmatpush1.msra.mxu0 0.0
        %1074 = vmatprep.subr.mxu0 0.0
        %1075 = vmatpush1.msra.mxu0 0.0
        %1076 = vmatprep.subr.mxu0 0.0
        %1077 = vmatpush1.msra.mxu0 0.0
        %1078 = vmatprep.subr.mxu0 0.0
        %1079 = vmatpush1.msra.mxu0 0.0
        %1080 = vmatprep.subr.mxu0 0.0
        %1081 = vmatpush1.msra.mxu0 0.0
        %1082 = vmatprep.subr.mxu0 0.0
        %1083 = vmatpush1.msra.mxu0 0.0
        %1084 = vmatprep.subr.mxu0 0.0
        %1085 = vmatpush1.msra.mxu0 0.0
        %1086 = vmatprep.subr.mxu0 0.0
        %1087 = vmatpush1.msra.mxu0 0.0
        %1088 = vmatprep.subr.mxu0 0.0
        %1089 = vmatpush1.msra.mxu0 0.0
        %1090 = vmatprep.subr.mxu0 0.0
        %1091 = vmatpush1.msra.mxu0 0.0
        %1092 = vmatprep.subr.mxu0 0.0
        %1093 = vmatpush1.msra.mxu0 0.0
        %1094 = vmatprep.subr.mxu0 0.0
        %1095 = vmatpush1.msra.mxu0 0.0
        %1096 = vmatprep.subr.mxu0 0.0
        %1097 = vmatpush1.msra.mxu0 0.0
        %1098 = vmatprep.subr.mxu0 0.0
        %1099 = vmatpush1.msra.mxu0 0.0
        %1100 = vmatprep.subr.mxu0 0.0
        %1101 = vmatpush1.msra.mxu0 0.0
        %1102 = vmatprep.subr.mxu0 0.0
        %1103 = vmatpush1.msra.mxu0 0.0
        %1104 = vmatprep.mubr.f32.mxu0 0.0
        %1105 = vmatmul.mubr.f32.gmra.mrb[0].mxu0 %v1024
        %v1106 = vpop.f32.mrb[0].mxu0
        %v1107 = vadd.f32 0.0, %v1106
        %v1108 = vpop.f32.mrb[0].mxu0
        %v1109 = vadd.f32 0.0, %v1108
        %1110 = vmatprep.mubr.f32.mxu0 0.0
        %1111 = vmatmul.mubr.f32.gmra.mrb[0].mxu0 %v1025
        %v1112 = vpop.f32.mrb[0].mxu0
        %v1113 = vadd.f32 0.0, %v1112
        %v1114 = vpop.f32.mrb[0].mxu0
        %v1115 = vadd.f32 0.0, %v1114
        %1116 = vmatprep.mubr.f32.mxu0 0.0
        %1117 = vmatmul.mubr.f32.gmra.mrb[0].mxu0 %v1026
        %v1118 = vpop.f32.mrb[0].mxu0
        %v1119 = vadd.f32 0.0, %v1118
        %v1120 = vpop.f32.mrb[0].mxu0
        %v1121 = vadd.f32 0.0, %v1120
        %1122 = vmatprep.mubr.f32.mxu0 0.0
        %1123 = vmatmul.mubr.f32.gmra.mrb[0].mxu0 %v1027
        %v1124 = vpop.f32.mrb[0].mxu0
        %v1125 = vadd.f32 0.0, %v1124
        %v1126 = vpop.f32.mrb[0].mxu0
        %v1127 = vadd.f32 0.0, %v1126
        %1128 = vmatprep.mubr.f32.mxu0 0.0
        %1129 = vmatmul.mubr.f32.gmra.mrb[0].mxu0 %v1028
        %v1130 = vpop.f32.mrb[0].mxu0
        %v1131 = vadd.f32 0.0, %v1130
        %v1132 = vpop.f32.mrb[0].mxu0
        %v1133 = vadd.f32 0.0, %v1132
        %1134 = vmatprep.mubr.f32.mxu0 0.0
        %1135 = vmatmul.mubr.f32.gmra.mrb[0].mxu0 %v1029
        %v1136 = vpop.f32.mrb[0].mxu0
        %v1137 = vadd.f32 0.0, %v1136
        %v1138 = vpop.f32.mrb[0].mxu0
        %v1139 = vadd.f32 0.0, %v1138
        %1140 = vmatprep.mubr.f32.mxu0 0.0
        %1141 = vmatmul.mubr.f32.gmra.mrb[0].mxu0 %v1030
        %v1142 = vpop.f32.mrb[0].mxu0
        %v1143 = vadd.f32 0.0, %v1142
        %v1144 = vpop.f32.mrb[0].mxu0
        %v1145 = vadd.f32 0.0, %v1144
        %1146 = vmatprep.mubr.f32.mxu0 0.0
        %1147 = vmatmul.mubr.f32.gmra.mrb[0].mxu0 %v1031
        %v1148 = vpop.f32.mrb[0].mxu0
        %v1149 = vadd.f32 0.0, %v1148
        %v1150 = vpop.f32.mrb[0].mxu0
        %v1151 = vadd.f32 0.0, %v1150
        %1152 = vmatprep.mubr.f32.mxu0 0.0
        %1153 = vmatmul.mubr.f32.gmra.mrb[0].mxu0 %v1032
        %v1154 = vpop.f32.mrb[0].mxu0
        %v1155 = vadd.f32 0.0, %v1154
        %v1156 = vpop.f32.mrb[0].mxu0
        %v1157 = vadd.f32 0.0, %v1156
        %1158 = vmatprep.mubr.f32.mxu0 0.0
        %1159 = vmatmul.mubr.f32.gmra.mrb[0].mxu0 %v1033
        %v1160 = vpop.f32.mrb[0].mxu0
        %v1161 = vadd.f32 0.0, %v1160
        %v1162 = vpop.f32.mrb[0].mxu0
        %v1163 = vadd.f32 0.0, %v1162
        %1164 = vmatprep.mubr.f32.mxu0 0.0
        %1165 = vmatmul.mubr.f32.gmra.mrb[0].mxu0 %v1034
        %v1166 = vpop.f32.mrb[0].mxu0
        %v1167 = vadd.f32 0.0, %v1166
        %v1168 = vpop.f32.mrb[0].mxu0
        %v1169 = vadd.f32 0.0, %v1168
        %1170 = vmatprep.mubr.f32.mxu0 0.0
        %1171 = vmatmul.mubr.f32.gmra.mrb[0].mxu0 %v1035
        %v1172 = vpop.f32.mrb[0].mxu0
        %v1173 = vadd.f32 0.0, %v1172
        %v1174 = vpop.f32.mrb[0].mxu0
        %v1175 = vadd.f32 0.0, %v1174
        %1176 = vmatprep.mubr.f32.mxu0 0.0
        %1177 = vmatmul.mubr.f32.gmra.mrb[0].mxu0 %v1036
        %v1178 = vpop.f32.mrb[0].mxu0
        %v1179 = vadd.f32 0.0, %v1178
        %v1180 = vpop.f32.mrb[0].mxu0
        %v1181 = vadd.f32 0.0, %v1180
        %1182 = vmatprep.mubr.f32.mxu0 0.0
        %1183 = vmatmul.mubr.f32.gmra.mrb[0].mxu0 %v1037
        %v1184 = vpop.f32.mrb[0].mxu0
        %v1185 = vadd.f32 0.0, %v1184
        %v1186 = vpop.f32.mrb[0].mxu0
        %v1187 = vadd.f32 0.0, %v1186
        %1188 = vmatprep.mubr.f32.mxu0 0.0
        %1189 = vmatmul.mubr.f32.gmra.mrb[0].mxu0 %v1038
        %v1190 = vpop.f32.mrb[0].mxu0
        %v1191 = vadd.f32 0.0, %v1190
        %v1192 = vpop.f32.mrb[0].mxu0
        %v1193 = vadd.f32 0.0, %v1192
        %1194 = vmatprep.mubr.f32.mxu0 0.0
        %1195 = vmatmul.mubr.f32.gmra.mrb[0].mxu0 %v1039
        %v1196 = vpop.f32.mrb[0].mxu0
        %v1197 = vadd.f32 0.0, %v1196
        %v1198 = vpop.f32.mrb[0].mxu0
        %v1199 = vadd.f32 0.0, %v1198
        %1200 = vdwg.mxu0
        %1201 = vmatprep.subr.mxu0 %v833
        %1202 = vmatpush1.msra.mxu0 %v832
        %1203 = vmatprep.subr.mxu0 %v835
        %1204 = vmatpush1.msra.mxu0 %v834
        %1205 = vmatprep.subr.mxu0 %v837
        %1206 = vmatpush1.msra.mxu0 %v836
        %1207 = vmatprep.subr.mxu0 %v839
        %1208 = vmatpush1.msra.mxu0 %v838
        %1209 = vmatprep.subr.mxu0 %v841
        %1210 = vmatpush1.msra.mxu0 %v840
        %1211 = vmatprep.subr.mxu0 %v843
        %1212 = vmatpush1.msra.mxu0 %v842
        %1213 = vmatprep.subr.mxu0 %v845
        %1214 = vmatpush1.msra.mxu0 %v844
        %1215 = vmatprep.subr.mxu0 %v847
        %1216 = vmatpush1.msra.mxu0 %v846
        %1217 = vmatprep.subr.mxu0 %v849
        %1218 = vmatpush1.msra.mxu0 %v848
        %1219 = vmatprep.subr.mxu0 %v851
        %1220 = vmatpush1.msra.mxu0 %v850
        %1221 = vmatprep.subr.mxu0 %v853
        %1222 = vmatpush1.msra.mxu0 %v852
        %1223 = vmatprep.subr.mxu0 %v855
        %1224 = vmatpush1.msra.mxu0 %v854
        %1225 = vmatprep.subr.mxu0 %v857
        %1226 = vmatpush1.msra.mxu0 %v856
        %1227 = vmatprep.subr.mxu0 %v859
        %1228 = vmatpush1.msra.mxu0 %v858
        %1229 = vmatprep.subr.mxu0 %v861
        %1230 = vmatpush1.msra.mxu0 %v860
        %1231 = vmatprep.subr.mxu0 %v863
        %1232 = vmatpush1.msra.mxu0 %v862
        %1233 = vmatprep.subr.mxu0 0.0
        %1234 = vmatpush1.msra.mxu0 0.0
        %1235 = vmatprep.subr.mxu0 0.0
        %1236 = vmatpush1.msra.mxu0 0.0
        %1237 = vmatprep.subr.mxu0 0.0
        %1238 = vmatpush1.msra.mxu0 0.0
        %1239 = vmatprep.subr.mxu0 0.0
        %1240 = vmatpush1.msra.mxu0 0.0
        %1241 = vmatprep.subr.mxu0 0.0
        %1242 = vmatpush1.msra.mxu0 0.0
        %1243 = vmatprep.subr.mxu0 0.0
        %1244 = vmatpush1.msra.mxu0 0.0
        %1245 = vmatprep.subr.mxu0 0.0
        %1246 = vmatpush1.msra.mxu0 0.0
        %1247 = vmatprep.subr.mxu0 0.0
        %1248 = vmatpush1.msra.mxu0 0.0
        %1249 = vmatprep.subr.mxu0 0.0
        %1250 = vmatpush1.msra.mxu0 0.0
        %1251 = vmatprep.subr.mxu0 0.0
        %1252 = vmatpush1.msra.mxu0 0.0
        %1253 = vmatprep.subr.mxu0 0.0
        %1254 = vmatpush1.msra.mxu0 0.0
        %1255 = vmatprep.subr.mxu0 0.0
        %1256 = vmatpush1.msra.mxu0 0.0
        %1257 = vmatprep.subr.mxu0 0.0
        %1258 = vmatpush1.msra.mxu0 0.0
        %1259 = vmatprep.subr.mxu0 0.0
        %1260 = vmatpush1.msra.mxu0 0.0
        %1261 = vmatprep.subr.mxu0 0.0
        %1262 = vmatpush1.msra.mxu0 0.0
        %1263 = vmatprep.subr.mxu0 0.0
        %1264 = vmatpush1.msra.mxu0 0.0
        %1265 = vmatprep.mubr.f32.mxu0 0.0
        %1266 = vmatmul.mubr.f32.gmra.mrb[0].mxu0 %v1007
        %v1267 = vpop.f32.mrb[0].mxu0
        %v1268 = vadd.f32 %v1107, %v1267
        %v1269 = vpop.f32.mrb[0].mxu0
        %v1270 = vadd.f32 %v1109, %v1269
        %1271 = vmatprep.mubr.f32.mxu0 0.0
        %1272 = vmatmul.mubr.f32.gmra.mrb[0].mxu0 %v1008
        %v1273 = vpop.f32.mrb[0].mxu0
        %v1274 = vadd.f32 %v1113, %v1273
        %v1275 = vpop.f32.mrb[0].mxu0
        %v1276 = vadd.f32 %v1115, %v1275
        %1277 = vmatprep.mubr.f32.mxu0 0.0
        %1278 = vmatmul.mubr.f32.gmra.mrb[0].mxu0 %v1009
        %v1279 = vpop.f32.mrb[0].mxu0
        %v1280 = vadd.f32 %v1119, %v1279
        %v1281 = vpop.f32.mrb[0].mxu0
        %v1282 = vadd.f32 %v1121, %v1281
        %1283 = vmatprep.mubr.f32.mxu0 0.0
        %1284 = vmatmul.mubr.f32.gmra.mrb[0].mxu0 %v1010
        %v1285 = vpop.f32.mrb[0].mxu0
        %v1286 = vadd.f32 %v1125, %v1285
        %v1287 = vpop.f32.mrb[0].mxu0
        %v1288 = vadd.f32 %v1127, %v1287
        %1289 = vmatprep.mubr.f32.mxu0 0.0
        %1290 = vmatmul.mubr.f32.gmra.mrb[0].mxu0 %v1011
        %v1291 = vpop.f32.mrb[0].mxu0
        %v1292 = vadd.f32 %v1131, %v1291
        %v1293 = vpop.f32.mrb[0].mxu0
        %v1294 = vadd.f32 %v1133, %v1293
        %1295 = vmatprep.mubr.f32.mxu0 0.0
        %1296 = vmatmul.mubr.f32.gmra.mrb[0].mxu0 %v1012
        %v1297 = vpop.f32.mrb[0].mxu0
        %v1298 = vadd.f32 %v1137, %v1297
        %v1299 = vpop.f32.mrb[0].mxu0
        %v1300 = vadd.f32 %v1139, %v1299
        %1301 = vmatprep.mubr.f32.mxu0 0.0
        %1302 = vmatmul.mubr.f32.gmra.mrb[0].mxu0 %v1013
        %v1303 = vpop.f32.mrb[0].mxu0
        %v1304 = vadd.f32 %v1143, %v1303
        %v1305 = vpop.f32.mrb[0].mxu0
        %v1306 = vadd.f32 %v1145, %v1305
        %1307 = vmatprep.mubr.f32.mxu0 0.0
        %1308 = vmatmul.mubr.f32.gmra.mrb[0].mxu0 %v1014
        %v1309 = vpop.f32.mrb[0].mxu0
        %v1310 = vadd.f32 %v1149, %v1309
        %v1311 = vpop.f32.mrb[0].mxu0
        %v1312 = vadd.f32 %v1151, %v1311
        %1313 = vmatprep.mubr.f32.mxu0 0.0
        %1314 = vmatmul.mubr.f32.gmra.mrb[0].mxu0 %v1015
        %v1315 = vpop.f32.mrb[0].mxu0
        %v1316 = vadd.f32 %v1155, %v1315
        %v1317 = vpop.f32.mrb[0].mxu0
        %v1318 = vadd.f32 %v1157, %v1317
        %1319 = vmatprep.mubr.f32.mxu0 0.0
        %1320 = vmatmul.mubr.f32.gmra.mrb[0].mxu0 %v1016
        %v1321 = vpop.f32.mrb[0].mxu0
        %v1322 = vadd.f32 %v1161, %v1321
        %v1323 = vpop.f32.mrb[0].mxu0
        %v1324 = vadd.f32 %v1163, %v1323
        %1325 = vmatprep.mubr.f32.mxu0 0.0
        %1326 = vmatmul.mubr.f32.gmra.mrb[0].mxu0 %v1017
        %v1327 = vpop.f32.mrb[0].mxu0
        %v1328 = vadd.f32 %v1167, %v1327
        %v1329 = vpop.f32.mrb[0].mxu0
        %v1330 = vadd.f32 %v1169, %v1329
        %1331 = vmatprep.mubr.f32.mxu0 0.0
        %1332 = vmatmul.mubr.f32.gmra.mrb[0].mxu0 %v1018
        %v1333 = vpop.f32.mrb[0].mxu0
        %v1334 = vadd.f32 %v1173, %v1333
        %v1335 = vpop.f32.mrb[0].mxu0
        %v1336 = vadd.f32 %v1175, %v1335
        %1337 = vmatprep.mubr.f32.mxu0 0.0
        %1338 = vmatmul.mubr.f32.gmra.mrb[0].mxu0 %v1019
        %v1339 = vpop.f32.mrb[0].mxu0
        %v1340 = vadd.f32 %v1179, %v1339
        %v1341 = vpop.f32.mrb[0].mxu0
        %v1342 = vadd.f32 %v1181, %v1341
        %1343 = vmatprep.mubr.f32.mxu0 0.0
        %1344 = vmatmul.mubr.f32.gmra.mrb[0].mxu0 %v1020
        %v1345 = vpop.f32.mrb[0].mxu0
        %v1346 = vadd.f32 %v1185, %v1345
        %v1347 = vpop.f32.mrb[0].mxu0
        %v1348 = vadd.f32 %v1187, %v1347
        %1349 = vmatprep.mubr.f32.mxu0 0.0
        %1350 = vmatmul.mubr.f32.gmra.mrb[0].mxu0 %v1021
        %v1351 = vpop.f32.mrb[0].mxu0
        %v1352 = vadd.f32 %v1191, %v1351
        %v1353 = vpop.f32.mrb[0].mxu0
        %v1354 = vadd.f32 %v1193, %v1353
        %1355 = vmatprep.mubr.f32.mxu0 0.0
        %1356 = vmatmul.mubr.f32.gmra.mrb[0].mxu0 %v1022
        %v1357 = vpop.f32.mrb[0].mxu0
        %v1358 = vadd.f32 %v1197, %v1357
        %v1359 = vpop.f32.mrb[0].mxu0
        %v1360 = vadd.f32 %v1199, %v1359
        %1361 = vdwg.mxu0
        %s1362 = scalar_lea.vmem [#allocation5], 256
        %v1363 = vld [vmem:[%s1362] sm:$0xff]
        %v1364 = vld [vmem:[%s1362 + $0x8] sm:$0xff]
        %v1365 = vld [vmem:[%s1362 + $0x10] sm:$0xff]
        %v1366 = vld [vmem:[%s1362 + $0x18] sm:$0xff]
        %v1367 = vld [vmem:[%s1362 + $0x20] sm:$0xff]
        %v1368 = vld [vmem:[%s1362 + $0x28] sm:$0xff]
        %v1369 = vld [vmem:[%s1362 + $0x30] sm:$0xff]
        %v1370 = vld [vmem:[%s1362 + $0x38] sm:$0xff]
        %v1371 = vld [vmem:[%s1362 + $0x40] sm:$0xff]
        %v1372 = vld [vmem:[%s1362 + $0x48] sm:$0xff]
        %v1373 = vld [vmem:[%s1362 + $0x50] sm:$0xff]
        %v1374 = vld [vmem:[%s1362 + $0x58] sm:$0xff]
        %v1375 = vld [vmem:[%s1362 + $0x60] sm:$0xff]
        %v1376 = vld [vmem:[%s1362 + $0x68] sm:$0xff]
        %v1377 = vld [vmem:[%s1362 + $0x70] sm:$0xff]
        %v1378 = vld [vmem:[%s1362 + $0x78] sm:$0xff]
        %1379 = vmatprep.subr.mxu0 %v976
        %1380 = vmatpush1.msra.mxu0 %v975
        %1381 = vmatprep.subr.mxu0 %v978
        %1382 = vmatpush1.msra.mxu0 %v977
        %1383 = vmatprep.subr.mxu0 %v980
        %1384 = vmatpush1.msra.mxu0 %v979
        %1385 = vmatprep.subr.mxu0 %v982
        %1386 = vmatpush1.msra.mxu0 %v981
        %1387 = vmatprep.subr.mxu0 %v984
        %1388 = vmatpush1.msra.mxu0 %v983
        %1389 = vmatprep.subr.mxu0 %v986
        %1390 = vmatpush1.msra.mxu0 %v985
        %1391 = vmatprep.subr.mxu0 %v988
        %1392 = vmatpush1.msra.mxu0 %v987
        %1393 = vmatprep.subr.mxu0 %v990
        %1394 = vmatpush1.msra.mxu0 %v989
        %1395 = vmatprep.subr.mxu0 %v992
        %1396 = vmatpush1.msra.mxu0 %v991
        %1397 = vmatprep.subr.mxu0 %v994
        %1398 = vmatpush1.msra.mxu0 %v993
        %1399 = vmatprep.subr.mxu0 %v996
        %1400 = vmatpush1.msra.mxu0 %v995
        %1401 = vmatprep.subr.mxu0 %v998
        %1402 = vmatpush1.msra.mxu0 %v997
        %1403 = vmatprep.subr.mxu0 %v1000
        %1404 = vmatpush1.msra.mxu0 %v999
        %1405 = vmatprep.subr.mxu0 %v1002
        %1406 = vmatpush1.msra.mxu0 %v1001
        %1407 = vmatprep.subr.mxu0 %v1004
        %1408 = vmatpush1.msra.mxu0 %v1003
        %1409 = vmatprep.subr.mxu0 %v1006
        %1410 = vmatpush1.msra.mxu0 %v1005
        %1411 = vmatprep.subr.mxu0 0.0
        %1412 = vmatpush1.msra.mxu0 0.0
        %1413 = vmatprep.subr.mxu0 0.0
        %1414 = vmatpush1.msra.mxu0 0.0
        %1415 = vmatprep.subr.mxu0 0.0
        %1416 = vmatpush1.msra.mxu0 0.0
        %1417 = vmatprep.subr.mxu0 0.0
        %1418 = vmatpush1.msra.mxu0 0.0
        %1419 = vmatprep.subr.mxu0 0.0
        %1420 = vmatpush1.msra.mxu0 0.0
        %1421 = vmatprep.subr.mxu0 0.0
        %1422 = vmatpush1.msra.mxu0 0.0
        %1423 = vmatprep.subr.mxu0 0.0
        %1424 = vmatpush1.msra.mxu0 0.0
        %1425 = vmatprep.subr.mxu0 0.0
        %1426 = vmatpush1.msra.mxu0 0.0
        %1427 = vmatprep.subr.mxu0 0.0
        %1428 = vmatpush1.msra.mxu0 0.0
        %1429 = vmatprep.subr.mxu0 0.0
        %1430 = vmatpush1.msra.mxu0 0.0
        %1431 = vmatprep.subr.mxu0 0.0
        %1432 = vmatpush1.msra.mxu0 0.0
        %1433 = vmatprep.subr.mxu0 0.0
        %1434 = vmatpush1.msra.mxu0 0.0
        %1435 = vmatprep.subr.mxu0 0.0
        %1436 = vmatpush1.msra.mxu0 0.0
        %1437 = vmatprep.subr.mxu0 0.0
        %1438 = vmatpush1.msra.mxu0 0.0
        %1439 = vmatprep.subr.mxu0 0.0
        %1440 = vmatpush1.msra.mxu0 0.0
        %1441 = vmatprep.subr.mxu0 0.0
        %1442 = vmatpush1.msra.mxu0 0.0
        %1443 = vmatprep.mubr.f32.mxu0 0.0
        %1444 = vmatmul.mubr.f32.gmra.mrb[0].mxu0 %v1363
        %v1445 = vpop.f32.mrb[0].mxu0
        %v1446 = vadd.f32 0.0, %v1445
        %v1447 = vpop.f32.mrb[0].mxu0
        %v1448 = vadd.f32 0.0, %v1447
        %1449 = vmatprep.mubr.f32.mxu0 0.0
        %1450 = vmatmul.mubr.f32.gmra.mrb[0].mxu0 %v1364
        %v1451 = vpop.f32.mrb[0].mxu0
        %v1452 = vadd.f32 0.0, %v1451
        %v1453 = vpop.f32.mrb[0].mxu0
        %v1454 = vadd.f32 0.0, %v1453
        %1455 = vmatprep.mubr.f32.mxu0 0.0
        %1456 = vmatmul.mubr.f32.gmra.mrb[0].mxu0 %v1365
        %v1457 = vpop.f32.mrb[0].mxu0
        %v1458 = vadd.f32 0.0, %v1457
        %v1459 = vpop.f32.mrb[0].mxu0
        %v1460 = vadd.f32 0.0, %v1459
        %1461 = vmatprep.mubr.f32.mxu0 0.0
        %1462 = vmatmul.mubr.f32.gmra.mrb[0].mxu0 %v1366
        %v1463 = vpop.f32.mrb[0].mxu0
        %v1464 = vadd.f32 0.0, %v1463
        %v1465 = vpop.f32.mrb[0].mxu0
        %v1466 = vadd.f32 0.0, %v1465
        %1467 = vmatprep.mubr.f32.mxu0 0.0
        %1468 = vmatmul.mubr.f32.gmra.mrb[0].mxu0 %v1367
        %v1469 = vpop.f32.mrb[0].mxu0
        %v1470 = vadd.f32 0.0, %v1469
        %v1471 = vpop.f32.mrb[0].mxu0
        %v1472 = vadd.f32 0.0, %v1471
        %1473 = vmatprep.mubr.f32.mxu0 0.0
        %1474 = vmatmul.mubr.f32.gmra.mrb[0].mxu0 %v1368
        %v1475 = vpop.f32.mrb[0].mxu0
        %v1476 = vadd.f32 0.0, %v1475
        %v1477 = vpop.f32.mrb[0].mxu0
        %v1478 = vadd.f32 0.0, %v1477
        %1479 = vmatprep.mubr.f32.mxu0 0.0
        %1480 = vmatmul.mubr.f32.gmra.mrb[0].mxu0 %v1369
        %v1481 = vpop.f32.mrb[0].mxu0
        %v1482 = vadd.f32 0.0, %v1481
        %v1483 = vpop.f32.mrb[0].mxu0
        %v1484 = vadd.f32 0.0, %v1483
        %1485 = vmatprep.mubr.f32.mxu0 0.0
        %1486 = vmatmul.mubr.f32.gmra.mrb[0].mxu0 %v1370
        %v1487 = vpop.f32.mrb[0].mxu0
        %v1488 = vadd.f32 0.0, %v1487
        %v1489 = vpop.f32.mrb[0].mxu0
        %v1490 = vadd.f32 0.0, %v1489
        %1491 = vmatprep.mubr.f32.mxu0 0.0
        %1492 = vmatmul.mubr.f32.gmra.mrb[0].mxu0 %v1371
        %v1493 = vpop.f32.mrb[0].mxu0
        %v1494 = vadd.f32 0.0, %v1493
        %v1495 = vpop.f32.mrb[0].mxu0
        %v1496 = vadd.f32 0.0, %v1495
        %1497 = vmatprep.mubr.f32.mxu0 0.0
        %1498 = vmatmul.mubr.f32.gmra.mrb[0].mxu0 %v1372
        %v1499 = vpop.f32.mrb[0].mxu0
        %v1500 = vadd.f32 0.0, %v1499
        %v1501 = vpop.f32.mrb[0].mxu0
        %v1502 = vadd.f32 0.0, %v1501
        %1503 = vmatprep.mubr.f32.mxu0 0.0
        %1504 = vmatmul.mubr.f32.gmra.mrb[0].mxu0 %v1373
        %v1505 = vpop.f32.mrb[0].mxu0
        %v1506 = vadd.f32 0.0, %v1505
        %v1507 = vpop.f32.mrb[0].mxu0
        %v1508 = vadd.f32 0.0, %v1507
        %1509 = vmatprep.mubr.f32.mxu0 0.0
        %1510 = vmatmul.mubr.f32.gmra.mrb[0].mxu0 %v1374
        %v1511 = vpop.f32.mrb[0].mxu0
        %v1512 = vadd.f32 0.0, %v1511
        %v1513 = vpop.f32.mrb[0].mxu0
        %v1514 = vadd.f32 0.0, %v1513
        %1515 = vmatprep.mubr.f32.mxu0 0.0
        %1516 = vmatmul.mubr.f32.gmra.mrb[0].mxu0 %v1375
        %v1517 = vpop.f32.mrb[0].mxu0
        %v1518 = vadd.f32 0.0, %v1517
        %v1519 = vpop.f32.mrb[0].mxu0
        %v1520 = vadd.f32 0.0, %v1519
        %1521 = vmatprep.mubr.f32.mxu0 0.0
        %1522 = vmatmul.mubr.f32.gmra.mrb[0].mxu0 %v1376
        %v1523 = vpop.f32.mrb[0].mxu0
        %v1524 = vadd.f32 0.0, %v1523
        %v1525 = vpop.f32.mrb[0].mxu0
        %v1526 = vadd.f32 0.0, %v1525
        %1527 = vmatprep.mubr.f32.mxu0 0.0
        %1528 = vmatmul.mubr.f32.gmra.mrb[0].mxu0 %v1377
        %v1529 = vpop.f32.mrb[0].mxu0
        %v1530 = vadd.f32 0.0, %v1529
        %v1531 = vpop.f32.mrb[0].mxu0
        %v1532 = vadd.f32 0.0, %v1531
        %1533 = vmatprep.mubr.f32.mxu0 0.0
        %1534 = vmatmul.mubr.f32.gmra.mrb[0].mxu0 %v1378
        %v1535 = vpop.f32.mrb[0].mxu0
        %v1536 = vadd.f32 0.0, %v1535
        %v1537 = vpop.f32.mrb[0].mxu0
        %v1538 = vadd.f32 0.0, %v1537
        %1539 = vdwg.mxu0
        %v1540 = vadd.f32 %v1268, %v1446
        %v1541 = vadd.f32 %v1270, %v1448
        %v1542 = vadd.f32 %v1274, %v1452
        %v1543 = vadd.f32 %v1276, %v1454
        %v1544 = vadd.f32 %v1280, %v1458
        %v1545 = vadd.f32 %v1282, %v1460
        %v1546 = vadd.f32 %v1286, %v1464
        %v1547 = vadd.f32 %v1288, %v1466
        %v1548 = vadd.f32 %v1292, %v1470
        %v1549 = vadd.f32 %v1294, %v1472
        %v1550 = vadd.f32 %v1298, %v1476
        %v1551 = vadd.f32 %v1300, %v1478
        %v1552 = vadd.f32 %v1304, %v1482
        %v1553 = vadd.f32 %v1306, %v1484
        %v1554 = vadd.f32 %v1310, %v1488
        %v1555 = vadd.f32 %v1312, %v1490
        %v1556 = vadd.f32 %v1316, %v1494
        %v1557 = vadd.f32 %v1318, %v1496
        %v1558 = vadd.f32 %v1322, %v1500
        %v1559 = vadd.f32 %v1324, %v1502
        %v1560 = vadd.f32 %v1328, %v1506
        %v1561 = vadd.f32 %v1330, %v1508
        %v1562 = vadd.f32 %v1334, %v1512
        %v1563 = vadd.f32 %v1336, %v1514
        %v1564 = vadd.f32 %v1340, %v1518
        %v1565 = vadd.f32 %v1342, %v1520
        %v1566 = vadd.f32 %v1346, %v1524
        %v1567 = vadd.f32 %v1348, %v1526
        %v1568 = vadd.f32 %v1352, %v1530
        %v1569 = vadd.f32 %v1354, %v1532
        %v1570 = vadd.f32 %v1358, %v1536
        %v1571 = vadd.f32 %v1360, %v1538
        %1572 = vrot.lane.b32.xlu0 %v1540, 16
        %v1573 = vpop.permute.xlu0 %1572
        %1574 = vrot.lane.b32.xlu0 %v1542, 16
        %v1575 = vpop.permute.xlu0 %1574
        %1576 = vrot.lane.b32.xlu0 %v1544, 16
        %v1577 = vpop.permute.xlu0 %1576
        %1578 = vrot.lane.b32.xlu0 %v1546, 16
        %v1579 = vpop.permute.xlu0 %1578
        %1580 = vrot.lane.b32.xlu0 %v1548, 16
        %v1581 = vpop.permute.xlu0 %1580
        %1582 = vrot.lane.b32.xlu0 %v1550, 16
        %v1583 = vpop.permute.xlu0 %1582
        %1584 = vrot.lane.b32.xlu0 %v1552, 16
        %v1585 = vpop.permute.xlu0 %1584
        %1586 = vrot.lane.b32.xlu0 %v1554, 16
        %v1587 = vpop.permute.xlu0 %1586
        %1588 = vrot.lane.b32.xlu0 %v1556, 16
        %v1589 = vpop.permute.xlu0 %1588
        %1590 = vrot.lane.b32.xlu0 %v1558, 16
        %v1591 = vpop.permute.xlu0 %1590
        %1592 = vrot.lane.b32.xlu0 %v1560, 16
        %v1593 = vpop.permute.xlu0 %1592
        %1594 = vrot.lane.b32.xlu0 %v1562, 16
        %v1595 = vpop.permute.xlu0 %1594
        %1596 = vrot.lane.b32.xlu0 %v1564, 16
        %v1597 = vpop.permute.xlu0 %1596
        %1598 = vrot.lane.b32.xlu0 %v1566, 16
        %v1599 = vpop.permute.xlu0 %1598
        %1600 = vrot.lane.b32.xlu0 %v1568, 16
        %v1601 = vpop.permute.xlu0 %1600
        %1602 = vrot.lane.b32.xlu0 %v1570, 16
        %v1603 = vpop.permute.xlu0 %1602
        %1604 = vrot.lane.b32.xlu0 %v1541, 16
        %v1605 = vpop.permute.xlu0 %1604
        %1606 = vrot.lane.b32.xlu0 %v1543, 16
        %v1607 = vpop.permute.xlu0 %1606
        %1608 = vrot.lane.b32.xlu0 %v1545, 16
        %v1609 = vpop.permute.xlu0 %1608
        %1610 = vrot.lane.b32.xlu0 %v1547, 16
        %v1611 = vpop.permute.xlu0 %1610
        %1612 = vrot.lane.b32.xlu0 %v1549, 16
        %v1613 = vpop.permute.xlu0 %1612
        %1614 = vrot.lane.b32.xlu0 %v1551, 16
        %v1615 = vpop.permute.xlu0 %1614
        %1616 = vrot.lane.b32.xlu0 %v1553, 16
        %v1617 = vpop.permute.xlu0 %1616
        %1618 = vrot.lane.b32.xlu0 %v1555, 16
        %v1619 = vpop.permute.xlu0 %1618
        %1620 = vrot.lane.b32.xlu0 %v1557, 16
        %v1621 = vpop.permute.xlu0 %1620
        %1622 = vrot.lane.b32.xlu0 %v1559, 16
        %v1623 = vpop.permute.xlu0 %1622
        %1624 = vrot.lane.b32.xlu0 %v1561, 16
        %v1625 = vpop.permute.xlu0 %1624
        %1626 = vrot.lane.b32.xlu0 %v1563, 16
        %v1627 = vpop.permute.xlu0 %1626
        %1628 = vrot.lane.b32.xlu0 %v1565, 16
        %v1629 = vpop.permute.xlu0 %1628
        %1630 = vrot.lane.b32.xlu0 %v1567, 16
        %v1631 = vpop.permute.xlu0 %1630
        %1632 = vrot.lane.b32.xlu0 %v1569, 16
        %v1633 = vpop.permute.xlu0 %1632
        %1634 = vrot.lane.b32.xlu0 %v1571, 16
        %v1635 = vpop.permute.xlu0 %1634
        %vm1636 = vcmp.lt.s32.totalorder %v784, 16
        %v1637 = vsel %vm1636, %v1573, %v1605
        %v1638 = vsel %vm1636, %v1575, %v1607
        %v1639 = vsel %vm1636, %v1577, %v1609
        %v1640 = vsel %vm1636, %v1579, %v1611
        %v1641 = vsel %vm1636, %v1581, %v1613
        %v1642 = vsel %vm1636, %v1583, %v1615
        %v1643 = vsel %vm1636, %v1585, %v1617
        %v1644 = vsel %vm1636, %v1587, %v1619
        %v1645 = vsel %vm1636, %v1589, %v1621
        %v1646 = vsel %vm1636, %v1591, %v1623
        %v1647 = vsel %vm1636, %v1593, %v1625
        %v1648 = vsel %vm1636, %v1595, %v1627
        %v1649 = vsel %vm1636, %v1597, %v1629
        %v1650 = vsel %vm1636, %v1599, %v1631
        %v1651 = vsel %vm1636, %v1601, %v1633
        %v1652 = vsel %vm1636, %v1603, %v1635
        %v1653 = vsel %vm1636, %v1605, %v1573
        %v1654 = vsel %vm1636, %v1607, %v1575
        %v1655 = vsel %vm1636, %v1609, %v1577
        %v1656 = vsel %vm1636, %v1611, %v1579
        %v1657 = vsel %vm1636, %v1613, %v1581
        %v1658 = vsel %vm1636, %v1615, %v1583
        %v1659 = vsel %vm1636, %v1617, %v1585
        %v1660 = vsel %vm1636, %v1619, %v1587
        %v1661 = vsel %vm1636, %v1621, %v1589
        %v1662 = vsel %vm1636, %v1623, %v1591
        %v1663 = vsel %vm1636, %v1625, %v1593
        %v1664 = vsel %vm1636, %v1627, %v1595
        %v1665 = vsel %vm1636, %v1629, %v1597
        %v1666 = vsel %vm1636, %v1631, %v1599
        %v1667 = vsel %vm1636, %v1633, %v1601
        %v1668 = vsel %vm1636, %v1635, %v1603
        %vm1669 = vcmp.ge.s32.totalorder %v380, 1
        %v1670 = vsel %vm1669, 1, 0
        %v1671 = vcvt.s32.f32 %v1670
        %v1673 = vlaneseq
        %v1674 = vshrl.u32 %v1673, 7
        %v1675 = vsub.s32 0, %v1674
        %v1676 = vrot.slane %v1671, %v1675
        %v1677 = vlaneseq
        %v1678 = vshrl.u32 %v1677, 7
        %v1679 = vsub.s32 1, %v1678
        %v1680 = vrot.slane %v1671, %v1679
        %v1683 = vmul.f32 %v1653, %v1676
        %v1684 = vmul.f32 %v1637, %v1680
        %v1685 = vmul.f32 %v1654, %v1676
        %v1686 = vmul.f32 %v1638, %v1680
        %v1687 = vmul.f32 %v1655, %v1676
        %v1688 = vmul.f32 %v1639, %v1680
        %v1689 = vmul.f32 %v1656, %v1676
        %v1690 = vmul.f32 %v1640, %v1680
        %v1691 = vmul.f32 %v1657, %v1676
        %v1692 = vmul.f32 %v1641, %v1680
        %v1693 = vmul.f32 %v1658, %v1676
        %v1694 = vmul.f32 %v1642, %v1680
        %v1695 = vmul.f32 %v1659, %v1676
        %v1696 = vmul.f32 %v1643, %v1680
        %v1697 = vmul.f32 %v1660, %v1676
        %v1698 = vmul.f32 %v1644, %v1680
        %v1699 = vmul.f32 %v1661, %v1676
        %v1700 = vmul.f32 %v1645, %v1680
        %v1701 = vmul.f32 %v1662, %v1676
        %v1702 = vmul.f32 %v1646, %v1680
        %v1703 = vmul.f32 %v1663, %v1676
        %v1704 = vmul.f32 %v1647, %v1680
        %v1705 = vmul.f32 %v1664, %v1676
        %v1706 = vmul.f32 %v1648, %v1680
        %v1707 = vmul.f32 %v1665, %v1676
        %v1708 = vmul.f32 %v1649, %v1680
        %v1709 = vmul.f32 %v1666, %v1676
        %v1710 = vmul.f32 %v1650, %v1680
        %v1711 = vmul.f32 %v1667, %v1676
        %v1712 = vmul.f32 %v1651, %v1680
        %v1713 = vmul.f32 %v1668, %v1676
        %v1714 = vmul.f32 %v1652, %v1680
        %s1715 = scalar_lea.vmem [#allocation5], 384
        %v1716 = vld [vmem:[%s1715] sm:$0xff]
        %v1717 = vld [vmem:[%s1715 + $0x8] sm:$0xff]
        %v1718 = vld [vmem:[%s1715 + $0x10] sm:$0xff]
        %v1719 = vld [vmem:[%s1715 + $0x18] sm:$0xff]
        %v1720 = vld [vmem:[%s1715 + $0x20] sm:$0xff]
        %v1721 = vld [vmem:[%s1715 + $0x28] sm:$0xff]
        %v1722 = vld [vmem:[%s1715 + $0x30] sm:$0xff]
        %v1723 = vld [vmem:[%s1715 + $0x38] sm:$0xff]
        %v1724 = vld [vmem:[%s1715 + $0x40] sm:$0xff]
        %v1725 = vld [vmem:[%s1715 + $0x48] sm:$0xff]
        %v1726 = vld [vmem:[%s1715 + $0x50] sm:$0xff]
        %v1727 = vld [vmem:[%s1715 + $0x58] sm:$0xff]
        %v1728 = vld [vmem:[%s1715 + $0x60] sm:$0xff]
        %v1729 = vld [vmem:[%s1715 + $0x68] sm:$0xff]
        %v1730 = vld [vmem:[%s1715 + $0x70] sm:$0xff]
        %v1731 = vld [vmem:[%s1715 + $0x78] sm:$0xff]
        %s1732 = scalar_lea.vmem [#allocation5], 512
        %v1733 = vld [vmem:[%s1732] sm:$0xff]
        %v1734 = vld [vmem:[%s1732 + $0x8] sm:$0xff]
        %v1735 = vld [vmem:[%s1732 + $0x10] sm:$0xff]
        %v1736 = vld [vmem:[%s1732 + $0x18] sm:$0xff]
        %v1737 = vld [vmem:[%s1732 + $0x20] sm:$0xff]
        %v1738 = vld [vmem:[%s1732 + $0x28] sm:$0xff]
        %v1739 = vld [vmem:[%s1732 + $0x30] sm:$0xff]
        %v1740 = vld [vmem:[%s1732 + $0x38] sm:$0xff]
        %v1741 = vld [vmem:[%s1732 + $0x40] sm:$0xff]
        %v1742 = vld [vmem:[%s1732 + $0x48] sm:$0xff]
        %v1743 = vld [vmem:[%s1732 + $0x50] sm:$0xff]
        %v1744 = vld [vmem:[%s1732 + $0x58] sm:$0xff]
        %v1745 = vld [vmem:[%s1732 + $0x60] sm:$0xff]
        %v1746 = vld [vmem:[%s1732 + $0x68] sm:$0xff]
        %v1747 = vld [vmem:[%s1732 + $0x70] sm:$0xff]
        %v1748 = vld [vmem:[%s1732 + $0x78] sm:$0xff]
        %1749 = vmatprep.subr.mxu0 %v688
        %1750 = vmatpush1.msra.mxu0 %v687
        %1751 = vmatprep.subr.mxu0 %v690
        %1752 = vmatpush1.msra.mxu0 %v689
        %1753 = vmatprep.subr.mxu0 %v692
        %1754 = vmatpush1.msra.mxu0 %v691
        %1755 = vmatprep.subr.mxu0 %v694
        %1756 = vmatpush1.msra.mxu0 %v693
        %1757 = vmatprep.subr.mxu0 %v696
        %1758 = vmatpush1.msra.mxu0 %v695
        %1759 = vmatprep.subr.mxu0 %v698
        %1760 = vmatpush1.msra.mxu0 %v697
        %1761 = vmatprep.subr.mxu0 %v700
        %1762 = vmatpush1.msra.mxu0 %v699
        %1763 = vmatprep.subr.mxu0 %v702
        %1764 = vmatpush1.msra.mxu0 %v701
        %1765 = vmatprep.subr.mxu0 %v704
        %1766 = vmatpush1.msra.mxu0 %v703
        %1767 = vmatprep.subr.mxu0 %v706
        %1768 = vmatpush1.msra.mxu0 %v705
        %1769 = vmatprep.subr.mxu0 %v708
        %1770 = vmatpush1.msra.mxu0 %v707
        %1771 = vmatprep.subr.mxu0 %v710
        %1772 = vmatpush1.msra.mxu0 %v709
        %1773 = vmatprep.subr.mxu0 %v712
        %1774 = vmatpush1.msra.mxu0 %v711
        %1775 = vmatprep.subr.mxu0 %v714
        %1776 = vmatpush1.msra.mxu0 %v713
        %1777 = vmatprep.subr.mxu0 %v716
        %1778 = vmatpush1.msra.mxu0 %v715
        %1779 = vmatprep.subr.mxu0 %v718
        %1780 = vmatpush1.msra.mxu0 %v717
        %1781 = vmatprep.subr.mxu0 0.0
        %1782 = vmatpush1.msra.mxu0 0.0
        %1783 = vmatprep.subr.mxu0 0.0
        %1784 = vmatpush1.msra.mxu0 0.0
        %1785 = vmatprep.subr.mxu0 0.0
        %1786 = vmatpush1.msra.mxu0 0.0
        %1787 = vmatprep.subr.mxu0 0.0
        %1788 = vmatpush1.msra.mxu0 0.0
        %1789 = vmatprep.subr.mxu0 0.0
        %1790 = vmatpush1.msra.mxu0 0.0
        %1791 = vmatprep.subr.mxu0 0.0
        %1792 = vmatpush1.msra.mxu0 0.0
        %1793 = vmatprep.subr.mxu0 0.0
        %1794 = vmatpush1.msra.mxu0 0.0
        %1795 = vmatprep.subr.mxu0 0.0
        %1796 = vmatpush1.msra.mxu0 0.0
        %1797 = vmatprep.subr.mxu0 0.0
        %1798 = vmatpush1.msra.mxu0 0.0
        %1799 = vmatprep.subr.mxu0 0.0
        %1800 = vmatpush1.msra.mxu0 0.0
        %1801 = vmatprep.subr.mxu0 0.0
        %1802 = vmatpush1.msra.mxu0 0.0
        %1803 = vmatprep.subr.mxu0 0.0
        %1804 = vmatpush1.msra.mxu0 0.0
        %1805 = vmatprep.subr.mxu0 0.0
        %1806 = vmatpush1.msra.mxu0 0.0
        %1807 = vmatprep.subr.mxu0 0.0
        %1808 = vmatpush1.msra.mxu0 0.0
        %1809 = vmatprep.subr.mxu0 0.0
        %1810 = vmatpush1.msra.mxu0 0.0
        %1811 = vmatprep.subr.mxu0 0.0
        %1812 = vmatpush1.msra.mxu0 0.0
        %1813 = vmatprep.mubr.f32.mxu0 0.0
        %1814 = vmatmul.mubr.f32.gmra.mrb[0].mxu0 %v1733
        %v1815 = vpop.f32.mrb[0].mxu0
        %v1816 = vadd.f32 0.0, %v1815
        %v1817 = vpop.f32.mrb[0].mxu0
        %v1818 = vadd.f32 0.0, %v1817
        %1819 = vmatprep.mubr.f32.mxu0 0.0
        %1820 = vmatmul.mubr.f32.gmra.mrb[0].mxu0 %v1734
        %v1821 = vpop.f32.mrb[0].mxu0
        %v1822 = vadd.f32 0.0, %v1821
        %v1823 = vpop.f32.mrb[0].mxu0
        %v1824 = vadd.f32 0.0, %v1823
        %1825 = vmatprep.mubr.f32.mxu0 0.0
        %1826 = vmatmul.mubr.f32.gmra.mrb[0].mxu0 %v1735
        %v1827 = vpop.f32.mrb[0].mxu0
        %v1828 = vadd.f32 0.0, %v1827
        %v1829 = vpop.f32.mrb[0].mxu0
        %v1830 = vadd.f32 0.0, %v1829
        %1831 = vmatprep.mubr.f32.mxu0 0.0
        %1832 = vmatmul.mubr.f32.gmra.mrb[0].mxu0 %v1736
        %v1833 = vpop.f32.mrb[0].mxu0
        %v1834 = vadd.f32 0.0, %v1833
        %v1835 = vpop.f32.mrb[0].mxu0
        %v1836 = vadd.f32 0.0, %v1835
        %1837 = vmatprep.mubr.f32.mxu0 0.0
        %1838 = vmatmul.mubr.f32.gmra.mrb[0].mxu0 %v1737
        %v1839 = vpop.f32.mrb[0].mxu0
        %v1840 = vadd.f32 0.0, %v1839
        %v1841 = vpop.f32.mrb[0].mxu0
        %v1842 = vadd.f32 0.0, %v1841
        %1843 = vmatprep.mubr.f32.mxu0 0.0
        %1844 = vmatmul.mubr.f32.gmra.mrb[0].mxu0 %v1738
        %v1845 = vpop.f32.mrb[0].mxu0
        %v1846 = vadd.f32 0.0, %v1845
        %v1847 = vpop.f32.mrb[0].mxu0
        %v1848 = vadd.f32 0.0, %v1847
        %1849 = vmatprep.mubr.f32.mxu0 0.0
        %1850 = vmatmul.mubr.f32.gmra.mrb[0].mxu0 %v1739
        %v1851 = vpop.f32.mrb[0].mxu0
        %v1852 = vadd.f32 0.0, %v1851
        %v1853 = vpop.f32.mrb[0].mxu0
        %v1854 = vadd.f32 0.0, %v1853
        %1855 = vmatprep.mubr.f32.mxu0 0.0
        %1856 = vmatmul.mubr.f32.gmra.mrb[0].mxu0 %v1740
        %v1857 = vpop.f32.mrb[0].mxu0
        %v1858 = vadd.f32 0.0, %v1857
        %v1859 = vpop.f32.mrb[0].mxu0
        %v1860 = vadd.f32 0.0, %v1859
        %1861 = vmatprep.mubr.f32.mxu0 0.0
        %1862 = vmatmul.mubr.f32.gmra.mrb[0].mxu0 %v1741
        %v1863 = vpop.f32.mrb[0].mxu0
        %v1864 = vadd.f32 0.0, %v1863
        %v1865 = vpop.f32.mrb[0].mxu0
        %v1866 = vadd.f32 0.0, %v1865
        %1867 = vmatprep.mubr.f32.mxu0 0.0
        %1868 = vmatmul.mubr.f32.gmra.mrb[0].mxu0 %v1742
        %v1869 = vpop.f32.mrb[0].mxu0
        %v1870 = vadd.f32 0.0, %v1869
        %v1871 = vpop.f32.mrb[0].mxu0
        %v1872 = vadd.f32 0.0, %v1871
        %1873 = vmatprep.mubr.f32.mxu0 0.0
        %1874 = vmatmul.mubr.f32.gmra.mrb[0].mxu0 %v1743
        %v1875 = vpop.f32.mrb[0].mxu0
        %v1876 = vadd.f32 0.0, %v1875
        %v1877 = vpop.f32.mrb[0].mxu0
        %v1878 = vadd.f32 0.0, %v1877
        %1879 = vmatprep.mubr.f32.mxu0 0.0
        %1880 = vmatmul.mubr.f32.gmra.mrb[0].mxu0 %v1744
        %v1881 = vpop.f32.mrb[0].mxu0
        %v1882 = vadd.f32 0.0, %v1881
        %v1883 = vpop.f32.mrb[0].mxu0
        %v1884 = vadd.f32 0.0, %v1883
        %1885 = vmatprep.mubr.f32.mxu0 0.0
        %1886 = vmatmul.mubr.f32.gmra.mrb[0].mxu0 %v1745
        %v1887 = vpop.f32.mrb[0].mxu0
        %v1888 = vadd.f32 0.0, %v1887
        %v1889 = vpop.f32.mrb[0].mxu0
        %v1890 = vadd.f32 0.0, %v1889
        %1891 = vmatprep.mubr.f32.mxu0 0.0
        %1892 = vmatmul.mubr.f32.gmra.mrb[0].mxu0 %v1746
        %v1893 = vpop.f32.mrb[0].mxu0
        %v1894 = vadd.f32 0.0, %v1893
        %v1895 = vpop.f32.mrb[0].mxu0
        %v1896 = vadd.f32 0.0, %v1895
        %1897 = vmatprep.mubr.f32.mxu0 0.0
        %1898 = vmatmul.mubr.f32.gmra.mrb[0].mxu0 %v1747
        %v1899 = vpop.f32.mrb[0].mxu0
        %v1900 = vadd.f32 0.0, %v1899
        %v1901 = vpop.f32.mrb[0].mxu0
        %v1902 = vadd.f32 0.0, %v1901
        %1903 = vmatprep.mubr.f32.mxu0 0.0
        %1904 = vmatmul.mubr.f32.gmra.mrb[0].mxu0 %v1748
        %v1905 = vpop.f32.mrb[0].mxu0
        %v1906 = vadd.f32 0.0, %v1905
        %v1907 = vpop.f32.mrb[0].mxu0
        %v1908 = vadd.f32 0.0, %v1907
        %1909 = vdwg.mxu0
        %1910 = vmatprep.subr.mxu0 %v833
        %1911 = vmatpush1.msra.mxu0 %v832
        %1912 = vmatprep.subr.mxu0 %v835
        %1913 = vmatpush1.msra.mxu0 %v834
        %1914 = vmatprep.subr.mxu0 %v837
        %1915 = vmatpush1.msra.mxu0 %v836
        %1916 = vmatprep.subr.mxu0 %v839
        %1917 = vmatpush1.msra.mxu0 %v838
        %1918 = vmatprep.subr.mxu0 %v841
        %1919 = vmatpush1.msra.mxu0 %v840
        %1920 = vmatprep.subr.mxu0 %v843
        %1921 = vmatpush1.msra.mxu0 %v842
        %1922 = vmatprep.subr.mxu0 %v845
        %1923 = vmatpush1.msra.mxu0 %v844
        %1924 = vmatprep.subr.mxu0 %v847
        %1925 = vmatpush1.msra.mxu0 %v846
        %1926 = vmatprep.subr.mxu0 %v849
        %1927 = vmatpush1.msra.mxu0 %v848
        %1928 = vmatprep.subr.mxu0 %v851
        %1929 = vmatpush1.msra.mxu0 %v850
        %1930 = vmatprep.subr.mxu0 %v853
        %1931 = vmatpush1.msra.mxu0 %v852
        %1932 = vmatprep.subr.mxu0 %v855
        %1933 = vmatpush1.msra.mxu0 %v854
        %1934 = vmatprep.subr.mxu0 %v857
        %1935 = vmatpush1.msra.mxu0 %v856
        %1936 = vmatprep.subr.mxu0 %v859
        %1937 = vmatpush1.msra.mxu0 %v858
        %1938 = vmatprep.subr.mxu0 %v861
        %1939 = vmatpush1.msra.mxu0 %v860
        %1940 = vmatprep.subr.mxu0 %v863
        %1941 = vmatpush1.msra.mxu0 %v862
        %1942 = vmatprep.subr.mxu0 0.0
        %1943 = vmatpush1.msra.mxu0 0.0
        %1944 = vmatprep.subr.mxu0 0.0
        %1945 = vmatpush1.msra.mxu0 0.0
        %1946 = vmatprep.subr.mxu0 0.0
        %1947 = vmatpush1.msra.mxu0 0.0
        %1948 = vmatprep.subr.mxu0 0.0
        %1949 = vmatpush1.msra.mxu0 0.0
        %1950 = vmatprep.subr.mxu0 0.0
        %1951 = vmatpush1.msra.mxu0 0.0
        %1952 = vmatprep.subr.mxu0 0.0
        %1953 = vmatpush1.msra.mxu0 0.0
        %1954 = vmatprep.subr.mxu0 0.0
        %1955 = vmatpush1.msra.mxu0 0.0
        %1956 = vmatprep.subr.mxu0 0.0
        %1957 = vmatpush1.msra.mxu0 0.0
        %1958 = vmatprep.subr.mxu0 0.0
        %1959 = vmatpush1.msra.mxu0 0.0
        %1960 = vmatprep.subr.mxu0 0.0
        %1961 = vmatpush1.msra.mxu0 0.0
        %1962 = vmatprep.subr.mxu0 0.0
        %1963 = vmatpush1.msra.mxu0 0.0
        %1964 = vmatprep.subr.mxu0 0.0
        %1965 = vmatpush1.msra.mxu0 0.0
        %1966 = vmatprep.subr.mxu0 0.0
        %1967 = vmatpush1.msra.mxu0 0.0
        %1968 = vmatprep.subr.mxu0 0.0
        %1969 = vmatpush1.msra.mxu0 0.0
        %1970 = vmatprep.subr.mxu0 0.0
        %1971 = vmatpush1.msra.mxu0 0.0
        %1972 = vmatprep.subr.mxu0 0.0
        %1973 = vmatpush1.msra.mxu0 0.0
        %1974 = vmatprep.mubr.f32.mxu0 0.0
        %1975 = vmatmul.mubr.f32.gmra.mrb[0].mxu0 %v1716
        %v1976 = vpop.f32.mrb[0].mxu0
        %v1977 = vadd.f32 %v1816, %v1976
        %v1978 = vpop.f32.mrb[0].mxu0
        %v1979 = vadd.f32 %v1818, %v1978
        %1980 = vmatprep.mubr.f32.mxu0 0.0
        %1981 = vmatmul.mubr.f32.gmra.mrb[0].mxu0 %v1717
        %v1982 = vpop.f32.mrb[0].mxu0
        %v1983 = vadd.f32 %v1822, %v1982
        %v1984 = vpop.f32.mrb[0].mxu0
        %v1985 = vadd.f32 %v1824, %v1984
        %1986 = vmatprep.mubr.f32.mxu0 0.0
        %1987 = vmatmul.mubr.f32.gmra.mrb[0].mxu0 %v1718
        %v1988 = vpop.f32.mrb[0].mxu0
        %v1989 = vadd.f32 %v1828, %v1988
        %v1990 = vpop.f32.mrb[0].mxu0
        %v1991 = vadd.f32 %v1830, %v1990
        %1992 = vmatprep.mubr.f32.mxu0 0.0
        %1993 = vmatmul.mubr.f32.gmra.mrb[0].mxu0 %v1719
        %v1994 = vpop.f32.mrb[0].mxu0
        %v1995 = vadd.f32 %v1834, %v1994
        %v1996 = vpop.f32.mrb[0].mxu0
        %v1997 = vadd.f32 %v1836, %v1996
        %1998 = vmatprep.mubr.f32.mxu0 0.0
        %1999 = vmatmul.mubr.f32.gmra.mrb[0].mxu0 %v1720
        %v2000 = vpop.f32.mrb[0].mxu0
        %v2001 = vadd.f32 %v1840, %v2000
        %v2002 = vpop.f32.mrb[0].mxu0
        %v2003 = vadd.f32 %v1842, %v2002
        %2004 = vmatprep.mubr.f32.mxu0 0.0
        %2005 = vmatmul.mubr.f32.gmra.mrb[0].mxu0 %v1721
        %v2006 = vpop.f32.mrb[0].mxu0
        %v2007 = vadd.f32 %v1846, %v2006
        %v2008 = vpop.f32.mrb[0].mxu0
        %v2009 = vadd.f32 %v1848, %v2008
        %2010 = vmatprep.mubr.f32.mxu0 0.0
        %2011 = vmatmul.mubr.f32.gmra.mrb[0].mxu0 %v1722
        %v2012 = vpop.f32.mrb[0].mxu0
        %v2013 = vadd.f32 %v1852, %v2012
        %v2014 = vpop.f32.mrb[0].mxu0
        %v2015 = vadd.f32 %v1854, %v2014
        %2016 = vmatprep.mubr.f32.mxu0 0.0
        %2017 = vmatmul.mubr.f32.gmra.mrb[0].mxu0 %v1723
        %v2018 = vpop.f32.mrb[0].mxu0
        %v2019 = vadd.f32 %v1858, %v2018
        %v2020 = vpop.f32.mrb[0].mxu0
        %v2021 = vadd.f32 %v1860, %v2020
        %2022 = vmatprep.mubr.f32.mxu0 0.0
        %2023 = vmatmul.mubr.f32.gmra.mrb[0].mxu0 %v1724
        %v2024 = vpop.f32.mrb[0].mxu0
        %v2025 = vadd.f32 %v1864, %v2024
        %v2026 = vpop.f32.mrb[0].mxu0
        %v2027 = vadd.f32 %v1866, %v2026
        %2028 = vmatprep.mubr.f32.mxu0 0.0
        %2029 = vmatmul.mubr.f32.gmra.mrb[0].mxu0 %v1725
        %v2030 = vpop.f32.mrb[0].mxu0
        %v2031 = vadd.f32 %v1870, %v2030
        %v2032 = vpop.f32.mrb[0].mxu0
        %v2033 = vadd.f32 %v1872, %v2032
        %2034 = vmatprep.mubr.f32.mxu0 0.0
        %2035 = vmatmul.mubr.f32.gmra.mrb[0].mxu0 %v1726
        %v2036 = vpop.f32.mrb[0].mxu0
        %v2037 = vadd.f32 %v1876, %v2036
        %v2038 = vpop.f32.mrb[0].mxu0
        %v2039 = vadd.f32 %v1878, %v2038
        %2040 = vmatprep.mubr.f32.mxu0 0.0
        %2041 = vmatmul.mubr.f32.gmra.mrb[0].mxu0 %v1727
        %v2042 = vpop.f32.mrb[0].mxu0
        %v2043 = vadd.f32 %v1882, %v2042
        %v2044 = vpop.f32.mrb[0].mxu0
        %v2045 = vadd.f32 %v1884, %v2044
        %2046 = vmatprep.mubr.f32.mxu0 0.0
        %2047 = vmatmul.mubr.f32.gmra.mrb[0].mxu0 %v1728
        %v2048 = vpop.f32.mrb[0].mxu0
        %v2049 = vadd.f32 %v1888, %v2048
        %v2050 = vpop.f32.mrb[0].mxu0
        %v2051 = vadd.f32 %v1890, %v2050
        %2052 = vmatprep.mubr.f32.mxu0 0.0
        %2053 = vmatmul.mubr.f32.gmra.mrb[0].mxu0 %v1729
        %v2054 = vpop.f32.mrb[0].mxu0
        %v2055 = vadd.f32 %v1894, %v2054
        %v2056 = vpop.f32.mrb[0].mxu0
        %v2057 = vadd.f32 %v1896, %v2056
        %2058 = vmatprep.mubr.f32.mxu0 0.0
        %2059 = vmatmul.mubr.f32.gmra.mrb[0].mxu0 %v1730
        %v2060 = vpop.f32.mrb[0].mxu0
        %v2061 = vadd.f32 %v1900, %v2060
        %v2062 = vpop.f32.mrb[0].mxu0
        %v2063 = vadd.f32 %v1902, %v2062
        %2064 = vmatprep.mubr.f32.mxu0 0.0
        %2065 = vmatmul.mubr.f32.gmra.mrb[0].mxu0 %v1731
        %v2066 = vpop.f32.mrb[0].mxu0
        %v2067 = vadd.f32 %v1906, %v2066
        %v2068 = vpop.f32.mrb[0].mxu0
        %v2069 = vadd.f32 %v1908, %v2068
        %2070 = vdwg.mxu0
        %s2071 = scalar_lea.vmem [#allocation5], 640
        %v2072 = vld [vmem:[%s2071] sm:$0xff]
        %v2073 = vld [vmem:[%s2071 + $0x8] sm:$0xff]
        %v2074 = vld [vmem:[%s2071 + $0x10] sm:$0xff]
        %v2075 = vld [vmem:[%s2071 + $0x18] sm:$0xff]
        %v2076 = vld [vmem:[%s2071 + $0x20] sm:$0xff]
        %v2077 = vld [vmem:[%s2071 + $0x28] sm:$0xff]
        %v2078 = vld [vmem:[%s2071 + $0x30] sm:$0xff]
        %v2079 = vld [vmem:[%s2071 + $0x38] sm:$0xff]
        %v2080 = vld [vmem:[%s2071 + $0x40] sm:$0xff]
        %v2081 = vld [vmem:[%s2071 + $0x48] sm:$0xff]
        %v2082 = vld [vmem:[%s2071 + $0x50] sm:$0xff]
        %v2083 = vld [vmem:[%s2071 + $0x58] sm:$0xff]
        %v2084 = vld [vmem:[%s2071 + $0x60] sm:$0xff]
        %v2085 = vld [vmem:[%s2071 + $0x68] sm:$0xff]
        %v2086 = vld [vmem:[%s2071 + $0x70] sm:$0xff]
        %v2087 = vld [vmem:[%s2071 + $0x78] sm:$0xff]
        %2088 = vmatprep.subr.mxu0 %v976
        %2089 = vmatpush1.msra.mxu0 %v975
        %2090 = vmatprep.subr.mxu0 %v978
        %2091 = vmatpush1.msra.mxu0 %v977
        %2092 = vmatprep.subr.mxu0 %v980
        %2093 = vmatpush1.msra.mxu0 %v979
        %2094 = vmatprep.subr.mxu0 %v982
        %2095 = vmatpush1.msra.mxu0 %v981
        %2096 = vmatprep.subr.mxu0 %v984
        %2097 = vmatpush1.msra.mxu0 %v983
        %2098 = vmatprep.subr.mxu0 %v986
        %2099 = vmatpush1.msra.mxu0 %v985
        %2100 = vmatprep.subr.mxu0 %v988
        %2101 = vmatpush1.msra.mxu0 %v987
        %2102 = vmatprep.subr.mxu0 %v990
        %2103 = vmatpush1.msra.mxu0 %v989
        %2104 = vmatprep.subr.mxu0 %v992
        %2105 = vmatpush1.msra.mxu0 %v991
        %2106 = vmatprep.subr.mxu0 %v994
        %2107 = vmatpush1.msra.mxu0 %v993
        %2108 = vmatprep.subr.mxu0 %v996
        %2109 = vmatpush1.msra.mxu0 %v995
        %2110 = vmatprep.subr.mxu0 %v998
        %2111 = vmatpush1.msra.mxu0 %v997
        %2112 = vmatprep.subr.mxu0 %v1000
        %2113 = vmatpush1.msra.mxu0 %v999
        %2114 = vmatprep.subr.mxu0 %v1002
        %2115 = vmatpush1.msra.mxu0 %v1001
        %2116 = vmatprep.subr.mxu0 %v1004
        %2117 = vmatpush1.msra.mxu0 %v1003
        %2118 = vmatprep.subr.mxu0 %v1006
        %2119 = vmatpush1.msra.mxu0 %v1005
        %2120 = vmatprep.subr.mxu0 0.0
        %2121 = vmatpush1.msra.mxu0 0.0
        %2122 = vmatprep.subr.mxu0 0.0
        %2123 = vmatpush1.msra.mxu0 0.0
        %2124 = vmatprep.subr.mxu0 0.0
        %2125 = vmatpush1.msra.mxu0 0.0
        %2126 = vmatprep.subr.mxu0 0.0
        %2127 = vmatpush1.msra.mxu0 0.0
        %2128 = vmatprep.subr.mxu0 0.0
        %2129 = vmatpush1.msra.mxu0 0.0
        %2130 = vmatprep.subr.mxu0 0.0
        %2131 = vmatpush1.msra.mxu0 0.0
        %2132 = vmatprep.subr.mxu0 0.0
        %2133 = vmatpush1.msra.mxu0 0.0
        %2134 = vmatprep.subr.mxu0 0.0
        %2135 = vmatpush1.msra.mxu0 0.0
        %2136 = vmatprep.subr.mxu0 0.0
        %2137 = vmatpush1.msra.mxu0 0.0
        %2138 = vmatprep.subr.mxu0 0.0
        %2139 = vmatpush1.msra.mxu0 0.0
        %2140 = vmatprep.subr.mxu0 0.0
        %2141 = vmatpush1.msra.mxu0 0.0
        %2142 = vmatprep.subr.mxu0 0.0
        %2143 = vmatpush1.msra.mxu0 0.0
        %2144 = vmatprep.subr.mxu0 0.0
        %2145 = vmatpush1.msra.mxu0 0.0
        %2146 = vmatprep.subr.mxu0 0.0
        %2147 = vmatpush1.msra.mxu0 0.0
        %2148 = vmatprep.subr.mxu0 0.0
        %2149 = vmatpush1.msra.mxu0 0.0
        %2150 = vmatprep.subr.mxu0 0.0
        %2151 = vmatpush1.msra.mxu0 0.0
        %2152 = vmatprep.mubr.f32.mxu0 0.0
        %2153 = vmatmul.mubr.f32.gmra.mrb[0].mxu0 %v2072
        %v2154 = vpop.f32.mrb[0].mxu0
        %v2155 = vadd.f32 0.0, %v2154
        %v2156 = vpop.f32.mrb[0].mxu0
        %v2157 = vadd.f32 0.0, %v2156
        %2158 = vmatprep.mubr.f32.mxu0 0.0
        %2159 = vmatmul.mubr.f32.gmra.mrb[0].mxu0 %v2073
        %v2160 = vpop.f32.mrb[0].mxu0
        %v2161 = vadd.f32 0.0, %v2160
        %v2162 = vpop.f32.mrb[0].mxu0
        %v2163 = vadd.f32 0.0, %v2162
        %2164 = vmatprep.mubr.f32.mxu0 0.0
        %2165 = vmatmul.mubr.f32.gmra.mrb[0].mxu0 %v2074
        %v2166 = vpop.f32.mrb[0].mxu0
        %v2167 = vadd.f32 0.0, %v2166
        %v2168 = vpop.f32.mrb[0].mxu0
        %v2169 = vadd.f32 0.0, %v2168
        %2170 = vmatprep.mubr.f32.mxu0 0.0
        %2171 = vmatmul.mubr.f32.gmra.mrb[0].mxu0 %v2075
        %v2172 = vpop.f32.mrb[0].mxu0
        %v2173 = vadd.f32 0.0, %v2172
        %v2174 = vpop.f32.mrb[0].mxu0
        %v2175 = vadd.f32 0.0, %v2174
        %2176 = vmatprep.mubr.f32.mxu0 0.0
        %2177 = vmatmul.mubr.f32.gmra.mrb[0].mxu0 %v2076
        %v2178 = vpop.f32.mrb[0].mxu0
        %v2179 = vadd.f32 0.0, %v2178
        %v2180 = vpop.f32.mrb[0].mxu0
        %v2181 = vadd.f32 0.0, %v2180
        %2182 = vmatprep.mubr.f32.mxu0 0.0
        %2183 = vmatmul.mubr.f32.gmra.mrb[0].mxu0 %v2077
        %v2184 = vpop.f32.mrb[0].mxu0
        %v2185 = vadd.f32 0.0, %v2184
        %v2186 = vpop.f32.mrb[0].mxu0
        %v2187 = vadd.f32 0.0, %v2186
        %2188 = vmatprep.mubr.f32.mxu0 0.0
        %2189 = vmatmul.mubr.f32.gmra.mrb[0].mxu0 %v2078
        %v2190 = vpop.f32.mrb[0].mxu0
        %v2191 = vadd.f32 0.0, %v2190
        %v2192 = vpop.f32.mrb[0].mxu0
        %v2193 = vadd.f32 0.0, %v2192
        %2194 = vmatprep.mubr.f32.mxu0 0.0
        %2195 = vmatmul.mubr.f32.gmra.mrb[0].mxu0 %v2079
        %v2196 = vpop.f32.mrb[0].mxu0
        %v2197 = vadd.f32 0.0, %v2196
        %v2198 = vpop.f32.mrb[0].mxu0
        %v2199 = vadd.f32 0.0, %v2198
        %2200 = vmatprep.mubr.f32.mxu0 0.0
        %2201 = vmatmul.mubr.f32.gmra.mrb[0].mxu0 %v2080
        %v2202 = vpop.f32.mrb[0].mxu0
        %v2203 = vadd.f32 0.0, %v2202
        %v2204 = vpop.f32.mrb[0].mxu0
        %v2205 = vadd.f32 0.0, %v2204
        %2206 = vmatprep.mubr.f32.mxu0 0.0
        %2207 = vmatmul.mubr.f32.gmra.mrb[0].mxu0 %v2081
        %v2208 = vpop.f32.mrb[0].mxu0
        %v2209 = vadd.f32 0.0, %v2208
        %v2210 = vpop.f32.mrb[0].mxu0
        %v2211 = vadd.f32 0.0, %v2210
        %2212 = vmatprep.mubr.f32.mxu0 0.0
        %2213 = vmatmul.mubr.f32.gmra.mrb[0].mxu0 %v2082
        %v2214 = vpop.f32.mrb[0].mxu0
        %v2215 = vadd.f32 0.0, %v2214
        %v2216 = vpop.f32.mrb[0].mxu0
        %v2217 = vadd.f32 0.0, %v2216
        %2218 = vmatprep.mubr.f32.mxu0 0.0
        %2219 = vmatmul.mubr.f32.gmra.mrb[0].mxu0 %v2083
        %v2220 = vpop.f32.mrb[0].mxu0
        %v2221 = vadd.f32 0.0, %v2220
        %v2222 = vpop.f32.mrb[0].mxu0
        %v2223 = vadd.f32 0.0, %v2222
        %2224 = vmatprep.mubr.f32.mxu0 0.0
        %2225 = vmatmul.mubr.f32.gmra.mrb[0].mxu0 %v2084
        %v2226 = vpop.f32.mrb[0].mxu0
        %v2227 = vadd.f32 0.0, %v2226
        %v2228 = vpop.f32.mrb[0].mxu0
        %v2229 = vadd.f32 0.0, %v2228
        %2230 = vmatprep.mubr.f32.mxu0 0.0
        %2231 = vmatmul.mubr.f32.gmra.mrb[0].mxu0 %v2085
        %v2232 = vpop.f32.mrb[0].mxu0
        %v2233 = vadd.f32 0.0, %v2232
        %v2234 = vpop.f32.mrb[0].mxu0
        %v2235 = vadd.f32 0.0, %v2234
        %2236 = vmatprep.mubr.f32.mxu0 0.0
        %2237 = vmatmul.mubr.f32.gmra.mrb[0].mxu0 %v2086
        %v2238 = vpop.f32.mrb[0].mxu0
        %v2239 = vadd.f32 0.0, %v2238
        %v2240 = vpop.f32.mrb[0].mxu0
        %v2241 = vadd.f32 0.0, %v2240
        %2242 = vmatprep.mubr.f32.mxu0 0.0
        %2243 = vmatmul.mubr.f32.gmra.mrb[0].mxu0 %v2087
        %v2244 = vpop.f32.mrb[0].mxu0
        %v2245 = vadd.f32 0.0, %v2244
        %v2246 = vpop.f32.mrb[0].mxu0
        %v2247 = vadd.f32 0.0, %v2246
        %2248 = vdwg.mxu0
        %v2249 = vadd.f32 %v1977, %v2155
        %v2250 = vadd.f32 %v1979, %v2157
        %v2251 = vadd.f32 %v1983, %v2161
        %v2252 = vadd.f32 %v1985, %v2163
        %v2253 = vadd.f32 %v1989, %v2167
        %v2254 = vadd.f32 %v1991, %v2169
        %v2255 = vadd.f32 %v1995, %v2173
        %v2256 = vadd.f32 %v1997, %v2175
        %v2257 = vadd.f32 %v2001, %v2179
        %v2258 = vadd.f32 %v2003, %v2181
        %v2259 = vadd.f32 %v2007, %v2185
        %v2260 = vadd.f32 %v2009, %v2187
        %v2261 = vadd.f32 %v2013, %v2191
        %v2262 = vadd.f32 %v2015, %v2193
        %v2263 = vadd.f32 %v2019, %v2197
        %v2264 = vadd.f32 %v2021, %v2199
        %v2265 = vadd.f32 %v2025, %v2203
        %v2266 = vadd.f32 %v2027, %v2205
        %v2267 = vadd.f32 %v2031, %v2209
        %v2268 = vadd.f32 %v2033, %v2211
        %v2269 = vadd.f32 %v2037, %v2215
        %v2270 = vadd.f32 %v2039, %v2217
        %v2271 = vadd.f32 %v2043, %v2221
        %v2272 = vadd.f32 %v2045, %v2223
        %v2273 = vadd.f32 %v2049, %v2227
        %v2274 = vadd.f32 %v2051, %v2229
        %v2275 = vadd.f32 %v2055, %v2233
        %v2276 = vadd.f32 %v2057, %v2235
        %v2277 = vadd.f32 %v2061, %v2239
        %v2278 = vadd.f32 %v2063, %v2241
        %v2279 = vadd.f32 %v2067, %v2245
        %v2280 = vadd.f32 %v2069, %v2247
        %v2281 = vadd.f32 %v1683, %v2249
        %v2282 = vadd.f32 %v1684, %v2250
        %v2283 = vadd.f32 %v1685, %v2251
        %v2284 = vadd.f32 %v1686, %v2252
        %v2285 = vadd.f32 %v1687, %v2253
        %v2286 = vadd.f32 %v1688, %v2254
        %v2287 = vadd.f32 %v1689, %v2255
        %v2288 = vadd.f32 %v1690, %v2256
        %v2289 = vadd.f32 %v1691, %v2257
        %v2290 = vadd.f32 %v1692, %v2258
        %v2291 = vadd.f32 %v1693, %v2259
        %v2292 = vadd.f32 %v1694, %v2260
        %v2293 = vadd.f32 %v1695, %v2261
        %v2294 = vadd.f32 %v1696, %v2262
        %v2295 = vadd.f32 %v1697, %v2263
        %v2296 = vadd.f32 %v1698, %v2264
        %v2297 = vadd.f32 %v1699, %v2265
        %v2298 = vadd.f32 %v1700, %v2266
        %v2299 = vadd.f32 %v1701, %v2267
        %v2300 = vadd.f32 %v1702, %v2268
        %v2301 = vadd.f32 %v1703, %v2269
        %v2302 = vadd.f32 %v1704, %v2270
        %v2303 = vadd.f32 %v1705, %v2271
        %v2304 = vadd.f32 %v1706, %v2272
        %v2305 = vadd.f32 %v1707, %v2273
        %v2306 = vadd.f32 %v1708, %v2274
        %v2307 = vadd.f32 %v1709, %v2275
        %v2308 = vadd.f32 %v1710, %v2276
        %v2309 = vadd.f32 %v1711, %v2277
        %v2310 = vadd.f32 %v1712, %v2278
        %v2311 = vadd.f32 %v1713, %v2279
        %v2312 = vadd.f32 %v1714, %v2280
        %s2313 = scalar_lea.vmem [#allocation5], 768
        %v2314 = vld [vmem:[%s2313] sm:$0xff]
        %v2315 = vld [vmem:[%s2313 + $0x8] sm:$0xff]
        %v2316 = vld [vmem:[%s2313 + $0x10] sm:$0xff]
        %v2317 = vld [vmem:[%s2313 + $0x18] sm:$0xff]
        %v2318 = vld [vmem:[%s2313 + $0x20] sm:$0xff]
        %v2319 = vld [vmem:[%s2313 + $0x28] sm:$0xff]
        %v2320 = vld [vmem:[%s2313 + $0x30] sm:$0xff]
        %v2321 = vld [vmem:[%s2313 + $0x38] sm:$0xff]
        %v2322 = vld [vmem:[%s2313 + $0x40] sm:$0xff]
        %v2323 = vld [vmem:[%s2313 + $0x48] sm:$0xff]
        %v2324 = vld [vmem:[%s2313 + $0x50] sm:$0xff]
        %v2325 = vld [vmem:[%s2313 + $0x58] sm:$0xff]
        %v2326 = vld [vmem:[%s2313 + $0x60] sm:$0xff]
        %v2327 = vld [vmem:[%s2313 + $0x68] sm:$0xff]
        %v2328 = vld [vmem:[%s2313 + $0x70] sm:$0xff]
        %v2329 = vld [vmem:[%s2313 + $0x78] sm:$0xff]
        %s2330 = scalar_lea.vmem [#allocation5], 896
        %v2331 = vld [vmem:[%s2330] sm:$0xff]
        %v2332 = vld [vmem:[%s2330 + $0x8] sm:$0xff]
        %v2333 = vld [vmem:[%s2330 + $0x10] sm:$0xff]
        %v2334 = vld [vmem:[%s2330 + $0x18] sm:$0xff]
        %v2335 = vld [vmem:[%s2330 + $0x20] sm:$0xff]
        %v2336 = vld [vmem:[%s2330 + $0x28] sm:$0xff]
        %v2337 = vld [vmem:[%s2330 + $0x30] sm:$0xff]
        %v2338 = vld [vmem:[%s2330 + $0x38] sm:$0xff]
        %v2339 = vld [vmem:[%s2330 + $0x40] sm:$0xff]
        %v2340 = vld [vmem:[%s2330 + $0x48] sm:$0xff]
        %v2341 = vld [vmem:[%s2330 + $0x50] sm:$0xff]
        %v2342 = vld [vmem:[%s2330 + $0x58] sm:$0xff]
        %v2343 = vld [vmem:[%s2330 + $0x60] sm:$0xff]
        %v2344 = vld [vmem:[%s2330 + $0x68] sm:$0xff]
        %v2345 = vld [vmem:[%s2330 + $0x70] sm:$0xff]
        %v2346 = vld [vmem:[%s2330 + $0x78] sm:$0xff]
        %2347 = vmatprep.subr.mxu0 %v688
        %2348 = vmatpush1.msra.mxu0 %v687
        %2349 = vmatprep.subr.mxu0 %v690
        %2350 = vmatpush1.msra.mxu0 %v689
        %2351 = vmatprep.subr.mxu0 %v692
        %2352 = vmatpush1.msra.mxu0 %v691
        %2353 = vmatprep.subr.mxu0 %v694
        %2354 = vmatpush1.msra.mxu0 %v693
        %2355 = vmatprep.subr.mxu0 %v696
        %2356 = vmatpush1.msra.mxu0 %v695
        %2357 = vmatprep.subr.mxu0 %v698
        %2358 = vmatpush1.msra.mxu0 %v697
        %2359 = vmatprep.subr.mxu0 %v700
        %2360 = vmatpush1.msra.mxu0 %v699
        %2361 = vmatprep.subr.mxu0 %v702
        %2362 = vmatpush1.msra.mxu0 %v701
        %2363 = vmatprep.subr.mxu0 %v704
        %2364 = vmatpush1.msra.mxu0 %v703
        %2365 = vmatprep.subr.mxu0 %v706
        %2366 = vmatpush1.msra.mxu0 %v705
        %2367 = vmatprep.subr.mxu0 %v708
        %2368 = vmatpush1.msra.mxu0 %v707
        %2369 = vmatprep.subr.mxu0 %v710
        %2370 = vmatpush1.msra.mxu0 %v709
        %2371 = vmatprep.subr.mxu0 %v712
        %2372 = vmatpush1.msra.mxu0 %v711
        %2373 = vmatprep.subr.mxu0 %v714
        %2374 = vmatpush1.msra.mxu0 %v713
        %2375 = vmatprep.subr.mxu0 %v716
        %2376 = vmatpush1.msra.mxu0 %v715
        %2377 = vmatprep.subr.mxu0 %v718
        %2378 = vmatpush1.msra.mxu0 %v717
        %2379 = vmatprep.subr.mxu0 0.0
        %2380 = vmatpush1.msra.mxu0 0.0
        %2381 = vmatprep.subr.mxu0 0.0
        %2382 = vmatpush1.msra.mxu0 0.0
        %2383 = vmatprep.subr.mxu0 0.0
        %2384 = vmatpush1.msra.mxu0 0.0
        %2385 = vmatprep.subr.mxu0 0.0
        %2386 = vmatpush1.msra.mxu0 0.0
        %2387 = vmatprep.subr.mxu0 0.0
        %2388 = vmatpush1.msra.mxu0 0.0
        %2389 = vmatprep.subr.mxu0 0.0
        %2390 = vmatpush1.msra.mxu0 0.0
        %2391 = vmatprep.subr.mxu0 0.0
        %2392 = vmatpush1.msra.mxu0 0.0
        %2393 = vmatprep.subr.mxu0 0.0
        %2394 = vmatpush1.msra.mxu0 0.0
        %2395 = vmatprep.subr.mxu0 0.0
        %2396 = vmatpush1.msra.mxu0 0.0
        %2397 = vmatprep.subr.mxu0 0.0
        %2398 = vmatpush1.msra.mxu0 0.0
        %2399 = vmatprep.subr.mxu0 0.0
        %2400 = vmatpush1.msra.mxu0 0.0
        %2401 = vmatprep.subr.mxu0 0.0
        %2402 = vmatpush1.msra.mxu0 0.0
        %2403 = vmatprep.subr.mxu0 0.0
        %2404 = vmatpush1.msra.mxu0 0.0
        %2405 = vmatprep.subr.mxu0 0.0
        %2406 = vmatpush1.msra.mxu0 0.0
        %2407 = vmatprep.subr.mxu0 0.0
        %2408 = vmatpush1.msra.mxu0 0.0
        %2409 = vmatprep.subr.mxu0 0.0
        %2410 = vmatpush1.msra.mxu0 0.0
        %2411 = vmatprep.mubr.f32.mxu0 0.0
        %2412 = vmatmul.mubr.f32.gmra.mrb[0].mxu0 %v2331
        %v2413 = vpop.f32.mrb[0].mxu0
        %v2414 = vadd.f32 0.0, %v2413
        %v2415 = vpop.f32.mrb[0].mxu0
        %v2416 = vadd.f32 0.0, %v2415
        %2417 = vmatprep.mubr.f32.mxu0 0.0
        %2418 = vmatmul.mubr.f32.gmra.mrb[0].mxu0 %v2332
        %v2419 = vpop.f32.mrb[0].mxu0
        %v2420 = vadd.f32 0.0, %v2419
        %v2421 = vpop.f32.mrb[0].mxu0
        %v2422 = vadd.f32 0.0, %v2421
        %2423 = vmatprep.mubr.f32.mxu0 0.0
        %2424 = vmatmul.mubr.f32.gmra.mrb[0].mxu0 %v2333
        %v2425 = vpop.f32.mrb[0].mxu0
        %v2426 = vadd.f32 0.0, %v2425
        %v2427 = vpop.f32.mrb[0].mxu0
        %v2428 = vadd.f32 0.0, %v2427
        %2429 = vmatprep.mubr.f32.mxu0 0.0
        %2430 = vmatmul.mubr.f32.gmra.mrb[0].mxu0 %v2334
        %v2431 = vpop.f32.mrb[0].mxu0
        %v2432 = vadd.f32 0.0, %v2431
        %v2433 = vpop.f32.mrb[0].mxu0
        %v2434 = vadd.f32 0.0, %v2433
        %2435 = vmatprep.mubr.f32.mxu0 0.0
        %2436 = vmatmul.mubr.f32.gmra.mrb[0].mxu0 %v2335
        %v2437 = vpop.f32.mrb[0].mxu0
        %v2438 = vadd.f32 0.0, %v2437
        %v2439 = vpop.f32.mrb[0].mxu0
        %v2440 = vadd.f32 0.0, %v2439
        %2441 = vmatprep.mubr.f32.mxu0 0.0
        %2442 = vmatmul.mubr.f32.gmra.mrb[0].mxu0 %v2336
        %v2443 = vpop.f32.mrb[0].mxu0
        %v2444 = vadd.f32 0.0, %v2443
        %v2445 = vpop.f32.mrb[0].mxu0
        %v2446 = vadd.f32 0.0, %v2445
        %2447 = vmatprep.mubr.f32.mxu0 0.0
        %2448 = vmatmul.mubr.f32.gmra.mrb[0].mxu0 %v2337
        %v2449 = vpop.f32.mrb[0].mxu0
        %v2450 = vadd.f32 0.0, %v2449
        %v2451 = vpop.f32.mrb[0].mxu0
        %v2452 = vadd.f32 0.0, %v2451
        %2453 = vmatprep.mubr.f32.mxu0 0.0
        %2454 = vmatmul.mubr.f32.gmra.mrb[0].mxu0 %v2338
        %v2455 = vpop.f32.mrb[0].mxu0
        %v2456 = vadd.f32 0.0, %v2455
        %v2457 = vpop.f32.mrb[0].mxu0
        %v2458 = vadd.f32 0.0, %v2457
        %2459 = vmatprep.mubr.f32.mxu0 0.0
        %2460 = vmatmul.mubr.f32.gmra.mrb[0].mxu0 %v2339
        %v2461 = vpop.f32.mrb[0].mxu0
        %v2462 = vadd.f32 0.0, %v2461
        %v2463 = vpop.f32.mrb[0].mxu0
        %v2464 = vadd.f32 0.0, %v2463
        %2465 = vmatprep.mubr.f32.mxu0 0.0
        %2466 = vmatmul.mubr.f32.gmra.mrb[0].mxu0 %v2340
        %v2467 = vpop.f32.mrb[0].mxu0
        %v2468 = vadd.f32 0.0, %v2467
        %v2469 = vpop.f32.mrb[0].mxu0
        %v2470 = vadd.f32 0.0, %v2469
        %2471 = vmatprep.mubr.f32.mxu0 0.0
        %2472 = vmatmul.mubr.f32.gmra.mrb[0].mxu0 %v2341
        %v2473 = vpop.f32.mrb[0].mxu0
        %v2474 = vadd.f32 0.0, %v2473
        %v2475 = vpop.f32.mrb[0].mxu0
        %v2476 = vadd.f32 0.0, %v2475
        %2477 = vmatprep.mubr.f32.mxu0 0.0
        %2478 = vmatmul.mubr.f32.gmra.mrb[0].mxu0 %v2342
        %v2479 = vpop.f32.mrb[0].mxu0
        %v2480 = vadd.f32 0.0, %v2479
        %v2481 = vpop.f32.mrb[0].mxu0
        %v2482 = vadd.f32 0.0, %v2481
        %2483 = vmatprep.mubr.f32.mxu0 0.0
        %2484 = vmatmul.mubr.f32.gmra.mrb[0].mxu0 %v2343
        %v2485 = vpop.f32.mrb[0].mxu0
        %v2486 = vadd.f32 0.0, %v2485
        %v2487 = vpop.f32.mrb[0].mxu0
        %v2488 = vadd.f32 0.0, %v2487
        %2489 = vmatprep.mubr.f32.mxu0 0.0
        %2490 = vmatmul.mubr.f32.gmra.mrb[0].mxu0 %v2344
        %v2491 = vpop.f32.mrb[0].mxu0
        %v2492 = vadd.f32 0.0, %v2491
        %v2493 = vpop.f32.mrb[0].mxu0
        %v2494 = vadd.f32 0.0, %v2493
        %2495 = vmatprep.mubr.f32.mxu0 0.0
        %2496 = vmatmul.mubr.f32.gmra.mrb[0].mxu0 %v2345
        %v2497 = vpop.f32.mrb[0].mxu0
        %v2498 = vadd.f32 0.0, %v2497
        %v2499 = vpop.f32.mrb[0].mxu0
        %v2500 = vadd.f32 0.0, %v2499
        %2501 = vmatprep.mubr.f32.mxu0 0.0
        %2502 = vmatmul.mubr.f32.gmra.mrb[0].mxu0 %v2346
        %v2503 = vpop.f32.mrb[0].mxu0
        %v2504 = vadd.f32 0.0, %v2503
        %v2505 = vpop.f32.mrb[0].mxu0
        %v2506 = vadd.f32 0.0, %v2505
        %2507 = vdwg.mxu0
        %2508 = vmatprep.subr.mxu0 %v833
        %2509 = vmatpush1.msra.mxu0 %v832
        %2510 = vmatprep.subr.mxu0 %v835
        %2511 = vmatpush1.msra.mxu0 %v834
        %2512 = vmatprep.subr.mxu0 %v837
        %2513 = vmatpush1.msra.mxu0 %v836
        %2514 = vmatprep.subr.mxu0 %v839
        %2515 = vmatpush1.msra.mxu0 %v838
        %2516 = vmatprep.subr.mxu0 %v841
        %2517 = vmatpush1.msra.mxu0 %v840
        %2518 = vmatprep.subr.mxu0 %v843
        %2519 = vmatpush1.msra.mxu0 %v842
        %2520 = vmatprep.subr.mxu0 %v845
        %2521 = vmatpush1.msra.mxu0 %v844
        %2522 = vmatprep.subr.mxu0 %v847
        %2523 = vmatpush1.msra.mxu0 %v846
        %2524 = vmatprep.subr.mxu0 %v849
        %2525 = vmatpush1.msra.mxu0 %v848
        %2526 = vmatprep.subr.mxu0 %v851
        %2527 = vmatpush1.msra.mxu0 %v850
        %2528 = vmatprep.subr.mxu0 %v853
        %2529 = vmatpush1.msra.mxu0 %v852
        %2530 = vmatprep.subr.mxu0 %v855
        %2531 = vmatpush1.msra.mxu0 %v854
        %2532 = vmatprep.subr.mxu0 %v857
        %2533 = vmatpush1.msra.mxu0 %v856
        %2534 = vmatprep.subr.mxu0 %v859
        %2535 = vmatpush1.msra.mxu0 %v858
        %2536 = vmatprep.subr.mxu0 %v861
        %2537 = vmatpush1.msra.mxu0 %v860
        %2538 = vmatprep.subr.mxu0 %v863
        %2539 = vmatpush1.msra.mxu0 %v862
        %2540 = vmatprep.subr.mxu0 0.0
        %2541 = vmatpush1.msra.mxu0 0.0
        %2542 = vmatprep.subr.mxu0 0.0
        %2543 = vmatpush1.msra.mxu0 0.0
        %2544 = vmatprep.subr.mxu0 0.0
        %2545 = vmatpush1.msra.mxu0 0.0
        %2546 = vmatprep.subr.mxu0 0.0
        %2547 = vmatpush1.msra.mxu0 0.0
        %2548 = vmatprep.subr.mxu0 0.0
        %2549 = vmatpush1.msra.mxu0 0.0
        %2550 = vmatprep.subr.mxu0 0.0
        %2551 = vmatpush1.msra.mxu0 0.0
        %2552 = vmatprep.subr.mxu0 0.0
        %2553 = vmatpush1.msra.mxu0 0.0
        %2554 = vmatprep.subr.mxu0 0.0
        %2555 = vmatpush1.msra.mxu0 0.0
        %2556 = vmatprep.subr.mxu0 0.0
        %2557 = vmatpush1.msra.mxu0 0.0
        %2558 = vmatprep.subr.mxu0 0.0
        %2559 = vmatpush1.msra.mxu0 0.0
        %2560 = vmatprep.subr.mxu0 0.0
        %2561 = vmatpush1.msra.mxu0 0.0
        %2562 = vmatprep.subr.mxu0 0.0
        %2563 = vmatpush1.msra.mxu0 0.0
        %2564 = vmatprep.subr.mxu0 0.0
        %2565 = vmatpush1.msra.mxu0 0.0
        %2566 = vmatprep.subr.mxu0 0.0
        %2567 = vmatpush1.msra.mxu0 0.0
        %2568 = vmatprep.subr.mxu0 0.0
        %2569 = vmatpush1.msra.mxu0 0.0
        %2570 = vmatprep.subr.mxu0 0.0
        %2571 = vmatpush1.msra.mxu0 0.0
        %2572 = vmatprep.mubr.f32.mxu0 0.0
        %2573 = vmatmul.mubr.f32.gmra.mrb[0].mxu0 %v2314
        %v2574 = vpop.f32.mrb[0].mxu0
        %v2575 = vadd.f32 %v2414, %v2574
        %v2576 = vpop.f32.mrb[0].mxu0
        %v2577 = vadd.f32 %v2416, %v2576
        %2578 = vmatprep.mubr.f32.mxu0 0.0
        %2579 = vmatmul.mubr.f32.gmra.mrb[0].mxu0 %v2315
        %v2580 = vpop.f32.mrb[0].mxu0
        %v2581 = vadd.f32 %v2420, %v2580
        %v2582 = vpop.f32.mrb[0].mxu0
        %v2583 = vadd.f32 %v2422, %v2582
        %2584 = vmatprep.mubr.f32.mxu0 0.0
        %2585 = vmatmul.mubr.f32.gmra.mrb[0].mxu0 %v2316
        %v2586 = vpop.f32.mrb[0].mxu0
        %v2587 = vadd.f32 %v2426, %v2586
        %v2588 = vpop.f32.mrb[0].mxu0
        %v2589 = vadd.f32 %v2428, %v2588
        %2590 = vmatprep.mubr.f32.mxu0 0.0
        %2591 = vmatmul.mubr.f32.gmra.mrb[0].mxu0 %v2317
        %v2592 = vpop.f32.mrb[0].mxu0
        %v2593 = vadd.f32 %v2432, %v2592
        %v2594 = vpop.f32.mrb[0].mxu0
        %v2595 = vadd.f32 %v2434, %v2594
        %2596 = vmatprep.mubr.f32.mxu0 0.0
        %2597 = vmatmul.mubr.f32.gmra.mrb[0].mxu0 %v2318
        %v2598 = vpop.f32.mrb[0].mxu0
        %v2599 = vadd.f32 %v2438, %v2598
        %v2600 = vpop.f32.mrb[0].mxu0
        %v2601 = vadd.f32 %v2440, %v2600
        %2602 = vmatprep.mubr.f32.mxu0 0.0
        %2603 = vmatmul.mubr.f32.gmra.mrb[0].mxu0 %v2319
        %v2604 = vpop.f32.mrb[0].mxu0
        %v2605 = vadd.f32 %v2444, %v2604
        %v2606 = vpop.f32.mrb[0].mxu0
        %v2607 = vadd.f32 %v2446, %v2606
        %2608 = vmatprep.mubr.f32.mxu0 0.0
        %2609 = vmatmul.mubr.f32.gmra.mrb[0].mxu0 %v2320
        %v2610 = vpop.f32.mrb[0].mxu0
        %v2611 = vadd.f32 %v2450, %v2610
        %v2612 = vpop.f32.mrb[0].mxu0
        %v2613 = vadd.f32 %v2452, %v2612
        %2614 = vmatprep.mubr.f32.mxu0 0.0
        %2615 = vmatmul.mubr.f32.gmra.mrb[0].mxu0 %v2321
        %v2616 = vpop.f32.mrb[0].mxu0
        %v2617 = vadd.f32 %v2456, %v2616
        %v2618 = vpop.f32.mrb[0].mxu0
        %v2619 = vadd.f32 %v2458, %v2618
        %2620 = vmatprep.mubr.f32.mxu0 0.0
        %2621 = vmatmul.mubr.f32.gmra.mrb[0].mxu0 %v2322
        %v2622 = vpop.f32.mrb[0].mxu0
        %v2623 = vadd.f32 %v2462, %v2622
        %v2624 = vpop.f32.mrb[0].mxu0
        %v2625 = vadd.f32 %v2464, %v2624
        %2626 = vmatprep.mubr.f32.mxu0 0.0
        %2627 = vmatmul.mubr.f32.gmra.mrb[0].mxu0 %v2323
        %v2628 = vpop.f32.mrb[0].mxu0
        %v2629 = vadd.f32 %v2468, %v2628
        %v2630 = vpop.f32.mrb[0].mxu0
        %v2631 = vadd.f32 %v2470, %v2630
        %2632 = vmatprep.mubr.f32.mxu0 0.0
        %2633 = vmatmul.mubr.f32.gmra.mrb[0].mxu0 %v2324
        %v2634 = vpop.f32.mrb[0].mxu0
        %v2635 = vadd.f32 %v2474, %v2634
        %v2636 = vpop.f32.mrb[0].mxu0
        %v2637 = vadd.f32 %v2476, %v2636
        %2638 = vmatprep.mubr.f32.mxu0 0.0
        %2639 = vmatmul.mubr.f32.gmra.mrb[0].mxu0 %v2325
        %v2640 = vpop.f32.mrb[0].mxu0
        %v2641 = vadd.f32 %v2480, %v2640
        %v2642 = vpop.f32.mrb[0].mxu0
        %v2643 = vadd.f32 %v2482, %v2642
        %2644 = vmatprep.mubr.f32.mxu0 0.0
        %2645 = vmatmul.mubr.f32.gmra.mrb[0].mxu0 %v2326
        %v2646 = vpop.f32.mrb[0].mxu0
        %v2647 = vadd.f32 %v2486, %v2646
        %v2648 = vpop.f32.mrb[0].mxu0
        %v2649 = vadd.f32 %v2488, %v2648
        %2650 = vmatprep.mubr.f32.mxu0 0.0
        %2651 = vmatmul.mubr.f32.gmra.mrb[0].mxu0 %v2327
        %v2652 = vpop.f32.mrb[0].mxu0
        %v2653 = vadd.f32 %v2492, %v2652
        %v2654 = vpop.f32.mrb[0].mxu0
        %v2655 = vadd.f32 %v2494, %v2654
        %2656 = vmatprep.mubr.f32.mxu0 0.0
        %2657 = vmatmul.mubr.f32.gmra.mrb[0].mxu0 %v2328
        %v2658 = vpop.f32.mrb[0].mxu0
        %v2659 = vadd.f32 %v2498, %v2658
        %v2660 = vpop.f32.mrb[0].mxu0
        %v2661 = vadd.f32 %v2500, %v2660
        %2662 = vmatprep.mubr.f32.mxu0 0.0
        %2663 = vmatmul.mubr.f32.gmra.mrb[0].mxu0 %v2329
        %v2664 = vpop.f32.mrb[0].mxu0
        %v2665 = vadd.f32 %v2504, %v2664
        %v2666 = vpop.f32.mrb[0].mxu0
        %v2667 = vadd.f32 %v2506, %v2666
        %2668 = vdwg.mxu0
        %s2669 = scalar_lea.vmem [#allocation5], 1024
        %v2670 = vld [vmem:[%s2669] sm:$0xff]
        %v2671 = vld [vmem:[%s2669 + $0x8] sm:$0xff]
        %v2672 = vld [vmem:[%s2669 + $0x10] sm:$0xff]
        %v2673 = vld [vmem:[%s2669 + $0x18] sm:$0xff]
        %v2674 = vld [vmem:[%s2669 + $0x20] sm:$0xff]
        %v2675 = vld [vmem:[%s2669 + $0x28] sm:$0xff]
        %v2676 = vld [vmem:[%s2669 + $0x30] sm:$0xff]
        %v2677 = vld [vmem:[%s2669 + $0x38] sm:$0xff]
        %v2678 = vld [vmem:[%s2669 + $0x40] sm:$0xff]
        %v2679 = vld [vmem:[%s2669 + $0x48] sm:$0xff]
        %v2680 = vld [vmem:[%s2669 + $0x50] sm:$0xff]
        %v2681 = vld [vmem:[%s2669 + $0x58] sm:$0xff]
        %v2682 = vld [vmem:[%s2669 + $0x60] sm:$0xff]
        %v2683 = vld [vmem:[%s2669 + $0x68] sm:$0xff]
        %v2684 = vld [vmem:[%s2669 + $0x70] sm:$0xff]
        %v2685 = vld [vmem:[%s2669 + $0x78] sm:$0xff]
        %2686 = vmatprep.subr.mxu0 %v976
        %2687 = vmatpush1.msra.mxu0 %v975
        %2688 = vmatprep.subr.mxu0 %v978
        %2689 = vmatpush1.msra.mxu0 %v977
        %2690 = vmatprep.subr.mxu0 %v980
        %2691 = vmatpush1.msra.mxu0 %v979
        %2692 = vmatprep.subr.mxu0 %v982
        %2693 = vmatpush1.msra.mxu0 %v981
        %2694 = vmatprep.subr.mxu0 %v984
        %2695 = vmatpush1.msra.mxu0 %v983
        %2696 = vmatprep.subr.mxu0 %v986
        %2697 = vmatpush1.msra.mxu0 %v985
        %2698 = vmatprep.subr.mxu0 %v988
        %2699 = vmatpush1.msra.mxu0 %v987
        %2700 = vmatprep.subr.mxu0 %v990
        %2701 = vmatpush1.msra.mxu0 %v989
        %2702 = vmatprep.subr.mxu0 %v992
        %2703 = vmatpush1.msra.mxu0 %v991
        %2704 = vmatprep.subr.mxu0 %v994
        %2705 = vmatpush1.msra.mxu0 %v993
        %2706 = vmatprep.subr.mxu0 %v996
        %2707 = vmatpush1.msra.mxu0 %v995
        %2708 = vmatprep.subr.mxu0 %v998
        %2709 = vmatpush1.msra.mxu0 %v997
        %2710 = vmatprep.subr.mxu0 %v1000
        %2711 = vmatpush1.msra.mxu0 %v999
        %2712 = vmatprep.subr.mxu0 %v1002
        %2713 = vmatpush1.msra.mxu0 %v1001
        %2714 = vmatprep.subr.mxu0 %v1004
        %2715 = vmatpush1.msra.mxu0 %v1003
        %2716 = vmatprep.subr.mxu0 %v1006
        %2717 = vmatpush1.msra.mxu0 %v1005
        %2718 = vmatprep.subr.mxu0 0.0
        %2719 = vmatpush1.msra.mxu0 0.0
        %2720 = vmatprep.subr.mxu0 0.0
        %2721 = vmatpush1.msra.mxu0 0.0
        %2722 = vmatprep.subr.mxu0 0.0
        %2723 = vmatpush1.msra.mxu0 0.0
        %2724 = vmatprep.subr.mxu0 0.0
        %2725 = vmatpush1.msra.mxu0 0.0
        %2726 = vmatprep.subr.mxu0 0.0
        %2727 = vmatpush1.msra.mxu0 0.0
        %2728 = vmatprep.subr.mxu0 0.0
        %2729 = vmatpush1.msra.mxu0 0.0
        %2730 = vmatprep.subr.mxu0 0.0
        %2731 = vmatpush1.msra.mxu0 0.0
        %2732 = vmatprep.subr.mxu0 0.0
        %2733 = vmatpush1.msra.mxu0 0.0
        %2734 = vmatprep.subr.mxu0 0.0
        %2735 = vmatpush1.msra.mxu0 0.0
        %2736 = vmatprep.subr.mxu0 0.0
        %2737 = vmatpush1.msra.mxu0 0.0
        %2738 = vmatprep.subr.mxu0 0.0
        %2739 = vmatpush1.msra.mxu0 0.0
        %2740 = vmatprep.subr.mxu0 0.0
        %2741 = vmatpush1.msra.mxu0 0.0
        %2742 = vmatprep.subr.mxu0 0.0
        %2743 = vmatpush1.msra.mxu0 0.0
        %2744 = vmatprep.subr.mxu0 0.0
        %2745 = vmatpush1.msra.mxu0 0.0
        %2746 = vmatprep.subr.mxu0 0.0
        %2747 = vmatpush1.msra.mxu0 0.0
        %2748 = vmatprep.subr.mxu0 0.0
        %2749 = vmatpush1.msra.mxu0 0.0
        %2750 = vmatprep.mubr.f32.mxu0 0.0
        %2751 = vmatmul.mubr.f32.gmra.mrb[0].mxu0 %v2670
        %v2752 = vpop.f32.mrb[0].mxu0
        %v2753 = vadd.f32 0.0, %v2752
        %v2754 = vpop.f32.mrb[0].mxu0
        %v2755 = vadd.f32 0.0, %v2754
        %2756 = vmatprep.mubr.f32.mxu0 0.0
        %2757 = vmatmul.mubr.f32.gmra.mrb[0].mxu0 %v2671
        %v2758 = vpop.f32.mrb[0].mxu0
        %v2759 = vadd.f32 0.0, %v2758
        %v2760 = vpop.f32.mrb[0].mxu0
        %v2761 = vadd.f32 0.0, %v2760
        %2762 = vmatprep.mubr.f32.mxu0 0.0
        %2763 = vmatmul.mubr.f32.gmra.mrb[0].mxu0 %v2672
        %v2764 = vpop.f32.mrb[0].mxu0
        %v2765 = vadd.f32 0.0, %v2764
        %v2766 = vpop.f32.mrb[0].mxu0
        %v2767 = vadd.f32 0.0, %v2766
        %2768 = vmatprep.mubr.f32.mxu0 0.0
        %2769 = vmatmul.mubr.f32.gmra.mrb[0].mxu0 %v2673
        %v2770 = vpop.f32.mrb[0].mxu0
        %v2771 = vadd.f32 0.0, %v2770
        %v2772 = vpop.f32.mrb[0].mxu0
        %v2773 = vadd.f32 0.0, %v2772
        %2774 = vmatprep.mubr.f32.mxu0 0.0
        %2775 = vmatmul.mubr.f32.gmra.mrb[0].mxu0 %v2674
        %v2776 = vpop.f32.mrb[0].mxu0
        %v2777 = vadd.f32 0.0, %v2776
        %v2778 = vpop.f32.mrb[0].mxu0
        %v2779 = vadd.f32 0.0, %v2778
        %2780 = vmatprep.mubr.f32.mxu0 0.0
        %2781 = vmatmul.mubr.f32.gmra.mrb[0].mxu0 %v2675
        %v2782 = vpop.f32.mrb[0].mxu0
        %v2783 = vadd.f32 0.0, %v2782
        %v2784 = vpop.f32.mrb[0].mxu0
        %v2785 = vadd.f32 0.0, %v2784
        %2786 = vmatprep.mubr.f32.mxu0 0.0
        %2787 = vmatmul.mubr.f32.gmra.mrb[0].mxu0 %v2676
        %v2788 = vpop.f32.mrb[0].mxu0
        %v2789 = vadd.f32 0.0, %v2788
        %v2790 = vpop.f32.mrb[0].mxu0
        %v2791 = vadd.f32 0.0, %v2790
        %2792 = vmatprep.mubr.f32.mxu0 0.0
        %2793 = vmatmul.mubr.f32.gmra.mrb[0].mxu0 %v2677
        %v2794 = vpop.f32.mrb[0].mxu0
        %v2795 = vadd.f32 0.0, %v2794
        %v2796 = vpop.f32.mrb[0].mxu0
        %v2797 = vadd.f32 0.0, %v2796
        %2798 = vmatprep.mubr.f32.mxu0 0.0
        %2799 = vmatmul.mubr.f32.gmra.mrb[0].mxu0 %v2678
        %v2800 = vpop.f32.mrb[0].mxu0
        %v2801 = vadd.f32 0.0, %v2800
        %v2802 = vpop.f32.mrb[0].mxu0
        %v2803 = vadd.f32 0.0, %v2802
        %2804 = vmatprep.mubr.f32.mxu0 0.0
        %2805 = vmatmul.mubr.f32.gmra.mrb[0].mxu0 %v2679
        %v2806 = vpop.f32.mrb[0].mxu0
        %v2807 = vadd.f32 0.0, %v2806
        %v2808 = vpop.f32.mrb[0].mxu0
        %v2809 = vadd.f32 0.0, %v2808
        %2810 = vmatprep.mubr.f32.mxu0 0.0
        %2811 = vmatmul.mubr.f32.gmra.mrb[0].mxu0 %v2680
        %v2812 = vpop.f32.mrb[0].mxu0
        %v2813 = vadd.f32 0.0, %v2812
        %v2814 = vpop.f32.mrb[0].mxu0
        %v2815 = vadd.f32 0.0, %v2814
        %2816 = vmatprep.mubr.f32.mxu0 0.0
        %2817 = vmatmul.mubr.f32.gmra.mrb[0].mxu0 %v2681
        %v2818 = vpop.f32.mrb[0].mxu0
        %v2819 = vadd.f32 0.0, %v2818
        %v2820 = vpop.f32.mrb[0].mxu0
        %v2821 = vadd.f32 0.0, %v2820
        %2822 = vmatprep.mubr.f32.mxu0 0.0
        %2823 = vmatmul.mubr.f32.gmra.mrb[0].mxu0 %v2682
        %v2824 = vpop.f32.mrb[0].mxu0
        %v2825 = vadd.f32 0.0, %v2824
        %v2826 = vpop.f32.mrb[0].mxu0
        %v2827 = vadd.f32 0.0, %v2826
        %2828 = vmatprep.mubr.f32.mxu0 0.0
        %2829 = vmatmul.mubr.f32.gmra.mrb[0].mxu0 %v2683
        %v2830 = vpop.f32.mrb[0].mxu0
        %v2831 = vadd.f32 0.0, %v2830
        %v2832 = vpop.f32.mrb[0].mxu0
        %v2833 = vadd.f32 0.0, %v2832
        %2834 = vmatprep.mubr.f32.mxu0 0.0
        %2835 = vmatmul.mubr.f32.gmra.mrb[0].mxu0 %v2684
        %v2836 = vpop.f32.mrb[0].mxu0
        %v2837 = vadd.f32 0.0, %v2836
        %v2838 = vpop.f32.mrb[0].mxu0
        %v2839 = vadd.f32 0.0, %v2838
        %2840 = vmatprep.mubr.f32.mxu0 0.0
        %2841 = vmatmul.mubr.f32.gmra.mrb[0].mxu0 %v2685
        %v2842 = vpop.f32.mrb[0].mxu0
        %v2843 = vadd.f32 0.0, %v2842
        %v2844 = vpop.f32.mrb[0].mxu0
        %v2845 = vadd.f32 0.0, %v2844
        %2846 = vdwg.mxu0
        %v2847 = vadd.f32 %v2575, %v2753
        %v2848 = vadd.f32 %v2577, %v2755
        %v2849 = vadd.f32 %v2581, %v2759
        %v2850 = vadd.f32 %v2583, %v2761
        %v2851 = vadd.f32 %v2587, %v2765
        %v2852 = vadd.f32 %v2589, %v2767
        %v2853 = vadd.f32 %v2593, %v2771
        %v2854 = vadd.f32 %v2595, %v2773
        %v2855 = vadd.f32 %v2599, %v2777
        %v2856 = vadd.f32 %v2601, %v2779
        %v2857 = vadd.f32 %v2605, %v2783
        %v2858 = vadd.f32 %v2607, %v2785
        %v2859 = vadd.f32 %v2611, %v2789
        %v2860 = vadd.f32 %v2613, %v2791
        %v2861 = vadd.f32 %v2617, %v2795
        %v2862 = vadd.f32 %v2619, %v2797
        %v2863 = vadd.f32 %v2623, %v2801
        %v2864 = vadd.f32 %v2625, %v2803
        %v2865 = vadd.f32 %v2629, %v2807
        %v2866 = vadd.f32 %v2631, %v2809
        %v2867 = vadd.f32 %v2635, %v2813
        %v2868 = vadd.f32 %v2637, %v2815
        %v2869 = vadd.f32 %v2641, %v2819
        %v2870 = vadd.f32 %v2643, %v2821
        %v2871 = vadd.f32 %v2647, %v2825
        %v2872 = vadd.f32 %v2649, %v2827
        %v2873 = vadd.f32 %v2653, %v2831
        %v2874 = vadd.f32 %v2655, %v2833
        %v2875 = vadd.f32 %v2659, %v2837
        %v2876 = vadd.f32 %v2661, %v2839
        %v2877 = vadd.f32 %v2665, %v2843
        %v2878 = vadd.f32 %v2667, %v2845
        %2879 = vrot.lane.b32.xlu0 %v2847, 112
        %v2880 = vpop.permute.xlu0 %2879
        %2881 = vrot.lane.b32.xlu0 %v2849, 112
        %v2882 = vpop.permute.xlu0 %2881
        %2883 = vrot.lane.b32.xlu0 %v2851, 112
        %v2884 = vpop.permute.xlu0 %2883
        %2885 = vrot.lane.b32.xlu0 %v2853, 112
        %v2886 = vpop.permute.xlu0 %2885
        %2887 = vrot.lane.b32.xlu0 %v2855, 112
        %v2888 = vpop.permute.xlu0 %2887
        %2889 = vrot.lane.b32.xlu0 %v2857, 112
        %v2890 = vpop.permute.xlu0 %2889
        %2891 = vrot.lane.b32.xlu0 %v2859, 112
        %v2892 = vpop.permute.xlu0 %2891
        %2893 = vrot.lane.b32.xlu0 %v2861, 112
        %v2894 = vpop.permute.xlu0 %2893
        %2895 = vrot.lane.b32.xlu0 %v2863, 112
        %v2896 = vpop.permute.xlu0 %2895
        %2897 = vrot.lane.b32.xlu0 %v2865, 112
        %v2898 = vpop.permute.xlu0 %2897
        %2899 = vrot.lane.b32.xlu0 %v2867, 112
        %v2900 = vpop.permute.xlu0 %2899
        %2901 = vrot.lane.b32.xlu0 %v2869, 112
        %v2902 = vpop.permute.xlu0 %2901
        %2903 = vrot.lane.b32.xlu0 %v2871, 112
        %v2904 = vpop.permute.xlu0 %2903
        %2905 = vrot.lane.b32.xlu0 %v2873, 112
        %v2906 = vpop.permute.xlu0 %2905
        %2907 = vrot.lane.b32.xlu0 %v2875, 112
        %v2908 = vpop.permute.xlu0 %2907
        %2909 = vrot.lane.b32.xlu0 %v2877, 112
        %v2910 = vpop.permute.xlu0 %2909
        %2911 = vrot.lane.b32.xlu0 %v2848, 112
        %v2912 = vpop.permute.xlu0 %2911
        %2913 = vrot.lane.b32.xlu0 %v2850, 112
        %v2914 = vpop.permute.xlu0 %2913
        %2915 = vrot.lane.b32.xlu0 %v2852, 112
        %v2916 = vpop.permute.xlu0 %2915
        %2917 = vrot.lane.b32.xlu0 %v2854, 112
        %v2918 = vpop.permute.xlu0 %2917
        %2919 = vrot.lane.b32.xlu0 %v2856, 112
        %v2920 = vpop.permute.xlu0 %2919
        %2921 = vrot.lane.b32.xlu0 %v2858, 112
        %v2922 = vpop.permute.xlu0 %2921
        %2923 = vrot.lane.b32.xlu0 %v2860, 112
        %v2924 = vpop.permute.xlu0 %2923
        %2925 = vrot.lane.b32.xlu0 %v2862, 112
        %v2926 = vpop.permute.xlu0 %2925
        %2927 = vrot.lane.b32.xlu0 %v2864, 112
        %v2928 = vpop.permute.xlu0 %2927
        %2929 = vrot.lane.b32.xlu0 %v2866, 112
        %v2930 = vpop.permute.xlu0 %2929
        %2931 = vrot.lane.b32.xlu0 %v2868, 112
        %v2932 = vpop.permute.xlu0 %2931
        %2933 = vrot.lane.b32.xlu0 %v2870, 112
        %v2934 = vpop.permute.xlu0 %2933
        %2935 = vrot.lane.b32.xlu0 %v2872, 112
        %v2936 = vpop.permute.xlu0 %2935
        %2937 = vrot.lane.b32.xlu0 %v2874, 112
        %v2938 = vpop.permute.xlu0 %2937
        %2939 = vrot.lane.b32.xlu0 %v2876, 112
        %v2940 = vpop.permute.xlu0 %2939
        %2941 = vrot.lane.b32.xlu0 %v2878, 112
        %v2942 = vpop.permute.xlu0 %2941
        %vm2943 = vcmp.lt.s32.totalorder %v784, 112
        %v2944 = vsel %vm2943, %v2880, %v2912
        %v2945 = vsel %vm2943, %v2882, %v2914
        %v2946 = vsel %vm2943, %v2884, %v2916
        %v2947 = vsel %vm2943, %v2886, %v2918
        %v2948 = vsel %vm2943, %v2888, %v2920
        %v2949 = vsel %vm2943, %v2890, %v2922
        %v2950 = vsel %vm2943, %v2892, %v2924
        %v2951 = vsel %vm2943, %v2894, %v2926
        %v2952 = vsel %vm2943, %v2896, %v2928
        %v2953 = vsel %vm2943, %v2898, %v2930
        %v2954 = vsel %vm2943, %v2900, %v2932
        %v2955 = vsel %vm2943, %v2902, %v2934
        %v2956 = vsel %vm2943, %v2904, %v2936
        %v2957 = vsel %vm2943, %v2906, %v2938
        %v2958 = vsel %vm2943, %v2908, %v2940
        %v2959 = vsel %vm2943, %v2910, %v2942
        %v2960 = vsel %vm2943, %v2912, %v2880
        %v2961 = vsel %vm2943, %v2914, %v2882
        %v2962 = vsel %vm2943, %v2916, %v2884
        %v2963 = vsel %vm2943, %v2918, %v2886
        %v2964 = vsel %vm2943, %v2920, %v2888
        %v2965 = vsel %vm2943, %v2922, %v2890
        %v2966 = vsel %vm2943, %v2924, %v2892
        %v2967 = vsel %vm2943, %v2926, %v2894
        %v2968 = vsel %vm2943, %v2928, %v2896
        %v2969 = vsel %vm2943, %v2930, %v2898
        %v2970 = vsel %vm2943, %v2932, %v2900
        %v2971 = vsel %vm2943, %v2934, %v2902
        %v2972 = vsel %vm2943, %v2936, %v2904
        %v2973 = vsel %vm2943, %v2938, %v2906
        %v2974 = vsel %vm2943, %v2940, %v2908
        %v2975 = vsel %vm2943, %v2942, %v2910
        %vm2976 = vcmp.lt.s32.totalorder %v380, 15
        %v2977 = vsel %vm2976, 1, 0
        %v2978 = vcvt.s32.f32 %v2977
        %v2980 = vlaneseq
        %v2981 = vshrl.u32 %v2980, 7
        %v2982 = vsub.s32 0, %v2981
        %v2983 = vrot.slane %v2978, %v2982
        %v2984 = vlaneseq
        %v2985 = vshrl.u32 %v2984, 7
        %v2986 = vsub.s32 1, %v2985
        %v2987 = vrot.slane %v2978, %v2986
        %v2990 = vmul.f32 %v2944, %v2983
        %v2991 = vmul.f32 %v2960, %v2987
        %v2992 = vmul.f32 %v2945, %v2983
        %v2993 = vmul.f32 %v2961, %v2987
        %v2994 = vmul.f32 %v2946, %v2983
        %v2995 = vmul.f32 %v2962, %v2987
        %v2996 = vmul.f32 %v2947, %v2983
        %v2997 = vmul.f32 %v2963, %v2987
        %v2998 = vmul.f32 %v2948, %v2983
        %v2999 = vmul.f32 %v2964, %v2987
        %v3000 = vmul.f32 %v2949, %v2983
        %v3001 = vmul.f32 %v2965, %v2987
        %v3002 = vmul.f32 %v2950, %v2983
        %v3003 = vmul.f32 %v2966, %v2987
        %v3004 = vmul.f32 %v2951, %v2983
        %v3005 = vmul.f32 %v2967, %v2987
        %v3006 = vmul.f32 %v2952, %v2983
        %v3007 = vmul.f32 %v2968, %v2987
        %v3008 = vmul.f32 %v2953, %v2983
        %v3009 = vmul.f32 %v2969, %v2987
        %v3010 = vmul.f32 %v2954, %v2983
        %v3011 = vmul.f32 %v2970, %v2987
        %v3012 = vmul.f32 %v2955, %v2983
        %v3013 = vmul.f32 %v2971, %v2987
        %v3014 = vmul.f32 %v2956, %v2983
        %v3015 = vmul.f32 %v2972, %v2987
        %v3016 = vmul.f32 %v2957, %v2983
        %v3017 = vmul.f32 %v2973, %v2987
        %v3018 = vmul.f32 %v2958, %v2983
        %v3019 = vmul.f32 %v2974, %v2987
        %v3020 = vmul.f32 %v2959, %v2983
        %v3021 = vmul.f32 %v2975, %v2987
        %v3022 = vadd.f32 %v2281, %v2990
        %v3023 = vadd.f32 %v2282, %v2991
        %v3024 = vadd.f32 %v2283, %v2992
        %v3025 = vadd.f32 %v2284, %v2993
        %v3026 = vadd.f32 %v2285, %v2994
        %v3027 = vadd.f32 %v2286, %v2995
        %v3028 = vadd.f32 %v2287, %v2996
        %v3029 = vadd.f32 %v2288, %v2997
        %v3030 = vadd.f32 %v2289, %v2998
        %v3031 = vadd.f32 %v2290, %v2999
        %v3032 = vadd.f32 %v2291, %v3000
        %v3033 = vadd.f32 %v2292, %v3001
        %v3034 = vadd.f32 %v2293, %v3002
        %v3035 = vadd.f32 %v2294, %v3003
        %v3036 = vadd.f32 %v2295, %v3004
        %v3037 = vadd.f32 %v2296, %v3005
        %v3038 = vadd.f32 %v2297, %v3006
        %v3039 = vadd.f32 %v2298, %v3007
        %v3040 = vadd.f32 %v2299, %v3008
        %v3041 = vadd.f32 %v2300, %v3009
        %v3042 = vadd.f32 %v2301, %v3010
        %v3043 = vadd.f32 %v2302, %v3011
        %v3044 = vadd.f32 %v2303, %v3012
        %v3045 = vadd.f32 %v2304, %v3013
        %v3046 = vadd.f32 %v2305, %v3014
        %v3047 = vadd.f32 %v2306, %v3015
        %v3048 = vadd.f32 %v2307, %v3016
        %v3049 = vadd.f32 %v2308, %v3017
        %v3050 = vadd.f32 %v2309, %v3018
        %v3051 = vadd.f32 %v2310, %v3019
        %v3052 = vadd.f32 %v2311, %v3020
        %v3053 = vadd.f32 %v2312, %v3021
        %v3054 = vld [vmem:[%s6] sm:$0xff]
        %v3055 = vld [vmem:[%s6 + $0x8] sm:$0xff]
        %v3056 = vld [vmem:[%s6 + $0x10] sm:$0xff]
        %v3057 = vld [vmem:[%s6 + $0x18] sm:$0xff]
        %v3058 = vld [vmem:[%s6 + $0x20] sm:$0xff]
        %v3059 = vld [vmem:[%s6 + $0x28] sm:$0xff]
        %v3060 = vld [vmem:[%s6 + $0x30] sm:$0xff]
        %v3061 = vld [vmem:[%s6 + $0x38] sm:$0xff]
        %v3062 = vld [vmem:[%s6 + $0x40] sm:$0xff]
        %v3063 = vld [vmem:[%s6 + $0x48] sm:$0xff]
        %v3064 = vld [vmem:[%s6 + $0x50] sm:$0xff]
        %v3065 = vld [vmem:[%s6 + $0x58] sm:$0xff]
        %v3066 = vld [vmem:[%s6 + $0x60] sm:$0xff]
        %v3067 = vld [vmem:[%s6 + $0x68] sm:$0xff]
        %v3068 = vld [vmem:[%s6 + $0x70] sm:$0xff]
        %v3069 = vld [vmem:[%s6 + $0x78] sm:$0xff]
        %3071 = vset.pattern.permute.xlu0 0
        %3072 = vperm.xlu0 %3071, %v3054
        %v3073 = vpop.permute.xlu0 %3072
        %3076 = vset.pattern.permute.xlu0 0
        %3077 = vperm.xlu0 %3076, %v3055
        %v3078 = vpop.permute.xlu0 %3077
        %3081 = vset.pattern.permute.xlu0 0
        %3082 = vperm.xlu0 %3081, %v3056
        %v3083 = vpop.permute.xlu0 %3082
        %3086 = vset.pattern.permute.xlu0 0
        %3087 = vperm.xlu0 %3086, %v3057
        %v3088 = vpop.permute.xlu0 %3087
        %3091 = vset.pattern.permute.xlu0 0
        %3092 = vperm.xlu0 %3091, %v3058
        %v3093 = vpop.permute.xlu0 %3092
        %3096 = vset.pattern.permute.xlu0 0
        %3097 = vperm.xlu0 %3096, %v3059
        %v3098 = vpop.permute.xlu0 %3097
        %3101 = vset.pattern.permute.xlu0 0
        %3102 = vperm.xlu0 %3101, %v3060
        %v3103 = vpop.permute.xlu0 %3102
        %3106 = vset.pattern.permute.xlu0 0
        %3107 = vperm.xlu0 %3106, %v3061
        %v3108 = vpop.permute.xlu0 %3107
        %3111 = vset.pattern.permute.xlu0 0
        %3112 = vperm.xlu0 %3111, %v3062
        %v3113 = vpop.permute.xlu0 %3112
        %3116 = vset.pattern.permute.xlu0 0
        %3117 = vperm.xlu0 %3116, %v3063
        %v3118 = vpop.permute.xlu0 %3117
        %3121 = vset.pattern.permute.xlu0 0
        %3122 = vperm.xlu0 %3121, %v3064
        %v3123 = vpop.permute.xlu0 %3122
        %3126 = vset.pattern.permute.xlu0 0
        %3127 = vperm.xlu0 %3126, %v3065
        %v3128 = vpop.permute.xlu0 %3127
        %3131 = vset.pattern.permute.xlu0 0
        %3132 = vperm.xlu0 %3131, %v3066
        %v3133 = vpop.permute.xlu0 %3132
        %3136 = vset.pattern.permute.xlu0 0
        %3137 = vperm.xlu0 %3136, %v3067
        %v3138 = vpop.permute.xlu0 %3137
        %3141 = vset.pattern.permute.xlu0 0
        %3142 = vperm.xlu0 %3141, %v3068
        %v3143 = vpop.permute.xlu0 %3142
        %3146 = vset.pattern.permute.xlu0 0
        %3147 = vperm.xlu0 %3146, %v3069
        %v3148 = vpop.permute.xlu0 %3147
        %v3150 = vadd.f32 %v3022, %v3073
        %v3151 = vadd.f32 %v3023, %v3073
        %v3152 = vadd.f32 %v3024, %v3078
        %v3153 = vadd.f32 %v3025, %v3078
        %v3154 = vadd.f32 %v3026, %v3083
        %v3155 = vadd.f32 %v3027, %v3083
        %v3156 = vadd.f32 %v3028, %v3088
        %v3157 = vadd.f32 %v3029, %v3088
        %v3158 = vadd.f32 %v3030, %v3093
        %v3159 = vadd.f32 %v3031, %v3093
        %v3160 = vadd.f32 %v3032, %v3098
        %v3161 = vadd.f32 %v3033, %v3098
        %v3162 = vadd.f32 %v3034, %v3103
        %v3163 = vadd.f32 %v3035, %v3103
        %v3164 = vadd.f32 %v3036, %v3108
        %v3165 = vadd.f32 %v3037, %v3108
        %v3166 = vadd.f32 %v3038, %v3113
        %v3167 = vadd.f32 %v3039, %v3113
        %v3168 = vadd.f32 %v3040, %v3118
        %v3169 = vadd.f32 %v3041, %v3118
        %v3170 = vadd.f32 %v3042, %v3123
        %v3171 = vadd.f32 %v3043, %v3123
        %v3172 = vadd.f32 %v3044, %v3128
        %v3173 = vadd.f32 %v3045, %v3128
        %v3174 = vadd.f32 %v3046, %v3133
        %v3175 = vadd.f32 %v3047, %v3133
        %v3176 = vadd.f32 %v3048, %v3138
        %v3177 = vadd.f32 %v3049, %v3138
        %v3178 = vadd.f32 %v3050, %v3143
        %v3179 = vadd.f32 %v3051, %v3143
        %v3180 = vadd.f32 %v3052, %v3148
        %v3181 = vadd.f32 %v3053, %v3148
        %v3182 = vmax.f32 %v3150, 0.0
        %v3183 = vmax.f32 %v3151, 0.0
        %v3184 = vmax.f32 %v3152, 0.0
        %v3185 = vmax.f32 %v3153, 0.0
        %v3186 = vmax.f32 %v3154, 0.0
        %v3187 = vmax.f32 %v3155, 0.0
        %v3188 = vmax.f32 %v3156, 0.0
        %v3189 = vmax.f32 %v3157, 0.0
        %v3190 = vmax.f32 %v3158, 0.0
        %v3191 = vmax.f32 %v3159, 0.0
        %v3192 = vmax.f32 %v3160, 0.0
        %v3193 = vmax.f32 %v3161, 0.0
        %v3194 = vmax.f32 %v3162, 0.0
        %v3195 = vmax.f32 %v3163, 0.0
        %v3196 = vmax.f32 %v3164, 0.0
        %v3197 = vmax.f32 %v3165, 0.0
        %v3198 = vmax.f32 %v3166, 0.0
        %v3199 = vmax.f32 %v3167, 0.0
        %v3200 = vmax.f32 %v3168, 0.0
        %v3201 = vmax.f32 %v3169, 0.0
        %v3202 = vmax.f32 %v3170, 0.0
        %v3203 = vmax.f32 %v3171, 0.0
        %v3204 = vmax.f32 %v3172, 0.0
        %v3205 = vmax.f32 %v3173, 0.0
        %v3206 = vmax.f32 %v3174, 0.0
        %v3207 = vmax.f32 %v3175, 0.0
        %v3208 = vmax.f32 %v3176, 0.0
        %v3209 = vmax.f32 %v3177, 0.0
        %v3210 = vmax.f32 %v3178, 0.0
        %v3211 = vmax.f32 %v3179, 0.0
        %v3212 = vmax.f32 %v3180, 0.0
        %v3213 = vmax.f32 %v3181, 0.0
        %3214 = vrot.lane.b32.xlu0 %v3182, 2
        %v3215 = vpop.permute.xlu0 %3214
        %3216 = vrot.lane.b32.xlu0 %v3184, 2
        %v3217 = vpop.permute.xlu0 %3216
        %3218 = vrot.lane.b32.xlu0 %v3186, 2
        %v3219 = vpop.permute.xlu0 %3218
        %3220 = vrot.lane.b32.xlu0 %v3188, 2
        %v3221 = vpop.permute.xlu0 %3220
        %3222 = vrot.lane.b32.xlu0 %v3190, 2
        %v3223 = vpop.permute.xlu0 %3222
        %3224 = vrot.lane.b32.xlu0 %v3192, 2
        %v3225 = vpop.permute.xlu0 %3224
        %3226 = vrot.lane.b32.xlu0 %v3194, 2
        %v3227 = vpop.permute.xlu0 %3226
        %3228 = vrot.lane.b32.xlu0 %v3196, 2
        %v3229 = vpop.permute.xlu0 %3228
        %3230 = vrot.lane.b32.xlu0 %v3198, 2
        %v3231 = vpop.permute.xlu0 %3230
        %3232 = vrot.lane.b32.xlu0 %v3200, 2
        %v3233 = vpop.permute.xlu0 %3232
        %3234 = vrot.lane.b32.xlu0 %v3202, 2
        %v3235 = vpop.permute.xlu0 %3234
        %3236 = vrot.lane.b32.xlu0 %v3204, 2
        %v3237 = vpop.permute.xlu0 %3236
        %3238 = vrot.lane.b32.xlu0 %v3206, 2
        %v3239 = vpop.permute.xlu0 %3238
        %3240 = vrot.lane.b32.xlu0 %v3208, 2
        %v3241 = vpop.permute.xlu0 %3240
        %3242 = vrot.lane.b32.xlu0 %v3210, 2
        %v3243 = vpop.permute.xlu0 %3242
        %3244 = vrot.lane.b32.xlu0 %v3212, 2
        %v3245 = vpop.permute.xlu0 %3244
        %3246 = vrot.lane.b32.xlu0 %v3183, 2
        %v3247 = vpop.permute.xlu0 %3246
        %3248 = vrot.lane.b32.xlu0 %v3185, 2
        %v3249 = vpop.permute.xlu0 %3248
        %3250 = vrot.lane.b32.xlu0 %v3187, 2
        %v3251 = vpop.permute.xlu0 %3250
        %3252 = vrot.lane.b32.xlu0 %v3189, 2
        %v3253 = vpop.permute.xlu0 %3252
        %3254 = vrot.lane.b32.xlu0 %v3191, 2
        %v3255 = vpop.permute.xlu0 %3254
        %3256 = vrot.lane.b32.xlu0 %v3193, 2
        %v3257 = vpop.permute.xlu0 %3256
        %3258 = vrot.lane.b32.xlu0 %v3195, 2
        %v3259 = vpop.permute.xlu0 %3258
        %3260 = vrot.lane.b32.xlu0 %v3197, 2
        %v3261 = vpop.permute.xlu0 %3260
        %3262 = vrot.lane.b32.xlu0 %v3199, 2
        %v3263 = vpop.permute.xlu0 %3262
        %3264 = vrot.lane.b32.xlu0 %v3201, 2
        %v3265 = vpop.permute.xlu0 %3264
        %3266 = vrot.lane.b32.xlu0 %v3203, 2
        %v3267 = vpop.permute.xlu0 %3266
        %3268 = vrot.lane.b32.xlu0 %v3205, 2
        %v3269 = vpop.permute.xlu0 %3268
        %3270 = vrot.lane.b32.xlu0 %v3207, 2
        %v3271 = vpop.permute.xlu0 %3270
        %3272 = vrot.lane.b32.xlu0 %v3209, 2
        %v3273 = vpop.permute.xlu0 %3272
        %3274 = vrot.lane.b32.xlu0 %v3211, 2
        %v3275 = vpop.permute.xlu0 %3274
        %3276 = vrot.lane.b32.xlu0 %v3213, 2
        %v3277 = vpop.permute.xlu0 %3276
        %vm3278 = vcmp.lt.s32.totalorder %v784, 2
        %v3279 = vsel %vm3278, %v3215, %v3247
        %v3280 = vsel %vm3278, %v3217, %v3249
        %v3281 = vsel %vm3278, %v3219, %v3251
        %v3282 = vsel %vm3278, %v3221, %v3253
        %v3283 = vsel %vm3278, %v3223, %v3255
        %v3284 = vsel %vm3278, %v3225, %v3257
        %v3285 = vsel %vm3278, %v3227, %v3259
        %v3286 = vsel %vm3278, %v3229, %v3261
        %v3287 = vsel %vm3278, %v3231, %v3263
        %v3288 = vsel %vm3278, %v3233, %v3265
        %v3289 = vsel %vm3278, %v3235, %v3267
        %v3290 = vsel %vm3278, %v3237, %v3269
        %v3291 = vsel %vm3278, %v3239, %v3271
        %v3292 = vsel %vm3278, %v3241, %v3273
        %v3293 = vsel %vm3278, %v3243, %v3275
        %v3294 = vsel %vm3278, %v3245, %v3277
        %v3295 = vsel %vm3278, %v3247, %v3215
        %v3296 = vsel %vm3278, %v3249, %v3217
        %v3297 = vsel %vm3278, %v3251, %v3219
        %v3298 = vsel %vm3278, %v3253, %v3221
        %v3299 = vsel %vm3278, %v3255, %v3223
        %v3300 = vsel %vm3278, %v3257, %v3225
        %v3301 = vsel %vm3278, %v3259, %v3227
        %v3302 = vsel %vm3278, %v3261, %v3229
        %v3303 = vsel %vm3278, %v3263, %v3231
        %v3304 = vsel %vm3278, %v3265, %v3233
        %v3305 = vsel %vm3278, %v3267, %v3235
        %v3306 = vsel %vm3278, %v3269, %v3237
        %v3307 = vsel %vm3278, %v3271, %v3239
        %v3308 = vsel %vm3278, %v3273, %v3241
        %v3309 = vsel %vm3278, %v3275, %v3243
        %v3310 = vsel %vm3278, %v3277, %v3245
        %vm3311 = vcmp.ge.s32.totalorder %v381, 2
        %v3312 = vsel %vm3311, 1, 0
        %v3313 = vcvt.s32.f32 %v3312
        %v3315 = vlaneseq
        %v3316 = vshrl.u32 %v3315, 7
        %v3317 = vsub.s32 0, %v3316
        %v3318 = vrot.slane %v3313, %v3317
        %v3319 = vlaneseq
        %v3320 = vshrl.u32 %v3319, 7
        %v3321 = vsub.s32 1, %v3320
        %v3322 = vrot.slane %v3313, %v3321
        %v3325 = vmul.f32 %v3295, %v3318
        %v3326 = vmul.f32 %v3279, %v3322
        %v3327 = vmul.f32 %v3296, %v3318
        %v3328 = vmul.f32 %v3280, %v3322
        %v3329 = vmul.f32 %v3297, %v3318
        %v3330 = vmul.f32 %v3281, %v3322
        %v3331 = vmul.f32 %v3298, %v3318
        %v3332 = vmul.f32 %v3282, %v3322
        %v3333 = vmul.f32 %v3299, %v3318
        %v3334 = vmul.f32 %v3283, %v3322
        %v3335 = vmul.f32 %v3300, %v3318
        %v3336 = vmul.f32 %v3284, %v3322
        %v3337 = vmul.f32 %v3301, %v3318
        %v3338 = vmul.f32 %v3285, %v3322
        %v3339 = vmul.f32 %v3302, %v3318
        %v3340 = vmul.f32 %v3286, %v3322
        %v3341 = vmul.f32 %v3303, %v3318
        %v3342 = vmul.f32 %v3287, %v3322
        %v3343 = vmul.f32 %v3304, %v3318
        %v3344 = vmul.f32 %v3288, %v3322
        %v3345 = vmul.f32 %v3305, %v3318
        %v3346 = vmul.f32 %v3289, %v3322
        %v3347 = vmul.f32 %v3306, %v3318
        %v3348 = vmul.f32 %v3290, %v3322
        %v3349 = vmul.f32 %v3307, %v3318
        %v3350 = vmul.f32 %v3291, %v3322
        %v3351 = vmul.f32 %v3308, %v3318
        %v3352 = vmul.f32 %v3292, %v3322
        %v3353 = vmul.f32 %v3309, %v3318
        %v3354 = vmul.f32 %v3293, %v3322
        %v3355 = vmul.f32 %v3310, %v3318
        %v3356 = vmul.f32 %v3294, %v3322
        %3357 = vrot.lane.b32.xlu0 %v3182, 126
        %v3358 = vpop.permute.xlu0 %3357
        %3359 = vrot.lane.b32.xlu0 %v3184, 126
        %v3360 = vpop.permute.xlu0 %3359
        %3361 = vrot.lane.b32.xlu0 %v3186, 126
        %v3362 = vpop.permute.xlu0 %3361
        %3363 = vrot.lane.b32.xlu0 %v3188, 126
        %v3364 = vpop.permute.xlu0 %3363
        %3365 = vrot.lane.b32.xlu0 %v3190, 126
        %v3366 = vpop.permute.xlu0 %3365
        %3367 = vrot.lane.b32.xlu0 %v3192, 126
        %v3368 = vpop.permute.xlu0 %3367
        %3369 = vrot.lane.b32.xlu0 %v3194, 126
        %v3370 = vpop.permute.xlu0 %3369
        %3371 = vrot.lane.b32.xlu0 %v3196, 126
        %v3372 = vpop.permute.xlu0 %3371
        %3373 = vrot.lane.b32.xlu0 %v3198, 126
        %v3374 = vpop.permute.xlu0 %3373
        %3375 = vrot.lane.b32.xlu0 %v3200, 126
        %v3376 = vpop.permute.xlu0 %3375
        %3377 = vrot.lane.b32.xlu0 %v3202, 126
        %v3378 = vpop.permute.xlu0 %3377
        %3379 = vrot.lane.b32.xlu0 %v3204, 126
        %v3380 = vpop.permute.xlu0 %3379
        %3381 = vrot.lane.b32.xlu0 %v3206, 126
        %v3382 = vpop.permute.xlu0 %3381
        %3383 = vrot.lane.b32.xlu0 %v3208, 126
        %v3384 = vpop.permute.xlu0 %3383
        %3385 = vrot.lane.b32.xlu0 %v3210, 126
        %v3386 = vpop.permute.xlu0 %3385
        %3387 = vrot.lane.b32.xlu0 %v3212, 126
        %v3388 = vpop.permute.xlu0 %3387
        %3389 = vrot.lane.b32.xlu0 %v3183, 126
        %v3390 = vpop.permute.xlu0 %3389
        %3391 = vrot.lane.b32.xlu0 %v3185, 126
        %v3392 = vpop.permute.xlu0 %3391
        %3393 = vrot.lane.b32.xlu0 %v3187, 126
        %v3394 = vpop.permute.xlu0 %3393
        %3395 = vrot.lane.b32.xlu0 %v3189, 126
        %v3396 = vpop.permute.xlu0 %3395
        %3397 = vrot.lane.b32.xlu0 %v3191, 126
        %v3398 = vpop.permute.xlu0 %3397
        %3399 = vrot.lane.b32.xlu0 %v3193, 126
        %v3400 = vpop.permute.xlu0 %3399
        %3401 = vrot.lane.b32.xlu0 %v3195, 126
        %v3402 = vpop.permute.xlu0 %3401
        %3403 = vrot.lane.b32.xlu0 %v3197, 126
        %v3404 = vpop.permute.xlu0 %3403
        %3405 = vrot.lane.b32.xlu0 %v3199, 126
        %v3406 = vpop.permute.xlu0 %3405
        %3407 = vrot.lane.b32.xlu0 %v3201, 126
        %v3408 = vpop.permute.xlu0 %3407
        %3409 = vrot.lane.b32.xlu0 %v3203, 126
        %v3410 = vpop.permute.xlu0 %3409
        %3411 = vrot.lane.b32.xlu0 %v3205, 126
        %v3412 = vpop.permute.xlu0 %3411
        %3413 = vrot.lane.b32.xlu0 %v3207, 126
        %v3414 = vpop.permute.xlu0 %3413
        %3415 = vrot.lane.b32.xlu0 %v3209, 126
        %v3416 = vpop.permute.xlu0 %3415
        %3417 = vrot.lane.b32.xlu0 %v3211, 126
        %v3418 = vpop.permute.xlu0 %3417
        %3419 = vrot.lane.b32.xlu0 %v3213, 126
        %v3420 = vpop.permute.xlu0 %3419
        %vm3421 = vcmp.lt.s32.totalorder %v784, 126
        %v3422 = vsel %vm3421, %v3358, %v3390
        %v3423 = vsel %vm3421, %v3360, %v3392
        %v3424 = vsel %vm3421, %v3362, %v3394
        %v3425 = vsel %vm3421, %v3364, %v3396
        %v3426 = vsel %vm3421, %v3366, %v3398
        %v3427 = vsel %vm3421, %v3368, %v3400
        %v3428 = vsel %vm3421, %v3370, %v3402
        %v3429 = vsel %vm3421, %v3372, %v3404
        %v3430 = vsel %vm3421, %v3374, %v3406
        %v3431 = vsel %vm3421, %v3376, %v3408
        %v3432 = vsel %vm3421, %v3378, %v3410
        %v3433 = vsel %vm3421, %v3380, %v3412
        %v3434 = vsel %vm3421, %v3382, %v3414
        %v3435 = vsel %vm3421, %v3384, %v3416
        %v3436 = vsel %vm3421, %v3386, %v3418
        %v3437 = vsel %vm3421, %v3388, %v3420
        %v3438 = vsel %vm3421, %v3390, %v3358
        %v3439 = vsel %vm3421, %v3392, %v3360
        %v3440 = vsel %vm3421, %v3394, %v3362
        %v3441 = vsel %vm3421, %v3396, %v3364
        %v3442 = vsel %vm3421, %v3398, %v3366
        %v3443 = vsel %vm3421, %v3400, %v3368
        %v3444 = vsel %vm3421, %v3402, %v3370
        %v3445 = vsel %vm3421, %v3404, %v3372
        %v3446 = vsel %vm3421, %v3406, %v3374
        %v3447 = vsel %vm3421, %v3408, %v3376
        %v3448 = vsel %vm3421, %v3410, %v3378
        %v3449 = vsel %vm3421, %v3412, %v3380
        %v3450 = vsel %vm3421, %v3414, %v3382
        %v3451 = vsel %vm3421, %v3416, %v3384
        %v3452 = vsel %vm3421, %v3418, %v3386
        %v3453 = vsel %vm3421, %v3420, %v3388
        %vm3454 = vcmp.lt.s32.totalorder %v381, 14
        %v3455 = vsel %vm3454, 1, 0
        %v3456 = vcvt.s32.f32 %v3455
        %v3458 = vlaneseq
        %v3459 = vshrl.u32 %v3458, 7
        %v3460 = vsub.s32 0, %v3459
        %v3461 = vrot.slane %v3456, %v3460
        %v3462 = vlaneseq
        %v3463 = vshrl.u32 %v3462, 7
        %v3464 = vsub.s32 1, %v3463
        %v3465 = vrot.slane %v3456, %v3464
        %v3468 = vmul.f32 %v3422, %v3461
        %v3469 = vmul.f32 %v3438, %v3465
        %v3470 = vmul.f32 %v3423, %v3461
        %v3471 = vmul.f32 %v3439, %v3465
        %v3472 = vmul.f32 %v3424, %v3461
        %v3473 = vmul.f32 %v3440, %v3465
        %v3474 = vmul.f32 %v3425, %v3461
        %v3475 = vmul.f32 %v3441, %v3465
        %v3476 = vmul.f32 %v3426, %v3461
        %v3477 = vmul.f32 %v3442, %v3465
        %v3478 = vmul.f32 %v3427, %v3461
        %v3479 = vmul.f32 %v3443, %v3465
        %v3480 = vmul.f32 %v3428, %v3461
        %v3481 = vmul.f32 %v3444, %v3465
        %v3482 = vmul.f32 %v3429, %v3461
        %v3483 = vmul.f32 %v3445, %v3465
        %v3484 = vmul.f32 %v3430, %v3461
        %v3485 = vmul.f32 %v3446, %v3465
        %v3486 = vmul.f32 %v3431, %v3461
        %v3487 = vmul.f32 %v3447, %v3465
        %v3488 = vmul.f32 %v3432, %v3461
        %v3489 = vmul.f32 %v3448, %v3465
        %v3490 = vmul.f32 %v3433, %v3461
        %v3491 = vmul.f32 %v3449, %v3465
        %v3492 = vmul.f32 %v3434, %v3461
        %v3493 = vmul.f32 %v3450, %v3465
        %v3494 = vmul.f32 %v3435, %v3461
        %v3495 = vmul.f32 %v3451, %v3465
        %v3496 = vmul.f32 %v3436, %v3461
        %v3497 = vmul.f32 %v3452, %v3465
        %v3498 = vmul.f32 %v3437, %v3461
        %v3499 = vmul.f32 %v3453, %v3465
        %v3500 = vld [vmem:[#allocation7] sm:$0xff]
        %v3501 = vld [vmem:[#allocation7 + $0x8] sm:$0xff]
        %v3502 = vld [vmem:[#allocation7 + $0x10] sm:$0xff]
        %v3503 = vld [vmem:[#allocation7 + $0x18] sm:$0xff]
        %v3504 = vld [vmem:[#allocation7 + $0x20] sm:$0xff]
        %v3505 = vld [vmem:[#allocation7 + $0x28] sm:$0xff]
        %v3506 = vld [vmem:[#allocation7 + $0x30] sm:$0xff]
        %v3507 = vld [vmem:[#allocation7 + $0x38] sm:$0xff]
        %v3508 = vld [vmem:[#allocation7 + $0x40] sm:$0xff]
        %v3509 = vld [vmem:[#allocation7 + $0x48] sm:$0xff]
        %v3510 = vld [vmem:[#allocation7 + $0x50] sm:$0xff]
        %v3511 = vld [vmem:[#allocation7 + $0x58] sm:$0xff]
        %v3512 = vld [vmem:[#allocation7 + $0x60] sm:$0xff]
        %v3513 = vld [vmem:[#allocation7 + $0x68] sm:$0xff]
        %v3514 = vld [vmem:[#allocation7 + $0x70] sm:$0xff]
        %v3515 = vld [vmem:[#allocation7 + $0x78] sm:$0xff]
        %s3516 = scalar_lea.vmem [#allocation7], 128
        %v3517 = vld [vmem:[%s3516] sm:$0xff]
        %v3518 = vld [vmem:[%s3516 + $0x8] sm:$0xff]
        %v3519 = vld [vmem:[%s3516 + $0x10] sm:$0xff]
        %v3520 = vld [vmem:[%s3516 + $0x18] sm:$0xff]
        %v3521 = vld [vmem:[%s3516 + $0x20] sm:$0xff]
        %v3522 = vld [vmem:[%s3516 + $0x28] sm:$0xff]
        %v3523 = vld [vmem:[%s3516 + $0x30] sm:$0xff]
        %v3524 = vld [vmem:[%s3516 + $0x38] sm:$0xff]
        %v3525 = vld [vmem:[%s3516 + $0x40] sm:$0xff]
        %v3526 = vld [vmem:[%s3516 + $0x48] sm:$0xff]
        %v3527 = vld [vmem:[%s3516 + $0x50] sm:$0xff]
        %v3528 = vld [vmem:[%s3516 + $0x58] sm:$0xff]
        %v3529 = vld [vmem:[%s3516 + $0x60] sm:$0xff]
        %v3530 = vld [vmem:[%s3516 + $0x68] sm:$0xff]
        %v3531 = vld [vmem:[%s3516 + $0x70] sm:$0xff]
        %v3532 = vld [vmem:[%s3516 + $0x78] sm:$0xff]
        %3533 = vmatprep.subr.mxu0 %v3183
        %3534 = vmatpush1.msra.mxu0 %v3182
        %3535 = vmatprep.subr.mxu0 %v3185
        %3536 = vmatpush1.msra.mxu0 %v3184
        %3537 = vmatprep.subr.mxu0 %v3187
        %3538 = vmatpush1.msra.mxu0 %v3186
        %3539 = vmatprep.subr.mxu0 %v3189
        %3540 = vmatpush1.msra.mxu0 %v3188
        %3541 = vmatprep.subr.mxu0 %v3191
        %3542 = vmatpush1.msra.mxu0 %v3190
        %3543 = vmatprep.subr.mxu0 %v3193
        %3544 = vmatpush1.msra.mxu0 %v3192
        %3545 = vmatprep.subr.mxu0 %v3195
        %3546 = vmatpush1.msra.mxu0 %v3194
        %3547 = vmatprep.subr.mxu0 %v3197
        %3548 = vmatpush1.msra.mxu0 %v3196
        %3549 = vmatprep.subr.mxu0 %v3199
        %3550 = vmatpush1.msra.mxu0 %v3198
        %3551 = vmatprep.subr.mxu0 %v3201
        %3552 = vmatpush1.msra.mxu0 %v3200
        %3553 = vmatprep.subr.mxu0 %v3203
        %3554 = vmatpush1.msra.mxu0 %v3202
        %3555 = vmatprep.subr.mxu0 %v3205
        %3556 = vmatpush1.msra.mxu0 %v3204
        %3557 = vmatprep.subr.mxu0 %v3207
        %3558 = vmatpush1.msra.mxu0 %v3206
        %3559 = vmatprep.subr.mxu0 %v3209
        %3560 = vmatpush1.msra.mxu0 %v3208
        %3561 = vmatprep.subr.mxu0 %v3211
        %3562 = vmatpush1.msra.mxu0 %v3210
        %3563 = vmatprep.subr.mxu0 %v3213
        %3564 = vmatpush1.msra.mxu0 %v3212
        %3565 = vmatprep.subr.mxu0 0.0
        %3566 = vmatpush1.msra.mxu0 0.0
        %3567 = vmatprep.subr.mxu0 0.0
        %3568 = vmatpush1.msra.mxu0 0.0
        %3569 = vmatprep.subr.mxu0 0.0
        %3570 = vmatpush1.msra.mxu0 0.0
        %3571 = vmatprep.subr.mxu0 0.0
        %3572 = vmatpush1.msra.mxu0 0.0
        %3573 = vmatprep.subr.mxu0 0.0
        %3574 = vmatpush1.msra.mxu0 0.0
        %3575 = vmatprep.subr.mxu0 0.0
        %3576 = vmatpush1.msra.mxu0 0.0
        %3577 = vmatprep.subr.mxu0 0.0
        %3578 = vmatpush1.msra.mxu0 0.0
        %3579 = vmatprep.subr.mxu0 0.0
        %3580 = vmatpush1.msra.mxu0 0.0
        %3581 = vmatprep.subr.mxu0 0.0
        %3582 = vmatpush1.msra.mxu0 0.0
        %3583 = vmatprep.subr.mxu0 0.0
        %3584 = vmatpush1.msra.mxu0 0.0
        %3585 = vmatprep.subr.mxu0 0.0
        %3586 = vmatpush1.msra.mxu0 0.0
        %3587 = vmatprep.subr.mxu0 0.0
        %3588 = vmatpush1.msra.mxu0 0.0
        %3589 = vmatprep.subr.mxu0 0.0
        %3590 = vmatpush1.msra.mxu0 0.0
        %3591 = vmatprep.subr.mxu0 0.0
        %3592 = vmatpush1.msra.mxu0 0.0
        %3593 = vmatprep.subr.mxu0 0.0
        %3594 = vmatpush1.msra.mxu0 0.0
        %3595 = vmatprep.subr.mxu0 0.0
        %3596 = vmatpush1.msra.mxu0 0.0
        %3597 = vmatprep.mubr.f32.mxu0 0.0
        %3598 = vmatmul.mubr.f32.gmra.mrb[0].mxu0 %v3517
        %v3599 = vpop.f32.mrb[0].mxu0
        %v3600 = vadd.f32 0.0, %v3599
        %v3601 = vpop.f32.mrb[0].mxu0
        %v3602 = vadd.f32 0.0, %v3601
        %3603 = vmatprep.mubr.f32.mxu0 0.0
        %3604 = vmatmul.mubr.f32.gmra.mrb[0].mxu0 %v3518
        %v3605 = vpop.f32.mrb[0].mxu0
        %v3606 = vadd.f32 0.0, %v3605
        %v3607 = vpop.f32.mrb[0].mxu0
        %v3608 = vadd.f32 0.0, %v3607
        %3609 = vmatprep.mubr.f32.mxu0 0.0
        %3610 = vmatmul.mubr.f32.gmra.mrb[0].mxu0 %v3519
        %v3611 = vpop.f32.mrb[0].mxu0
        %v3612 = vadd.f32 0.0, %v3611
        %v3613 = vpop.f32.mrb[0].mxu0
        %v3614 = vadd.f32 0.0, %v3613
        %3615 = vmatprep.mubr.f32.mxu0 0.0
        %3616 = vmatmul.mubr.f32.gmra.mrb[0].mxu0 %v3520
        %v3617 = vpop.f32.mrb[0].mxu0
        %v3618 = vadd.f32 0.0, %v3617
        %v3619 = vpop.f32.mrb[0].mxu0
        %v3620 = vadd.f32 0.0, %v3619
        %3621 = vmatprep.mubr.f32.mxu0 0.0
        %3622 = vmatmul.mubr.f32.gmra.mrb[0].mxu0 %v3521
        %v3623 = vpop.f32.mrb[0].mxu0
        %v3624 = vadd.f32 0.0, %v3623
        %v3625 = vpop.f32.mrb[0].mxu0
        %v3626 = vadd.f32 0.0, %v3625
        %3627 = vmatprep.mubr.f32.mxu0 0.0
        %3628 = vmatmul.mubr.f32.gmra.mrb[0].mxu0 %v3522
        %v3629 = vpop.f32.mrb[0].mxu0
        %v3630 = vadd.f32 0.0, %v3629
        %v3631 = vpop.f32.mrb[0].mxu0
        %v3632 = vadd.f32 0.0, %v3631
        %3633 = vmatprep.mubr.f32.mxu0 0.0
        %3634 = vmatmul.mubr.f32.gmra.mrb[0].mxu0 %v3523
        %v3635 = vpop.f32.mrb[0].mxu0
        %v3636 = vadd.f32 0.0, %v3635
        %v3637 = vpop.f32.mrb[0].mxu0
        %v3638 = vadd.f32 0.0, %v3637
        %3639 = vmatprep.mubr.f32.mxu0 0.0
        %3640 = vmatmul.mubr.f32.gmra.mrb[0].mxu0 %v3524
        %v3641 = vpop.f32.mrb[0].mxu0
        %v3642 = vadd.f32 0.0, %v3641
        %v3643 = vpop.f32.mrb[0].mxu0
        %v3644 = vadd.f32 0.0, %v3643
        %3645 = vmatprep.mubr.f32.mxu0 0.0
        %3646 = vmatmul.mubr.f32.gmra.mrb[0].mxu0 %v3525
        %v3647 = vpop.f32.mrb[0].mxu0
        %v3648 = vadd.f32 0.0, %v3647
        %v3649 = vpop.f32.mrb[0].mxu0
        %v3650 = vadd.f32 0.0, %v3649
        %3651 = vmatprep.mubr.f32.mxu0 0.0
        %3652 = vmatmul.mubr.f32.gmra.mrb[0].mxu0 %v3526
        %v3653 = vpop.f32.mrb[0].mxu0
        %v3654 = vadd.f32 0.0, %v3653
        %v3655 = vpop.f32.mrb[0].mxu0
        %v3656 = vadd.f32 0.0, %v3655
        %3657 = vmatprep.mubr.f32.mxu0 0.0
        %3658 = vmatmul.mubr.f32.gmra.mrb[0].mxu0 %v3527
        %v3659 = vpop.f32.mrb[0].mxu0
        %v3660 = vadd.f32 0.0, %v3659
        %v3661 = vpop.f32.mrb[0].mxu0
        %v3662 = vadd.f32 0.0, %v3661
        %3663 = vmatprep.mubr.f32.mxu0 0.0
        %3664 = vmatmul.mubr.f32.gmra.mrb[0].mxu0 %v3528
        %v3665 = vpop.f32.mrb[0].mxu0
        %v3666 = vadd.f32 0.0, %v3665
        %v3667 = vpop.f32.mrb[0].mxu0
        %v3668 = vadd.f32 0.0, %v3667
        %3669 = vmatprep.mubr.f32.mxu0 0.0
        %3670 = vmatmul.mubr.f32.gmra.mrb[0].mxu0 %v3529
        %v3671 = vpop.f32.mrb[0].mxu0
        %v3672 = vadd.f32 0.0, %v3671
        %v3673 = vpop.f32.mrb[0].mxu0
        %v3674 = vadd.f32 0.0, %v3673
        %3675 = vmatprep.mubr.f32.mxu0 0.0
        %3676 = vmatmul.mubr.f32.gmra.mrb[0].mxu0 %v3530
        %v3677 = vpop.f32.mrb[0].mxu0
        %v3678 = vadd.f32 0.0, %v3677
        %v3679 = vpop.f32.mrb[0].mxu0
        %v3680 = vadd.f32 0.0, %v3679
        %3681 = vmatprep.mubr.f32.mxu0 0.0
        %3682 = vmatmul.mubr.f32.gmra.mrb[0].mxu0 %v3531
        %v3683 = vpop.f32.mrb[0].mxu0
        %v3684 = vadd.f32 0.0, %v3683
        %v3685 = vpop.f32.mrb[0].mxu0
        %v3686 = vadd.f32 0.0, %v3685
        %3687 = vmatprep.mubr.f32.mxu0 0.0
        %3688 = vmatmul.mubr.f32.gmra.mrb[0].mxu0 %v3532
        %v3689 = vpop.f32.mrb[0].mxu0
        %v3690 = vadd.f32 0.0, %v3689
        %v3691 = vpop.f32.mrb[0].mxu0
        %v3692 = vadd.f32 0.0, %v3691
        %3693 = vdwg.mxu0
        %3694 = vmatprep.subr.mxu0 %v3326
        %3695 = vmatpush1.msra.mxu0 %v3325
        %3696 = vmatprep.subr.mxu0 %v3328
        %3697 = vmatpush1.msra.mxu0 %v3327
        %3698 = vmatprep.subr.mxu0 %v3330
        %3699 = vmatpush1.msra.mxu0 %v3329
        %3700 = vmatprep.subr.mxu0 %v3332
        %3701 = vmatpush1.msra.mxu0 %v3331
        %3702 = vmatprep.subr.mxu0 %v3334
        %3703 = vmatpush1.msra.mxu0 %v3333
        %3704 = vmatprep.subr.mxu0 %v3336
        %3705 = vmatpush1.msra.mxu0 %v3335
        %3706 = vmatprep.subr.mxu0 %v3338
        %3707 = vmatpush1.msra.mxu0 %v3337
        %3708 = vmatprep.subr.mxu0 %v3340
        %3709 = vmatpush1.msra.mxu0 %v3339
        %3710 = vmatprep.subr.mxu0 %v3342
        %3711 = vmatpush1.msra.mxu0 %v3341
        %3712 = vmatprep.subr.mxu0 %v3344
        %3713 = vmatpush1.msra.mxu0 %v3343
        %3714 = vmatprep.subr.mxu0 %v3346
        %3715 = vmatpush1.msra.mxu0 %v3345
        %3716 = vmatprep.subr.mxu0 %v3348
        %3717 = vmatpush1.msra.mxu0 %v3347
        %3718 = vmatprep.subr.mxu0 %v3350
        %3719 = vmatpush1.msra.mxu0 %v3349
        %3720 = vmatprep.subr.mxu0 %v3352
        %3721 = vmatpush1.msra.mxu0 %v3351
        %3722 = vmatprep.subr.mxu0 %v3354
        %3723 = vmatpush1.msra.mxu0 %v3353
        %3724 = vmatprep.subr.mxu0 %v3356
        %3725 = vmatpush1.msra.mxu0 %v3355
        %3726 = vmatprep.subr.mxu0 0.0
        %3727 = vmatpush1.msra.mxu0 0.0
        %3728 = vmatprep.subr.mxu0 0.0
        %3729 = vmatpush1.msra.mxu0 0.0
        %3730 = vmatprep.subr.mxu0 0.0
        %3731 = vmatpush1.msra.mxu0 0.0
        %3732 = vmatprep.subr.mxu0 0.0
        %3733 = vmatpush1.msra.mxu0 0.0
        %3734 = vmatprep.subr.mxu0 0.0
        %3735 = vmatpush1.msra.mxu0 0.0
        %3736 = vmatprep.subr.mxu0 0.0
        %3737 = vmatpush1.msra.mxu0 0.0
        %3738 = vmatprep.subr.mxu0 0.0
        %3739 = vmatpush1.msra.mxu0 0.0
        %3740 = vmatprep.subr.mxu0 0.0
        %3741 = vmatpush1.msra.mxu0 0.0
        %3742 = vmatprep.subr.mxu0 0.0
        %3743 = vmatpush1.msra.mxu0 0.0
        %3744 = vmatprep.subr.mxu0 0.0
        %3745 = vmatpush1.msra.mxu0 0.0
        %3746 = vmatprep.subr.mxu0 0.0
        %3747 = vmatpush1.msra.mxu0 0.0
        %3748 = vmatprep.subr.mxu0 0.0
        %3749 = vmatpush1.msra.mxu0 0.0
        %3750 = vmatprep.subr.mxu0 0.0
        %3751 = vmatpush1.msra.mxu0 0.0
        %3752 = vmatprep.subr.mxu0 0.0
        %3753 = vmatpush1.msra.mxu0 0.0
        %3754 = vmatprep.subr.mxu0 0.0
        %3755 = vmatpush1.msra.mxu0 0.0
        %3756 = vmatprep.subr.mxu0 0.0
        %3757 = vmatpush1.msra.mxu0 0.0
        %3758 = vmatprep.mubr.f32.mxu0 0.0
        %3759 = vmatmul.mubr.f32.gmra.mrb[0].mxu0 %v3500
        %v3760 = vpop.f32.mrb[0].mxu0
        %v3761 = vadd.f32 %v3600, %v3760
        %v3762 = vpop.f32.mrb[0].mxu0
        %v3763 = vadd.f32 %v3602, %v3762
        %3764 = vmatprep.mubr.f32.mxu0 0.0
        %3765 = vmatmul.mubr.f32.gmra.mrb[0].mxu0 %v3501
        %v3766 = vpop.f32.mrb[0].mxu0
        %v3767 = vadd.f32 %v3606, %v3766
        %v3768 = vpop.f32.mrb[0].mxu0
        %v3769 = vadd.f32 %v3608, %v3768
        %3770 = vmatprep.mubr.f32.mxu0 0.0
        %3771 = vmatmul.mubr.f32.gmra.mrb[0].mxu0 %v3502
        %v3772 = vpop.f32.mrb[0].mxu0
        %v3773 = vadd.f32 %v3612, %v3772
        %v3774 = vpop.f32.mrb[0].mxu0
        %v3775 = vadd.f32 %v3614, %v3774
        %3776 = vmatprep.mubr.f32.mxu0 0.0
        %3777 = vmatmul.mubr.f32.gmra.mrb[0].mxu0 %v3503
        %v3778 = vpop.f32.mrb[0].mxu0
        %v3779 = vadd.f32 %v3618, %v3778
        %v3780 = vpop.f32.mrb[0].mxu0
        %v3781 = vadd.f32 %v3620, %v3780
        %3782 = vmatprep.mubr.f32.mxu0 0.0
        %3783 = vmatmul.mubr.f32.gmra.mrb[0].mxu0 %v3504
        %v3784 = vpop.f32.mrb[0].mxu0
        %v3785 = vadd.f32 %v3624, %v3784
        %v3786 = vpop.f32.mrb[0].mxu0
        %v3787 = vadd.f32 %v3626, %v3786
        %3788 = vmatprep.mubr.f32.mxu0 0.0
        %3789 = vmatmul.mubr.f32.gmra.mrb[0].mxu0 %v3505
        %v3790 = vpop.f32.mrb[0].mxu0
        %v3791 = vadd.f32 %v3630, %v3790
        %v3792 = vpop.f32.mrb[0].mxu0
        %v3793 = vadd.f32 %v3632, %v3792
        %3794 = vmatprep.mubr.f32.mxu0 0.0
        %3795 = vmatmul.mubr.f32.gmra.mrb[0].mxu0 %v3506
        %v3796 = vpop.f32.mrb[0].mxu0
        %v3797 = vadd.f32 %v3636, %v3796
        %v3798 = vpop.f32.mrb[0].mxu0
        %v3799 = vadd.f32 %v3638, %v3798
        %3800 = vmatprep.mubr.f32.mxu0 0.0
        %3801 = vmatmul.mubr.f32.gmra.mrb[0].mxu0 %v3507
        %v3802 = vpop.f32.mrb[0].mxu0
        %v3803 = vadd.f32 %v3642, %v3802
        %v3804 = vpop.f32.mrb[0].mxu0
        %v3805 = vadd.f32 %v3644, %v3804
        %3806 = vmatprep.mubr.f32.mxu0 0.0
        %3807 = vmatmul.mubr.f32.gmra.mrb[0].mxu0 %v3508
        %v3808 = vpop.f32.mrb[0].mxu0
        %v3809 = vadd.f32 %v3648, %v3808
        %v3810 = vpop.f32.mrb[0].mxu0
        %v3811 = vadd.f32 %v3650, %v3810
        %3812 = vmatprep.mubr.f32.mxu0 0.0
        %3813 = vmatmul.mubr.f32.gmra.mrb[0].mxu0 %v3509
        %v3814 = vpop.f32.mrb[0].mxu0
        %v3815 = vadd.f32 %v3654, %v3814
        %v3816 = vpop.f32.mrb[0].mxu0
        %v3817 = vadd.f32 %v3656, %v3816
        %3818 = vmatprep.mubr.f32.mxu0 0.0
        %3819 = vmatmul.mubr.f32.gmra.mrb[0].mxu0 %v3510
        %v3820 = vpop.f32.mrb[0].mxu0
        %v3821 = vadd.f32 %v3660, %v3820
        %v3822 = vpop.f32.mrb[0].mxu0
        %v3823 = vadd.f32 %v3662, %v3822
        %3824 = vmatprep.mubr.f32.mxu0 0.0
        %3825 = vmatmul.mubr.f32.gmra.mrb[0].mxu0 %v3511
        %v3826 = vpop.f32.mrb[0].mxu0
        %v3827 = vadd.f32 %v3666, %v3826
        %v3828 = vpop.f32.mrb[0].mxu0
        %v3829 = vadd.f32 %v3668, %v3828
        %3830 = vmatprep.mubr.f32.mxu0 0.0
        %3831 = vmatmul.mubr.f32.gmra.mrb[0].mxu0 %v3512
        %v3832 = vpop.f32.mrb[0].mxu0
        %v3833 = vadd.f32 %v3672, %v3832
        %v3834 = vpop.f32.mrb[0].mxu0
        %v3835 = vadd.f32 %v3674, %v3834
        %3836 = vmatprep.mubr.f32.mxu0 0.0
        %3837 = vmatmul.mubr.f32.gmra.mrb[0].mxu0 %v3513
        %v3838 = vpop.f32.mrb[0].mxu0
        %v3839 = vadd.f32 %v3678, %v3838
        %v3840 = vpop.f32.mrb[0].mxu0
        %v3841 = vadd.f32 %v3680, %v3840
        %3842 = vmatprep.mubr.f32.mxu0 0.0
        %3843 = vmatmul.mubr.f32.gmra.mrb[0].mxu0 %v3514
        %v3844 = vpop.f32.mrb[0].mxu0
        %v3845 = vadd.f32 %v3684, %v3844
        %v3846 = vpop.f32.mrb[0].mxu0
        %v3847 = vadd.f32 %v3686, %v3846
        %3848 = vmatprep.mubr.f32.mxu0 0.0
        %3849 = vmatmul.mubr.f32.gmra.mrb[0].mxu0 %v3515
        %v3850 = vpop.f32.mrb[0].mxu0
        %v3851 = vadd.f32 %v3690, %v3850
        %v3852 = vpop.f32.mrb[0].mxu0
        %v3853 = vadd.f32 %v3692, %v3852
        %3854 = vdwg.mxu0
        %s3855 = scalar_lea.vmem [#allocation7], 256
        %v3856 = vld [vmem:[%s3855] sm:$0xff]
        %v3857 = vld [vmem:[%s3855 + $0x8] sm:$0xff]
        %v3858 = vld [vmem:[%s3855 + $0x10] sm:$0xff]
        %v3859 = vld [vmem:[%s3855 + $0x18] sm:$0xff]
        %v3860 = vld [vmem:[%s3855 + $0x20] sm:$0xff]
        %v3861 = vld [vmem:[%s3855 + $0x28] sm:$0xff]
        %v3862 = vld [vmem:[%s3855 + $0x30] sm:$0xff]
        %v3863 = vld [vmem:[%s3855 + $0x38] sm:$0xff]
        %v3864 = vld [vmem:[%s3855 + $0x40] sm:$0xff]
        %v3865 = vld [vmem:[%s3855 + $0x48] sm:$0xff]
        %v3866 = vld [vmem:[%s3855 + $0x50] sm:$0xff]
        %v3867 = vld [vmem:[%s3855 + $0x58] sm:$0xff]
        %v3868 = vld [vmem:[%s3855 + $0x60] sm:$0xff]
        %v3869 = vld [vmem:[%s3855 + $0x68] sm:$0xff]
        %v3870 = vld [vmem:[%s3855 + $0x70] sm:$0xff]
        %v3871 = vld [vmem:[%s3855 + $0x78] sm:$0xff]
        %3872 = vmatprep.subr.mxu0 %v3469
        %3873 = vmatpush1.msra.mxu0 %v3468
        %3874 = vmatprep.subr.mxu0 %v3471
        %3875 = vmatpush1.msra.mxu0 %v3470
        %3876 = vmatprep.subr.mxu0 %v3473
        %3877 = vmatpush1.msra.mxu0 %v3472
        %3878 = vmatprep.subr.mxu0 %v3475
        %3879 = vmatpush1.msra.mxu0 %v3474
        %3880 = vmatprep.subr.mxu0 %v3477
        %3881 = vmatpush1.msra.mxu0 %v3476
        %3882 = vmatprep.subr.mxu0 %v3479
        %3883 = vmatpush1.msra.mxu0 %v3478
        %3884 = vmatprep.subr.mxu0 %v3481
        %3885 = vmatpush1.msra.mxu0 %v3480
        %3886 = vmatprep.subr.mxu0 %v3483
        %3887 = vmatpush1.msra.mxu0 %v3482
        %3888 = vmatprep.subr.mxu0 %v3485
        %3889 = vmatpush1.msra.mxu0 %v3484
        %3890 = vmatprep.subr.mxu0 %v3487
        %3891 = vmatpush1.msra.mxu0 %v3486
        %3892 = vmatprep.subr.mxu0 %v3489
        %3893 = vmatpush1.msra.mxu0 %v3488
        %3894 = vmatprep.subr.mxu0 %v3491
        %3895 = vmatpush1.msra.mxu0 %v3490
        %3896 = vmatprep.subr.mxu0 %v3493
        %3897 = vmatpush1.msra.mxu0 %v3492
        %3898 = vmatprep.subr.mxu0 %v3495
        %3899 = vmatpush1.msra.mxu0 %v3494
        %3900 = vmatprep.subr.mxu0 %v3497
        %3901 = vmatpush1.msra.mxu0 %v3496
        %3902 = vmatprep.subr.mxu0 %v3499
        %3903 = vmatpush1.msra.mxu0 %v3498
        %3904 = vmatprep.subr.mxu0 0.0
        %3905 = vmatpush1.msra.mxu0 0.0
        %3906 = vmatprep.subr.mxu0 0.0
        %3907 = vmatpush1.msra.mxu0 0.0
        %3908 = vmatprep.subr.mxu0 0.0
        %3909 = vmatpush1.msra.mxu0 0.0
        %3910 = vmatprep.subr.mxu0 0.0
        %3911 = vmatpush1.msra.mxu0 0.0
        %3912 = vmatprep.subr.mxu0 0.0
        %3913 = vmatpush1.msra.mxu0 0.0
        %3914 = vmatprep.subr.mxu0 0.0
        %3915 = vmatpush1.msra.mxu0 0.0
        %3916 = vmatprep.subr.mxu0 0.0
        %3917 = vmatpush1.msra.mxu0 0.0
        %3918 = vmatprep.subr.mxu0 0.0
        %3919 = vmatpush1.msra.mxu0 0.0
        %3920 = vmatprep.subr.mxu0 0.0
        %3921 = vmatpush1.msra.mxu0 0.0
        %3922 = vmatprep.subr.mxu0 0.0
        %3923 = vmatpush1.msra.mxu0 0.0
        %3924 = vmatprep.subr.mxu0 0.0
        %3925 = vmatpush1.msra.mxu0 0.0
        %3926 = vmatprep.subr.mxu0 0.0
        %3927 = vmatpush1.msra.mxu0 0.0
        %3928 = vmatprep.subr.mxu0 0.0
        %3929 = vmatpush1.msra.mxu0 0.0
        %3930 = vmatprep.subr.mxu0 0.0
        %3931 = vmatpush1.msra.mxu0 0.0
        %3932 = vmatprep.subr.mxu0 0.0
        %3933 = vmatpush1.msra.mxu0 0.0
        %3934 = vmatprep.subr.mxu0 0.0
        %3935 = vmatpush1.msra.mxu0 0.0
        %3936 = vmatprep.mubr.f32.mxu0 0.0
        %3937 = vmatmul.mubr.f32.gmra.mrb[0].mxu0 %v3856
        %v3938 = vpop.f32.mrb[0].mxu0
        %v3939 = vadd.f32 0.0, %v3938
        %v3940 = vpop.f32.mrb[0].mxu0
        %v3941 = vadd.f32 0.0, %v3940
        %3942 = vmatprep.mubr.f32.mxu0 0.0
        %3943 = vmatmul.mubr.f32.gmra.mrb[0].mxu0 %v3857
        %v3944 = vpop.f32.mrb[0].mxu0
        %v3945 = vadd.f32 0.0, %v3944
        %v3946 = vpop.f32.mrb[0].mxu0
        %v3947 = vadd.f32 0.0, %v3946
        %3948 = vmatprep.mubr.f32.mxu0 0.0
        %3949 = vmatmul.mubr.f32.gmra.mrb[0].mxu0 %v3858
        %v3950 = vpop.f32.mrb[0].mxu0
        %v3951 = vadd.f32 0.0, %v3950
        %v3952 = vpop.f32.mrb[0].mxu0
        %v3953 = vadd.f32 0.0, %v3952
        %3954 = vmatprep.mubr.f32.mxu0 0.0
        %3955 = vmatmul.mubr.f32.gmra.mrb[0].mxu0 %v3859
        %v3956 = vpop.f32.mrb[0].mxu0
        %v3957 = vadd.f32 0.0, %v3956
        %v3958 = vpop.f32.mrb[0].mxu0
        %v3959 = vadd.f32 0.0, %v3958
        %3960 = vmatprep.mubr.f32.mxu0 0.0
        %3961 = vmatmul.mubr.f32.gmra.mrb[0].mxu0 %v3860
        %v3962 = vpop.f32.mrb[0].mxu0
        %v3963 = vadd.f32 0.0, %v3962
        %v3964 = vpop.f32.mrb[0].mxu0
        %v3965 = vadd.f32 0.0, %v3964
        %3966 = vmatprep.mubr.f32.mxu0 0.0
        %3967 = vmatmul.mubr.f32.gmra.mrb[0].mxu0 %v3861
        %v3968 = vpop.f32.mrb[0].mxu0
        %v3969 = vadd.f32 0.0, %v3968
        %v3970 = vpop.f32.mrb[0].mxu0
        %v3971 = vadd.f32 0.0, %v3970
        %3972 = vmatprep.mubr.f32.mxu0 0.0
        %3973 = vmatmul.mubr.f32.gmra.mrb[0].mxu0 %v3862
        %v3974 = vpop.f32.mrb[0].mxu0
        %v3975 = vadd.f32 0.0, %v3974
        %v3976 = vpop.f32.mrb[0].mxu0
        %v3977 = vadd.f32 0.0, %v3976
        %3978 = vmatprep.mubr.f32.mxu0 0.0
        %3979 = vmatmul.mubr.f32.gmra.mrb[0].mxu0 %v3863
        %v3980 = vpop.f32.mrb[0].mxu0
        %v3981 = vadd.f32 0.0, %v3980
        %v3982 = vpop.f32.mrb[0].mxu0
        %v3983 = vadd.f32 0.0, %v3982
        %3984 = vmatprep.mubr.f32.mxu0 0.0
        %3985 = vmatmul.mubr.f32.gmra.mrb[0].mxu0 %v3864
        %v3986 = vpop.f32.mrb[0].mxu0
        %v3987 = vadd.f32 0.0, %v3986
        %v3988 = vpop.f32.mrb[0].mxu0
        %v3989 = vadd.f32 0.0, %v3988
        %3990 = vmatprep.mubr.f32.mxu0 0.0
        %3991 = vmatmul.mubr.f32.gmra.mrb[0].mxu0 %v3865
        %v3992 = vpop.f32.mrb[0].mxu0
        %v3993 = vadd.f32 0.0, %v3992
        %v3994 = vpop.f32.mrb[0].mxu0
        %v3995 = vadd.f32 0.0, %v3994
        %3996 = vmatprep.mubr.f32.mxu0 0.0
        %3997 = vmatmul.mubr.f32.gmra.mrb[0].mxu0 %v3866
        %v3998 = vpop.f32.mrb[0].mxu0
        %v3999 = vadd.f32 0.0, %v3998
        %v4000 = vpop.f32.mrb[0].mxu0
        %v4001 = vadd.f32 0.0, %v4000
        %4002 = vmatprep.mubr.f32.mxu0 0.0
        %4003 = vmatmul.mubr.f32.gmra.mrb[0].mxu0 %v3867
        %v4004 = vpop.f32.mrb[0].mxu0
        %v4005 = vadd.f32 0.0, %v4004
        %v4006 = vpop.f32.mrb[0].mxu0
        %v4007 = vadd.f32 0.0, %v4006
        %4008 = vmatprep.mubr.f32.mxu0 0.0
        %4009 = vmatmul.mubr.f32.gmra.mrb[0].mxu0 %v3868
        %v4010 = vpop.f32.mrb[0].mxu0
        %v4011 = vadd.f32 0.0, %v4010
        %v4012 = vpop.f32.mrb[0].mxu0
        %v4013 = vadd.f32 0.0, %v4012
        %4014 = vmatprep.mubr.f32.mxu0 0.0
        %4015 = vmatmul.mubr.f32.gmra.mrb[0].mxu0 %v3869
        %v4016 = vpop.f32.mrb[0].mxu0
        %v4017 = vadd.f32 0.0, %v4016
        %v4018 = vpop.f32.mrb[0].mxu0
        %v4019 = vadd.f32 0.0, %v4018
        %4020 = vmatprep.mubr.f32.mxu0 0.0
        %4021 = vmatmul.mubr.f32.gmra.mrb[0].mxu0 %v3870
        %v4022 = vpop.f32.mrb[0].mxu0
        %v4023 = vadd.f32 0.0, %v4022
        %v4024 = vpop.f32.mrb[0].mxu0
        %v4025 = vadd.f32 0.0, %v4024
        %4026 = vmatprep.mubr.f32.mxu0 0.0
        %4027 = vmatmul.mubr.f32.gmra.mrb[0].mxu0 %v3871
        %v4028 = vpop.f32.mrb[0].mxu0
        %v4029 = vadd.f32 0.0, %v4028
        %v4030 = vpop.f32.mrb[0].mxu0
        %v4031 = vadd.f32 0.0, %v4030
        %4032 = vdwg.mxu0
        %v4033 = vadd.f32 %v3761, %v3939
        %v4034 = vadd.f32 %v3763, %v3941
        %v4035 = vadd.f32 %v3767, %v3945
        %v4036 = vadd.f32 %v3769, %v3947
        %v4037 = vadd.f32 %v3773, %v3951
        %v4038 = vadd.f32 %v3775, %v3953
        %v4039 = vadd.f32 %v3779, %v3957
        %v4040 = vadd.f32 %v3781, %v3959
        %v4041 = vadd.f32 %v3785, %v3963
        %v4042 = vadd.f32 %v3787, %v3965
        %v4043 = vadd.f32 %v3791, %v3969
        %v4044 = vadd.f32 %v3793, %v3971
        %v4045 = vadd.f32 %v3797, %v3975
        %v4046 = vadd.f32 %v3799, %v3977
        %v4047 = vadd.f32 %v3803, %v3981
        %v4048 = vadd.f32 %v3805, %v3983
        %v4049 = vadd.f32 %v3809, %v3987
        %v4050 = vadd.f32 %v3811, %v3989
        %v4051 = vadd.f32 %v3815, %v3993
        %v4052 = vadd.f32 %v3817, %v3995
        %v4053 = vadd.f32 %v3821, %v3999
        %v4054 = vadd.f32 %v3823, %v4001
        %v4055 = vadd.f32 %v3827, %v4005
        %v4056 = vadd.f32 %v3829, %v4007
        %v4057 = vadd.f32 %v3833, %v4011
        %v4058 = vadd.f32 %v3835, %v4013
        %v4059 = vadd.f32 %v3839, %v4017
        %v4060 = vadd.f32 %v3841, %v4019
        %v4061 = vadd.f32 %v3845, %v4023
        %v4062 = vadd.f32 %v3847, %v4025
        %v4063 = vadd.f32 %v3851, %v4029
        %v4064 = vadd.f32 %v3853, %v4031
        %4065 = vrot.lane.b32.xlu0 %v4033, 32
        %v4066 = vpop.permute.xlu0 %4065
        %4067 = vrot.lane.b32.xlu0 %v4035, 32
        %v4068 = vpop.permute.xlu0 %4067
        %4069 = vrot.lane.b32.xlu0 %v4037, 32
        %v4070 = vpop.permute.xlu0 %4069
        %4071 = vrot.lane.b32.xlu0 %v4039, 32
        %v4072 = vpop.permute.xlu0 %4071
        %4073 = vrot.lane.b32.xlu0 %v4041, 32
        %v4074 = vpop.permute.xlu0 %4073
        %4075 = vrot.lane.b32.xlu0 %v4043, 32
        %v4076 = vpop.permute.xlu0 %4075
        %4077 = vrot.lane.b32.xlu0 %v4045, 32
        %v4078 = vpop.permute.xlu0 %4077
        %4079 = vrot.lane.b32.xlu0 %v4047, 32
        %v4080 = vpop.permute.xlu0 %4079
        %4081 = vrot.lane.b32.xlu0 %v4049, 32
        %v4082 = vpop.permute.xlu0 %4081
        %4083 = vrot.lane.b32.xlu0 %v4051, 32
        %v4084 = vpop.permute.xlu0 %4083
        %4085 = vrot.lane.b32.xlu0 %v4053, 32
        %v4086 = vpop.permute.xlu0 %4085
        %4087 = vrot.lane.b32.xlu0 %v4055, 32
        %v4088 = vpop.permute.xlu0 %4087
        %4089 = vrot.lane.b32.xlu0 %v4057, 32
        %v4090 = vpop.permute.xlu0 %4089
        %4091 = vrot.lane.b32.xlu0 %v4059, 32
        %v4092 = vpop.permute.xlu0 %4091
        %4093 = vrot.lane.b32.xlu0 %v4061, 32
        %v4094 = vpop.permute.xlu0 %4093
        %4095 = vrot.lane.b32.xlu0 %v4063, 32
        %v4096 = vpop.permute.xlu0 %4095
        %4097 = vrot.lane.b32.xlu0 %v4034, 32
        %v4098 = vpop.permute.xlu0 %4097
        %4099 = vrot.lane.b32.xlu0 %v4036, 32
        %v4100 = vpop.permute.xlu0 %4099
        %4101 = vrot.lane.b32.xlu0 %v4038, 32
        %v4102 = vpop.permute.xlu0 %4101
        %4103 = vrot.lane.b32.xlu0 %v4040, 32
        %v4104 = vpop.permute.xlu0 %4103
        %4105 = vrot.lane.b32.xlu0 %v4042, 32
        %v4106 = vpop.permute.xlu0 %4105
        %4107 = vrot.lane.b32.xlu0 %v4044, 32
        %v4108 = vpop.permute.xlu0 %4107
        %4109 = vrot.lane.b32.xlu0 %v4046, 32
        %v4110 = vpop.permute.xlu0 %4109
        %4111 = vrot.lane.b32.xlu0 %v4048, 32
        %v4112 = vpop.permute.xlu0 %4111
        %4113 = vrot.lane.b32.xlu0 %v4050, 32
        %v4114 = vpop.permute.xlu0 %4113
        %4115 = vrot.lane.b32.xlu0 %v4052, 32
        %v4116 = vpop.permute.xlu0 %4115
        %4117 = vrot.lane.b32.xlu0 %v4054, 32
        %v4118 = vpop.permute.xlu0 %4117
        %4119 = vrot.lane.b32.xlu0 %v4056, 32
        %v4120 = vpop.permute.xlu0 %4119
        %4121 = vrot.lane.b32.xlu0 %v4058, 32
        %v4122 = vpop.permute.xlu0 %4121
        %4123 = vrot.lane.b32.xlu0 %v4060, 32
        %v4124 = vpop.permute.xlu0 %4123
        %4125 = vrot.lane.b32.xlu0 %v4062, 32
        %v4126 = vpop.permute.xlu0 %4125
        %4127 = vrot.lane.b32.xlu0 %v4064, 32
        %v4128 = vpop.permute.xlu0 %4127
        %vm4129 = vcmp.lt.s32.totalorder %v784, 32
        %v4130 = vsel %vm4129, %v4066, %v4098
        %v4131 = vsel %vm4129, %v4068, %v4100
        %v4132 = vsel %vm4129, %v4070, %v4102
        %v4133 = vsel %vm4129, %v4072, %v4104
        %v4134 = vsel %vm4129, %v4074, %v4106
        %v4135 = vsel %vm4129, %v4076, %v4108
        %v4136 = vsel %vm4129, %v4078, %v4110
        %v4137 = vsel %vm4129, %v4080, %v4112
        %v4138 = vsel %vm4129, %v4082, %v4114
        %v4139 = vsel %vm4129, %v4084, %v4116
        %v4140 = vsel %vm4129, %v4086, %v4118
        %v4141 = vsel %vm4129, %v4088, %v4120
        %v4142 = vsel %vm4129, %v4090, %v4122
        %v4143 = vsel %vm4129, %v4092, %v4124
        %v4144 = vsel %vm4129, %v4094, %v4126
        %v4145 = vsel %vm4129, %v4096, %v4128
        %v4146 = vsel %vm4129, %v4098, %v4066
        %v4147 = vsel %vm4129, %v4100, %v4068
        %v4148 = vsel %vm4129, %v4102, %v4070
        %v4149 = vsel %vm4129, %v4104, %v4072
        %v4150 = vsel %vm4129, %v4106, %v4074
        %v4151 = vsel %vm4129, %v4108, %v4076
        %v4152 = vsel %vm4129, %v4110, %v4078
        %v4153 = vsel %vm4129, %v4112, %v4080
        %v4154 = vsel %vm4129, %v4114, %v4082
        %v4155 = vsel %vm4129, %v4116, %v4084
        %v4156 = vsel %vm4129, %v4118, %v4086
        %v4157 = vsel %vm4129, %v4120, %v4088
        %v4158 = vsel %vm4129, %v4122, %v4090
        %v4159 = vsel %vm4129, %v4124, %v4092
        %v4160 = vsel %vm4129, %v4126, %v4094
        %v4161 = vsel %vm4129, %v4128, %v4096
        %vm4162 = vcmp.ge.s32.totalorder %v380, 2
        %v4163 = vsel %vm4162, 1, 0
        %v4164 = vcvt.s32.f32 %v4163
        %v4166 = vlaneseq
        %v4167 = vshrl.u32 %v4166, 7
        %v4168 = vsub.s32 0, %v4167
        %v4169 = vrot.slane %v4164, %v4168
        %v4170 = vlaneseq
        %v4171 = vshrl.u32 %v4170, 7
        %v4172 = vsub.s32 1, %v4171
        %v4173 = vrot.slane %v4164, %v4172
        %v4176 = vmul.f32 %v4146, %v4169
        %v4177 = vmul.f32 %v4130, %v4173
        %v4178 = vmul.f32 %v4147, %v4169
        %v4179 = vmul.f32 %v4131, %v4173
        %v4180 = vmul.f32 %v4148, %v4169
        %v4181 = vmul.f32 %v4132, %v4173
        %v4182 = vmul.f32 %v4149, %v4169
        %v4183 = vmul.f32 %v4133, %v4173
        %v4184 = vmul.f32 %v4150, %v4169
        %v4185 = vmul.f32 %v4134, %v4173
        %v4186 = vmul.f32 %v4151, %v4169
        %v4187 = vmul.f32 %v4135, %v4173
        %v4188 = vmul.f32 %v4152, %v4169
        %v4189 = vmul.f32 %v4136, %v4173
        %v4190 = vmul.f32 %v4153, %v4169
        %v4191 = vmul.f32 %v4137, %v4173
        %v4192 = vmul.f32 %v4154, %v4169
        %v4193 = vmul.f32 %v4138, %v4173
        %v4194 = vmul.f32 %v4155, %v4169
        %v4195 = vmul.f32 %v4139, %v4173
        %v4196 = vmul.f32 %v4156, %v4169
        %v4197 = vmul.f32 %v4140, %v4173
        %v4198 = vmul.f32 %v4157, %v4169
        %v4199 = vmul.f32 %v4141, %v4173
        %v4200 = vmul.f32 %v4158, %v4169
        %v4201 = vmul.f32 %v4142, %v4173
        %v4202 = vmul.f32 %v4159, %v4169
        %v4203 = vmul.f32 %v4143, %v4173
        %v4204 = vmul.f32 %v4160, %v4169
        %v4205 = vmul.f32 %v4144, %v4173
        %v4206 = vmul.f32 %v4161, %v4169
        %v4207 = vmul.f32 %v4145, %v4173
        %s4208 = scalar_lea.vmem [#allocation7], 384
        %v4209 = vld [vmem:[%s4208] sm:$0xff]
        %v4210 = vld [vmem:[%s4208 + $0x8] sm:$0xff]
        %v4211 = vld [vmem:[%s4208 + $0x10] sm:$0xff]
        %v4212 = vld [vmem:[%s4208 + $0x18] sm:$0xff]
        %v4213 = vld [vmem:[%s4208 + $0x20] sm:$0xff]
        %v4214 = vld [vmem:[%s4208 + $0x28] sm:$0xff]
        %v4215 = vld [vmem:[%s4208 + $0x30] sm:$0xff]
        %v4216 = vld [vmem:[%s4208 + $0x38] sm:$0xff]
        %v4217 = vld [vmem:[%s4208 + $0x40] sm:$0xff]
        %v4218 = vld [vmem:[%s4208 + $0x48] sm:$0xff]
        %v4219 = vld [vmem:[%s4208 + $0x50] sm:$0xff]
        %v4220 = vld [vmem:[%s4208 + $0x58] sm:$0xff]
        %v4221 = vld [vmem:[%s4208 + $0x60] sm:$0xff]
        %v4222 = vld [vmem:[%s4208 + $0x68] sm:$0xff]
        %v4223 = vld [vmem:[%s4208 + $0x70] sm:$0xff]
        %v4224 = vld [vmem:[%s4208 + $0x78] sm:$0xff]
        %s4225 = scalar_lea.vmem [#allocation7], 512
        %v4226 = vld [vmem:[%s4225] sm:$0xff]
        %v4227 = vld [vmem:[%s4225 + $0x8] sm:$0xff]
        %v4228 = vld [vmem:[%s4225 + $0x10] sm:$0xff]
        %v4229 = vld [vmem:[%s4225 + $0x18] sm:$0xff]
        %v4230 = vld [vmem:[%s4225 + $0x20] sm:$0xff]
        %v4231 = vld [vmem:[%s4225 + $0x28] sm:$0xff]
        %v4232 = vld [vmem:[%s4225 + $0x30] sm:$0xff]
        %v4233 = vld [vmem:[%s4225 + $0x38] sm:$0xff]
        %v4234 = vld [vmem:[%s4225 + $0x40] sm:$0xff]
        %v4235 = vld [vmem:[%s4225 + $0x48] sm:$0xff]
        %v4236 = vld [vmem:[%s4225 + $0x50] sm:$0xff]
        %v4237 = vld [vmem:[%s4225 + $0x58] sm:$0xff]
        %v4238 = vld [vmem:[%s4225 + $0x60] sm:$0xff]
        %v4239 = vld [vmem:[%s4225 + $0x68] sm:$0xff]
        %v4240 = vld [vmem:[%s4225 + $0x70] sm:$0xff]
        %v4241 = vld [vmem:[%s4225 + $0x78] sm:$0xff]
        %4242 = vmatprep.subr.mxu0 %v3183
        %4243 = vmatpush1.msra.mxu0 %v3182
        %4244 = vmatprep.subr.mxu0 %v3185
        %4245 = vmatpush1.msra.mxu0 %v3184
        %4246 = vmatprep.subr.mxu0 %v3187
        %4247 = vmatpush1.msra.mxu0 %v3186
        %4248 = vmatprep.subr.mxu0 %v3189
        %4249 = vmatpush1.msra.mxu0 %v3188
        %4250 = vmatprep.subr.mxu0 %v3191
        %4251 = vmatpush1.msra.mxu0 %v3190
        %4252 = vmatprep.subr.mxu0 %v3193
        %4253 = vmatpush1.msra.mxu0 %v3192
        %4254 = vmatprep.subr.mxu0 %v3195
        %4255 = vmatpush1.msra.mxu0 %v3194
        %4256 = vmatprep.subr.mxu0 %v3197
        %4257 = vmatpush1.msra.mxu0 %v3196
        %4258 = vmatprep.subr.mxu0 %v3199
        %4259 = vmatpush1.msra.mxu0 %v3198
        %4260 = vmatprep.subr.mxu0 %v3201
        %4261 = vmatpush1.msra.mxu0 %v3200
        %4262 = vmatprep.subr.mxu0 %v3203
        %4263 = vmatpush1.msra.mxu0 %v3202
        %4264 = vmatprep.subr.mxu0 %v3205
        %4265 = vmatpush1.msra.mxu0 %v3204
        %4266 = vmatprep.subr.mxu0 %v3207
        %4267 = vmatpush1.msra.mxu0 %v3206
        %4268 = vmatprep.subr.mxu0 %v3209
        %4269 = vmatpush1.msra.mxu0 %v3208
        %4270 = vmatprep.subr.mxu0 %v3211
        %4271 = vmatpush1.msra.mxu0 %v3210
        %4272 = vmatprep.subr.mxu0 %v3213
        %4273 = vmatpush1.msra.mxu0 %v3212
        %4274 = vmatprep.subr.mxu0 0.0
        %4275 = vmatpush1.msra.mxu0 0.0
        %4276 = vmatprep.subr.mxu0 0.0
        %4277 = vmatpush1.msra.mxu0 0.0
        %4278 = vmatprep.subr.mxu0 0.0
        %4279 = vmatpush1.msra.mxu0 0.0
        %4280 = vmatprep.subr.mxu0 0.0
        %4281 = vmatpush1.msra.mxu0 0.0
        %4282 = vmatprep.subr.mxu0 0.0
        %4283 = vmatpush1.msra.mxu0 0.0
        %4284 = vmatprep.subr.mxu0 0.0
        %4285 = vmatpush1.msra.mxu0 0.0
        %4286 = vmatprep.subr.mxu0 0.0
        %4287 = vmatpush1.msra.mxu0 0.0
        %4288 = vmatprep.subr.mxu0 0.0
        %4289 = vmatpush1.msra.mxu0 0.0
        %4290 = vmatprep.subr.mxu0 0.0
        %4291 = vmatpush1.msra.mxu0 0.0
        %4292 = vmatprep.subr.mxu0 0.0
        %4293 = vmatpush1.msra.mxu0 0.0
        %4294 = vmatprep.subr.mxu0 0.0
        %4295 = vmatpush1.msra.mxu0 0.0
        %4296 = vmatprep.subr.mxu0 0.0
        %4297 = vmatpush1.msra.mxu0 0.0
        %4298 = vmatprep.subr.mxu0 0.0
        %4299 = vmatpush1.msra.mxu0 0.0
        %4300 = vmatprep.subr.mxu0 0.0
        %4301 = vmatpush1.msra.mxu0 0.0
        %4302 = vmatprep.subr.mxu0 0.0
        %4303 = vmatpush1.msra.mxu0 0.0
        %4304 = vmatprep.subr.mxu0 0.0
        %4305 = vmatpush1.msra.mxu0 0.0
        %4306 = vmatprep.mubr.f32.mxu0 0.0
        %4307 = vmatmul.mubr.f32.gmra.mrb[0].mxu0 %v4226
        %v4308 = vpop.f32.mrb[0].mxu0
        %v4309 = vadd.f32 0.0, %v4308
        %v4310 = vpop.f32.mrb[0].mxu0
        %v4311 = vadd.f32 0.0, %v4310
        %4312 = vmatprep.mubr.f32.mxu0 0.0
        %4313 = vmatmul.mubr.f32.gmra.mrb[0].mxu0 %v4227
        %v4314 = vpop.f32.mrb[0].mxu0
        %v4315 = vadd.f32 0.0, %v4314
        %v4316 = vpop.f32.mrb[0].mxu0
        %v4317 = vadd.f32 0.0, %v4316
        %4318 = vmatprep.mubr.f32.mxu0 0.0
        %4319 = vmatmul.mubr.f32.gmra.mrb[0].mxu0 %v4228
        %v4320 = vpop.f32.mrb[0].mxu0
        %v4321 = vadd.f32 0.0, %v4320
        %v4322 = vpop.f32.mrb[0].mxu0
        %v4323 = vadd.f32 0.0, %v4322
        %4324 = vmatprep.mubr.f32.mxu0 0.0
        %4325 = vmatmul.mubr.f32.gmra.mrb[0].mxu0 %v4229
        %v4326 = vpop.f32.mrb[0].mxu0
        %v4327 = vadd.f32 0.0, %v4326
        %v4328 = vpop.f32.mrb[0].mxu0
        %v4329 = vadd.f32 0.0, %v4328
        %4330 = vmatprep.mubr.f32.mxu0 0.0
        %4331 = vmatmul.mubr.f32.gmra.mrb[0].mxu0 %v4230
        %v4332 = vpop.f32.mrb[0].mxu0
        %v4333 = vadd.f32 0.0, %v4332
        %v4334 = vpop.f32.mrb[0].mxu0
        %v4335 = vadd.f32 0.0, %v4334
        %4336 = vmatprep.mubr.f32.mxu0 0.0
        %4337 = vmatmul.mubr.f32.gmra.mrb[0].mxu0 %v4231
        %v4338 = vpop.f32.mrb[0].mxu0
        %v4339 = vadd.f32 0.0, %v4338
        %v4340 = vpop.f32.mrb[0].mxu0
        %v4341 = vadd.f32 0.0, %v4340
        %4342 = vmatprep.mubr.f32.mxu0 0.0
        %4343 = vmatmul.mubr.f32.gmra.mrb[0].mxu0 %v4232
        %v4344 = vpop.f32.mrb[0].mxu0
        %v4345 = vadd.f32 0.0, %v4344
        %v4346 = vpop.f32.mrb[0].mxu0
        %v4347 = vadd.f32 0.0, %v4346
        %4348 = vmatprep.mubr.f32.mxu0 0.0
        %4349 = vmatmul.mubr.f32.gmra.mrb[0].mxu0 %v4233
        %v4350 = vpop.f32.mrb[0].mxu0
        %v4351 = vadd.f32 0.0, %v4350
        %v4352 = vpop.f32.mrb[0].mxu0
        %v4353 = vadd.f32 0.0, %v4352
        %4354 = vmatprep.mubr.f32.mxu0 0.0
        %4355 = vmatmul.mubr.f32.gmra.mrb[0].mxu0 %v4234
        %v4356 = vpop.f32.mrb[0].mxu0
        %v4357 = vadd.f32 0.0, %v4356
        %v4358 = vpop.f32.mrb[0].mxu0
        %v4359 = vadd.f32 0.0, %v4358
        %4360 = vmatprep.mubr.f32.mxu0 0.0
        %4361 = vmatmul.mubr.f32.gmra.mrb[0].mxu0 %v4235
        %v4362 = vpop.f32.mrb[0].mxu0
        %v4363 = vadd.f32 0.0, %v4362
        %v4364 = vpop.f32.mrb[0].mxu0
        %v4365 = vadd.f32 0.0, %v4364
        %4366 = vmatprep.mubr.f32.mxu0 0.0
        %4367 = vmatmul.mubr.f32.gmra.mrb[0].mxu0 %v4236
        %v4368 = vpop.f32.mrb[0].mxu0
        %v4369 = vadd.f32 0.0, %v4368
        %v4370 = vpop.f32.mrb[0].mxu0
        %v4371 = vadd.f32 0.0, %v4370
        %4372 = vmatprep.mubr.f32.mxu0 0.0
        %4373 = vmatmul.mubr.f32.gmra.mrb[0].mxu0 %v4237
        %v4374 = vpop.f32.mrb[0].mxu0
        %v4375 = vadd.f32 0.0, %v4374
        %v4376 = vpop.f32.mrb[0].mxu0
        %v4377 = vadd.f32 0.0, %v4376
        %4378 = vmatprep.mubr.f32.mxu0 0.0
        %4379 = vmatmul.mubr.f32.gmra.mrb[0].mxu0 %v4238
        %v4380 = vpop.f32.mrb[0].mxu0
        %v4381 = vadd.f32 0.0, %v4380
        %v4382 = vpop.f32.mrb[0].mxu0
        %v4383 = vadd.f32 0.0, %v4382
        %4384 = vmatprep.mubr.f32.mxu0 0.0
        %4385 = vmatmul.mubr.f32.gmra.mrb[0].mxu0 %v4239
        %v4386 = vpop.f32.mrb[0].mxu0
        %v4387 = vadd.f32 0.0, %v4386
        %v4388 = vpop.f32.mrb[0].mxu0
        %v4389 = vadd.f32 0.0, %v4388
        %4390 = vmatprep.mubr.f32.mxu0 0.0
        %4391 = vmatmul.mubr.f32.gmra.mrb[0].mxu0 %v4240
        %v4392 = vpop.f32.mrb[0].mxu0
        %v4393 = vadd.f32 0.0, %v4392
        %v4394 = vpop.f32.mrb[0].mxu0
        %v4395 = vadd.f32 0.0, %v4394
        %4396 = vmatprep.mubr.f32.mxu0 0.0
        %4397 = vmatmul.mubr.f32.gmra.mrb[0].mxu0 %v4241
        %v4398 = vpop.f32.mrb[0].mxu0
        %v4399 = vadd.f32 0.0, %v4398
        %v4400 = vpop.f32.mrb[0].mxu0
        %v4401 = vadd.f32 0.0, %v4400
        %4402 = vdwg.mxu0
        %4403 = vmatprep.subr.mxu0 %v3326
        %4404 = vmatpush1.msra.mxu0 %v3325
        %4405 = vmatprep.subr.mxu0 %v3328
        %4406 = vmatpush1.msra.mxu0 %v3327
        %4407 = vmatprep.subr.mxu0 %v3330
        %4408 = vmatpush1.msra.mxu0 %v3329
        %4409 = vmatprep.subr.mxu0 %v3332
        %4410 = vmatpush1.msra.mxu0 %v3331
        %4411 = vmatprep.subr.mxu0 %v3334
        %4412 = vmatpush1.msra.mxu0 %v3333
        %4413 = vmatprep.subr.mxu0 %v3336
        %4414 = vmatpush1.msra.mxu0 %v3335
        %4415 = vmatprep.subr.mxu0 %v3338
        %4416 = vmatpush1.msra.mxu0 %v3337
        %4417 = vmatprep.subr.mxu0 %v3340
        %4418 = vmatpush1.msra.mxu0 %v3339
        %4419 = vmatprep.subr.mxu0 %v3342
        %4420 = vmatpush1.msra.mxu0 %v3341
        %4421 = vmatprep.subr.mxu0 %v3344
        %4422 = vmatpush1.msra.mxu0 %v3343
        %4423 = vmatprep.subr.mxu0 %v3346
        %4424 = vmatpush1.msra.mxu0 %v3345
        %4425 = vmatprep.subr.mxu0 %v3348
        %4426 = vmatpush1.msra.mxu0 %v3347
        %4427 = vmatprep.subr.mxu0 %v3350
        %4428 = vmatpush1.msra.mxu0 %v3349
        %4429 = vmatprep.subr.mxu0 %v3352
        %4430 = vmatpush1.msra.mxu0 %v3351
        %4431 = vmatprep.subr.mxu0 %v3354
        %4432 = vmatpush1.msra.mxu0 %v3353
        %4433 = vmatprep.subr.mxu0 %v3356
        %4434 = vmatpush1.msra.mxu0 %v3355
        %4435 = vmatprep.subr.mxu0 0.0
        %4436 = vmatpush1.msra.mxu0 0.0
        %4437 = vmatprep.subr.mxu0 0.0
        %4438 = vmatpush1.msra.mxu0 0.0
        %4439 = vmatprep.subr.mxu0 0.0
        %4440 = vmatpush1.msra.mxu0 0.0
        %4441 = vmatprep.subr.mxu0 0.0
        %4442 = vmatpush1.msra.mxu0 0.0
        %4443 = vmatprep.subr.mxu0 0.0
        %4444 = vmatpush1.msra.mxu0 0.0
        %4445 = vmatprep.subr.mxu0 0.0
        %4446 = vmatpush1.msra.mxu0 0.0
        %4447 = vmatprep.subr.mxu0 0.0
        %4448 = vmatpush1.msra.mxu0 0.0
        %4449 = vmatprep.subr.mxu0 0.0
        %4450 = vmatpush1.msra.mxu0 0.0
        %4451 = vmatprep.subr.mxu0 0.0
        %4452 = vmatpush1.msra.mxu0 0.0
        %4453 = vmatprep.subr.mxu0 0.0
        %4454 = vmatpush1.msra.mxu0 0.0
        %4455 = vmatprep.subr.mxu0 0.0
        %4456 = vmatpush1.msra.mxu0 0.0
        %4457 = vmatprep.subr.mxu0 0.0
        %4458 = vmatpush1.msra.mxu0 0.0
        %4459 = vmatprep.subr.mxu0 0.0
        %4460 = vmatpush1.msra.mxu0 0.0
        %4461 = vmatprep.subr.mxu0 0.0
        %4462 = vmatpush1.msra.mxu0 0.0
        %4463 = vmatprep.subr.mxu0 0.0
        %4464 = vmatpush1.msra.mxu0 0.0
        %4465 = vmatprep.subr.mxu0 0.0
        %4466 = vmatpush1.msra.mxu0 0.0
        %4467 = vmatprep.mubr.f32.mxu0 0.0
        %4468 = vmatmul.mubr.f32.gmra.mrb[0].mxu0 %v4209
        %v4469 = vpop.f32.mrb[0].mxu0
        %v4470 = vadd.f32 %v4309, %v4469
        %v4471 = vpop.f32.mrb[0].mxu0
        %v4472 = vadd.f32 %v4311, %v4471
        %4473 = vmatprep.mubr.f32.mxu0 0.0
        %4474 = vmatmul.mubr.f32.gmra.mrb[0].mxu0 %v4210
        %v4475 = vpop.f32.mrb[0].mxu0
        %v4476 = vadd.f32 %v4315, %v4475
        %v4477 = vpop.f32.mrb[0].mxu0
        %v4478 = vadd.f32 %v4317, %v4477
        %4479 = vmatprep.mubr.f32.mxu0 0.0
        %4480 = vmatmul.mubr.f32.gmra.mrb[0].mxu0 %v4211
        %v4481 = vpop.f32.mrb[0].mxu0
        %v4482 = vadd.f32 %v4321, %v4481
        %v4483 = vpop.f32.mrb[0].mxu0
        %v4484 = vadd.f32 %v4323, %v4483
        %4485 = vmatprep.mubr.f32.mxu0 0.0
        %4486 = vmatmul.mubr.f32.gmra.mrb[0].mxu0 %v4212
        %v4487 = vpop.f32.mrb[0].mxu0
        %v4488 = vadd.f32 %v4327, %v4487
        %v4489 = vpop.f32.mrb[0].mxu0
        %v4490 = vadd.f32 %v4329, %v4489
        %4491 = vmatprep.mubr.f32.mxu0 0.0
        %4492 = vmatmul.mubr.f32.gmra.mrb[0].mxu0 %v4213
        %v4493 = vpop.f32.mrb[0].mxu0
        %v4494 = vadd.f32 %v4333, %v4493
        %v4495 = vpop.f32.mrb[0].mxu0
        %v4496 = vadd.f32 %v4335, %v4495
        %4497 = vmatprep.mubr.f32.mxu0 0.0
        %4498 = vmatmul.mubr.f32.gmra.mrb[0].mxu0 %v4214
        %v4499 = vpop.f32.mrb[0].mxu0
        %v4500 = vadd.f32 %v4339, %v4499
        %v4501 = vpop.f32.mrb[0].mxu0
        %v4502 = vadd.f32 %v4341, %v4501
        %4503 = vmatprep.mubr.f32.mxu0 0.0
        %4504 = vmatmul.mubr.f32.gmra.mrb[0].mxu0 %v4215
        %v4505 = vpop.f32.mrb[0].mxu0
        %v4506 = vadd.f32 %v4345, %v4505
        %v4507 = vpop.f32.mrb[0].mxu0
        %v4508 = vadd.f32 %v4347, %v4507
        %4509 = vmatprep.mubr.f32.mxu0 0.0
        %4510 = vmatmul.mubr.f32.gmra.mrb[0].mxu0 %v4216
        %v4511 = vpop.f32.mrb[0].mxu0
        %v4512 = vadd.f32 %v4351, %v4511
        %v4513 = vpop.f32.mrb[0].mxu0
        %v4514 = vadd.f32 %v4353, %v4513
        %4515 = vmatprep.mubr.f32.mxu0 0.0
        %4516 = vmatmul.mubr.f32.gmra.mrb[0].mxu0 %v4217
        %v4517 = vpop.f32.mrb[0].mxu0
        %v4518 = vadd.f32 %v4357, %v4517
        %v4519 = vpop.f32.mrb[0].mxu0
        %v4520 = vadd.f32 %v4359, %v4519
        %4521 = vmatprep.mubr.f32.mxu0 0.0
        %4522 = vmatmul.mubr.f32.gmra.mrb[0].mxu0 %v4218
        %v4523 = vpop.f32.mrb[0].mxu0
        %v4524 = vadd.f32 %v4363, %v4523
        %v4525 = vpop.f32.mrb[0].mxu0
        %v4526 = vadd.f32 %v4365, %v4525
        %4527 = vmatprep.mubr.f32.mxu0 0.0
        %4528 = vmatmul.mubr.f32.gmra.mrb[0].mxu0 %v4219
        %v4529 = vpop.f32.mrb[0].mxu0
        %v4530 = vadd.f32 %v4369, %v4529
        %v4531 = vpop.f32.mrb[0].mxu0
        %v4532 = vadd.f32 %v4371, %v4531
        %4533 = vmatprep.mubr.f32.mxu0 0.0
        %4534 = vmatmul.mubr.f32.gmra.mrb[0].mxu0 %v4220
        %v4535 = vpop.f32.mrb[0].mxu0
        %v4536 = vadd.f32 %v4375, %v4535
        %v4537 = vpop.f32.mrb[0].mxu0
        %v4538 = vadd.f32 %v4377, %v4537
        %4539 = vmatprep.mubr.f32.mxu0 0.0
        %4540 = vmatmul.mubr.f32.gmra.mrb[0].mxu0 %v4221
        %v4541 = vpop.f32.mrb[0].mxu0
        %v4542 = vadd.f32 %v4381, %v4541
        %v4543 = vpop.f32.mrb[0].mxu0
        %v4544 = vadd.f32 %v4383, %v4543
        %4545 = vmatprep.mubr.f32.mxu0 0.0
        %4546 = vmatmul.mubr.f32.gmra.mrb[0].mxu0 %v4222
        %v4547 = vpop.f32.mrb[0].mxu0
        %v4548 = vadd.f32 %v4387, %v4547
        %v4549 = vpop.f32.mrb[0].mxu0
        %v4550 = vadd.f32 %v4389, %v4549
        %4551 = vmatprep.mubr.f32.mxu0 0.0
        %4552 = vmatmul.mubr.f32.gmra.mrb[0].mxu0 %v4223
        %v4553 = vpop.f32.mrb[0].mxu0
        %v4554 = vadd.f32 %v4393, %v4553
        %v4555 = vpop.f32.mrb[0].mxu0
        %v4556 = vadd.f32 %v4395, %v4555
        %4557 = vmatprep.mubr.f32.mxu0 0.0
        %4558 = vmatmul.mubr.f32.gmra.mrb[0].mxu0 %v4224
        %v4559 = vpop.f32.mrb[0].mxu0
        %v4560 = vadd.f32 %v4399, %v4559
        %v4561 = vpop.f32.mrb[0].mxu0
        %v4562 = vadd.f32 %v4401, %v4561
        %4563 = vdwg.mxu0
        %s4564 = scalar_lea.vmem [#allocation7], 640
        %v4565 = vld [vmem:[%s4564] sm:$0xff]
        %v4566 = vld [vmem:[%s4564 + $0x8] sm:$0xff]
        %v4567 = vld [vmem:[%s4564 + $0x10] sm:$0xff]
        %v4568 = vld [vmem:[%s4564 + $0x18] sm:$0xff]
        %v4569 = vld [vmem:[%s4564 + $0x20] sm:$0xff]
        %v4570 = vld [vmem:[%s4564 + $0x28] sm:$0xff]
        %v4571 = vld [vmem:[%s4564 + $0x30] sm:$0xff]
        %v4572 = vld [vmem:[%s4564 + $0x38] sm:$0xff]
        %v4573 = vld [vmem:[%s4564 + $0x40] sm:$0xff]
        %v4574 = vld [vmem:[%s4564 + $0x48] sm:$0xff]
        %v4575 = vld [vmem:[%s4564 + $0x50] sm:$0xff]
        %v4576 = vld [vmem:[%s4564 + $0x58] sm:$0xff]
        %v4577 = vld [vmem:[%s4564 + $0x60] sm:$0xff]
        %v4578 = vld [vmem:[%s4564 + $0x68] sm:$0xff]
        %v4579 = vld [vmem:[%s4564 + $0x70] sm:$0xff]
        %v4580 = vld [vmem:[%s4564 + $0x78] sm:$0xff]
        %4581 = vmatprep.subr.mxu0 %v3469
        %4582 = vmatpush1.msra.mxu0 %v3468
        %4583 = vmatprep.subr.mxu0 %v3471
        %4584 = vmatpush1.msra.mxu0 %v3470
        %4585 = vmatprep.subr.mxu0 %v3473
        %4586 = vmatpush1.msra.mxu0 %v3472
        %4587 = vmatprep.subr.mxu0 %v3475
        %4588 = vmatpush1.msra.mxu0 %v3474
        %4589 = vmatprep.subr.mxu0 %v3477
        %4590 = vmatpush1.msra.mxu0 %v3476
        %4591 = vmatprep.subr.mxu0 %v3479
        %4592 = vmatpush1.msra.mxu0 %v3478
        %4593 = vmatprep.subr.mxu0 %v3481
        %4594 = vmatpush1.msra.mxu0 %v3480
        %4595 = vmatprep.subr.mxu0 %v3483
        %4596 = vmatpush1.msra.mxu0 %v3482
        %4597 = vmatprep.subr.mxu0 %v3485
        %4598 = vmatpush1.msra.mxu0 %v3484
        %4599 = vmatprep.subr.mxu0 %v3487
        %4600 = vmatpush1.msra.mxu0 %v3486
        %4601 = vmatprep.subr.mxu0 %v3489
        %4602 = vmatpush1.msra.mxu0 %v3488
        %4603 = vmatprep.subr.mxu0 %v3491
        %4604 = vmatpush1.msra.mxu0 %v3490
        %4605 = vmatprep.subr.mxu0 %v3493
        %4606 = vmatpush1.msra.mxu0 %v3492
        %4607 = vmatprep.subr.mxu0 %v3495
        %4608 = vmatpush1.msra.mxu0 %v3494
        %4609 = vmatprep.subr.mxu0 %v3497
        %4610 = vmatpush1.msra.mxu0 %v3496
        %4611 = vmatprep.subr.mxu0 %v3499
        %4612 = vmatpush1.msra.mxu0 %v3498
        %4613 = vmatprep.subr.mxu0 0.0
        %4614 = vmatpush1.msra.mxu0 0.0
        %4615 = vmatprep.subr.mxu0 0.0
        %4616 = vmatpush1.msra.mxu0 0.0
        %4617 = vmatprep.subr.mxu0 0.0
        %4618 = vmatpush1.msra.mxu0 0.0
        %4619 = vmatprep.subr.mxu0 0.0
        %4620 = vmatpush1.msra.mxu0 0.0
        %4621 = vmatprep.subr.mxu0 0.0
        %4622 = vmatpush1.msra.mxu0 0.0
        %4623 = vmatprep.subr.mxu0 0.0
        %4624 = vmatpush1.msra.mxu0 0.0
        %4625 = vmatprep.subr.mxu0 0.0
        %4626 = vmatpush1.msra.mxu0 0.0
        %4627 = vmatprep.subr.mxu0 0.0
        %4628 = vmatpush1.msra.mxu0 0.0
        %4629 = vmatprep.subr.mxu0 0.0
        %4630 = vmatpush1.msra.mxu0 0.0
        %4631 = vmatprep.subr.mxu0 0.0
        %4632 = vmatpush1.msra.mxu0 0.0
        %4633 = vmatprep.subr.mxu0 0.0
        %4634 = vmatpush1.msra.mxu0 0.0
        %4635 = vmatprep.subr.mxu0 0.0
        %4636 = vmatpush1.msra.mxu0 0.0
        %4637 = vmatprep.subr.mxu0 0.0
        %4638 = vmatpush1.msra.mxu0 0.0
        %4639 = vmatprep.subr.mxu0 0.0
        %4640 = vmatpush1.msra.mxu0 0.0
        %4641 = vmatprep.subr.mxu0 0.0
        %4642 = vmatpush1.msra.mxu0 0.0
        %4643 = vmatprep.subr.mxu0 0.0
        %4644 = vmatpush1.msra.mxu0 0.0
        %4645 = vmatprep.mubr.f32.mxu0 0.0
        %4646 = vmatmul.mubr.f32.gmra.mrb[0].mxu0 %v4565
        %v4647 = vpop.f32.mrb[0].mxu0
        %v4648 = vadd.f32 0.0, %v4647
        %v4649 = vpop.f32.mrb[0].mxu0
        %v4650 = vadd.f32 0.0, %v4649
        %4651 = vmatprep.mubr.f32.mxu0 0.0
        %4652 = vmatmul.mubr.f32.gmra.mrb[0].mxu0 %v4566
        %v4653 = vpop.f32.mrb[0].mxu0
        %v4654 = vadd.f32 0.0, %v4653
        %v4655 = vpop.f32.mrb[0].mxu0
        %v4656 = vadd.f32 0.0, %v4655
        %4657 = vmatprep.mubr.f32.mxu0 0.0
        %4658 = vmatmul.mubr.f32.gmra.mrb[0].mxu0 %v4567
        %v4659 = vpop.f32.mrb[0].mxu0
        %v4660 = vadd.f32 0.0, %v4659
        %v4661 = vpop.f32.mrb[0].mxu0
        %v4662 = vadd.f32 0.0, %v4661
        %4663 = vmatprep.mubr.f32.mxu0 0.0
        %4664 = vmatmul.mubr.f32.gmra.mrb[0].mxu0 %v4568
        %v4665 = vpop.f32.mrb[0].mxu0
        %v4666 = vadd.f32 0.0, %v4665
        %v4667 = vpop.f32.mrb[0].mxu0
        %v4668 = vadd.f32 0.0, %v4667
        %4669 = vmatprep.mubr.f32.mxu0 0.0
        %4670 = vmatmul.mubr.f32.gmra.mrb[0].mxu0 %v4569
        %v4671 = vpop.f32.mrb[0].mxu0
        %v4672 = vadd.f32 0.0, %v4671
        %v4673 = vpop.f32.mrb[0].mxu0
        %v4674 = vadd.f32 0.0, %v4673
        %4675 = vmatprep.mubr.f32.mxu0 0.0
        %4676 = vmatmul.mubr.f32.gmra.mrb[0].mxu0 %v4570
        %v4677 = vpop.f32.mrb[0].mxu0
        %v4678 = vadd.f32 0.0, %v4677
        %v4679 = vpop.f32.mrb[0].mxu0
        %v4680 = vadd.f32 0.0, %v4679
        %4681 = vmatprep.mubr.f32.mxu0 0.0
        %4682 = vmatmul.mubr.f32.gmra.mrb[0].mxu0 %v4571
        %v4683 = vpop.f32.mrb[0].mxu0
        %v4684 = vadd.f32 0.0, %v4683
        %v4685 = vpop.f32.mrb[0].mxu0
        %v4686 = vadd.f32 0.0, %v4685
        %4687 = vmatprep.mubr.f32.mxu0 0.0
        %4688 = vmatmul.mubr.f32.gmra.mrb[0].mxu0 %v4572
        %v4689 = vpop.f32.mrb[0].mxu0
        %v4690 = vadd.f32 0.0, %v4689
        %v4691 = vpop.f32.mrb[0].mxu0
        %v4692 = vadd.f32 0.0, %v4691
        %4693 = vmatprep.mubr.f32.mxu0 0.0
        %4694 = vmatmul.mubr.f32.gmra.mrb[0].mxu0 %v4573
        %v4695 = vpop.f32.mrb[0].mxu0
        %v4696 = vadd.f32 0.0, %v4695
        %v4697 = vpop.f32.mrb[0].mxu0
        %v4698 = vadd.f32 0.0, %v4697
        %4699 = vmatprep.mubr.f32.mxu0 0.0
        %4700 = vmatmul.mubr.f32.gmra.mrb[0].mxu0 %v4574
        %v4701 = vpop.f32.mrb[0].mxu0
        %v4702 = vadd.f32 0.0, %v4701
        %v4703 = vpop.f32.mrb[0].mxu0
        %v4704 = vadd.f32 0.0, %v4703
        %4705 = vmatprep.mubr.f32.mxu0 0.0
        %4706 = vmatmul.mubr.f32.gmra.mrb[0].mxu0 %v4575
        %v4707 = vpop.f32.mrb[0].mxu0
        %v4708 = vadd.f32 0.0, %v4707
        %v4709 = vpop.f32.mrb[0].mxu0
        %v4710 = vadd.f32 0.0, %v4709
        %4711 = vmatprep.mubr.f32.mxu0 0.0
        %4712 = vmatmul.mubr.f32.gmra.mrb[0].mxu0 %v4576
        %v4713 = vpop.f32.mrb[0].mxu0
        %v4714 = vadd.f32 0.0, %v4713
        %v4715 = vpop.f32.mrb[0].mxu0
        %v4716 = vadd.f32 0.0, %v4715
        %4717 = vmatprep.mubr.f32.mxu0 0.0
        %4718 = vmatmul.mubr.f32.gmra.mrb[0].mxu0 %v4577
        %v4719 = vpop.f32.mrb[0].mxu0
        %v4720 = vadd.f32 0.0, %v4719
        %v4721 = vpop.f32.mrb[0].mxu0
        %v4722 = vadd.f32 0.0, %v4721
        %4723 = vmatprep.mubr.f32.mxu0 0.0
        %4724 = vmatmul.mubr.f32.gmra.mrb[0].mxu0 %v4578
        %v4725 = vpop.f32.mrb[0].mxu0
        %v4726 = vadd.f32 0.0, %v4725
        %v4727 = vpop.f32.mrb[0].mxu0
        %v4728 = vadd.f32 0.0, %v4727
        %4729 = vmatprep.mubr.f32.mxu0 0.0
        %4730 = vmatmul.mubr.f32.gmra.mrb[0].mxu0 %v4579
        %v4731 = vpop.f32.mrb[0].mxu0
        %v4732 = vadd.f32 0.0, %v4731
        %v4733 = vpop.f32.mrb[0].mxu0
        %v4734 = vadd.f32 0.0, %v4733
        %4735 = vmatprep.mubr.f32.mxu0 0.0
        %4736 = vmatmul.mubr.f32.gmra.mrb[0].mxu0 %v4580
        %v4737 = vpop.f32.mrb[0].mxu0
        %v4738 = vadd.f32 0.0, %v4737
        %v4739 = vpop.f32.mrb[0].mxu0
        %v4740 = vadd.f32 0.0, %v4739
        %4741 = vdwg.mxu0
        %v4742 = vadd.f32 %v4470, %v4648
        %v4743 = vadd.f32 %v4472, %v4650
        %v4744 = vadd.f32 %v4476, %v4654
        %v4745 = vadd.f32 %v4478, %v4656
        %v4746 = vadd.f32 %v4482, %v4660
        %v4747 = vadd.f32 %v4484, %v4662
        %v4748 = vadd.f32 %v4488, %v4666
        %v4749 = vadd.f32 %v4490, %v4668
        %v4750 = vadd.f32 %v4494, %v4672
        %v4751 = vadd.f32 %v4496, %v4674
        %v4752 = vadd.f32 %v4500, %v4678
        %v4753 = vadd.f32 %v4502, %v4680
        %v4754 = vadd.f32 %v4506, %v4684
        %v4755 = vadd.f32 %v4508, %v4686
        %v4756 = vadd.f32 %v4512, %v4690
        %v4757 = vadd.f32 %v4514, %v4692
        %v4758 = vadd.f32 %v4518, %v4696
        %v4759 = vadd.f32 %v4520, %v4698
        %v4760 = vadd.f32 %v4524, %v4702
        %v4761 = vadd.f32 %v4526, %v4704
        %v4762 = vadd.f32 %v4530, %v4708
        %v4763 = vadd.f32 %v4532, %v4710
        %v4764 = vadd.f32 %v4536, %v4714
        %v4765 = vadd.f32 %v4538, %v4716
        %v4766 = vadd.f32 %v4542, %v4720
        %v4767 = vadd.f32 %v4544, %v4722
        %v4768 = vadd.f32 %v4548, %v4726
        %v4769 = vadd.f32 %v4550, %v4728
        %v4770 = vadd.f32 %v4554, %v4732
        %v4771 = vadd.f32 %v4556, %v4734
        %v4772 = vadd.f32 %v4560, %v4738
        %v4773 = vadd.f32 %v4562, %v4740
        %v4774 = vadd.f32 %v4176, %v4742
        %v4775 = vadd.f32 %v4177, %v4743
        %v4776 = vadd.f32 %v4178, %v4744
        %v4777 = vadd.f32 %v4179, %v4745
        %v4778 = vadd.f32 %v4180, %v4746
        %v4779 = vadd.f32 %v4181, %v4747
        %v4780 = vadd.f32 %v4182, %v4748
        %v4781 = vadd.f32 %v4183, %v4749
        %v4782 = vadd.f32 %v4184, %v4750
        %v4783 = vadd.f32 %v4185, %v4751
        %v4784 = vadd.f32 %v4186, %v4752
        %v4785 = vadd.f32 %v4187, %v4753
        %v4786 = vadd.f32 %v4188, %v4754
        %v4787 = vadd.f32 %v4189, %v4755
        %v4788 = vadd.f32 %v4190, %v4756
        %v4789 = vadd.f32 %v4191, %v4757
        %v4790 = vadd.f32 %v4192, %v4758
        %v4791 = vadd.f32 %v4193, %v4759
        %v4792 = vadd.f32 %v4194, %v4760
        %v4793 = vadd.f32 %v4195, %v4761
        %v4794 = vadd.f32 %v4196, %v4762
        %v4795 = vadd.f32 %v4197, %v4763
        %v4796 = vadd.f32 %v4198, %v4764
        %v4797 = vadd.f32 %v4199, %v4765
        %v4798 = vadd.f32 %v4200, %v4766
        %v4799 = vadd.f32 %v4201, %v4767
        %v4800 = vadd.f32 %v4202, %v4768
        %v4801 = vadd.f32 %v4203, %v4769
        %v4802 = vadd.f32 %v4204, %v4770
        %v4803 = vadd.f32 %v4205, %v4771
        %v4804 = vadd.f32 %v4206, %v4772
        %v4805 = vadd.f32 %v4207, %v4773
        %s4806 = scalar_lea.vmem [#allocation7], 768
        %v4807 = vld [vmem:[%s4806] sm:$0xff]
        %v4808 = vld [vmem:[%s4806 + $0x8] sm:$0xff]
        %v4809 = vld [vmem:[%s4806 + $0x10] sm:$0xff]
        %v4810 = vld [vmem:[%s4806 + $0x18] sm:$0xff]
        %v4811 = vld [vmem:[%s4806 + $0x20] sm:$0xff]
        %v4812 = vld [vmem:[%s4806 + $0x28] sm:$0xff]
        %v4813 = vld [vmem:[%s4806 + $0x30] sm:$0xff]
        %v4814 = vld [vmem:[%s4806 + $0x38] sm:$0xff]
        %v4815 = vld [vmem:[%s4806 + $0x40] sm:$0xff]
        %v4816 = vld [vmem:[%s4806 + $0x48] sm:$0xff]
        %v4817 = vld [vmem:[%s4806 + $0x50] sm:$0xff]
        %v4818 = vld [vmem:[%s4806 + $0x58] sm:$0xff]
        %v4819 = vld [vmem:[%s4806 + $0x60] sm:$0xff]
        %v4820 = vld [vmem:[%s4806 + $0x68] sm:$0xff]
        %v4821 = vld [vmem:[%s4806 + $0x70] sm:$0xff]
        %v4822 = vld [vmem:[%s4806 + $0x78] sm:$0xff]
        %s4823 = scalar_lea.vmem [#allocation7], 896
        %v4824 = vld [vmem:[%s4823] sm:$0xff]
        %v4825 = vld [vmem:[%s4823 + $0x8] sm:$0xff]
        %v4826 = vld [vmem:[%s4823 + $0x10] sm:$0xff]
        %v4827 = vld [vmem:[%s4823 + $0x18] sm:$0xff]
        %v4828 = vld [vmem:[%s4823 + $0x20] sm:$0xff]
        %v4829 = vld [vmem:[%s4823 + $0x28] sm:$0xff]
        %v4830 = vld [vmem:[%s4823 + $0x30] sm:$0xff]
        %v4831 = vld [vmem:[%s4823 + $0x38] sm:$0xff]
        %v4832 = vld [vmem:[%s4823 + $0x40] sm:$0xff]
        %v4833 = vld [vmem:[%s4823 + $0x48] sm:$0xff]
        %v4834 = vld [vmem:[%s4823 + $0x50] sm:$0xff]
        %v4835 = vld [vmem:[%s4823 + $0x58] sm:$0xff]
        %v4836 = vld [vmem:[%s4823 + $0x60] sm:$0xff]
        %v4837 = vld [vmem:[%s4823 + $0x68] sm:$0xff]
        %v4838 = vld [vmem:[%s4823 + $0x70] sm:$0xff]
        %v4839 = vld [vmem:[%s4823 + $0x78] sm:$0xff]
        %4840 = vmatprep.subr.mxu0 %v3183
        %4841 = vmatpush1.msra.mxu0 %v3182
        %4842 = vmatprep.subr.mxu0 %v3185
        %4843 = vmatpush1.msra.mxu0 %v3184
        %4844 = vmatprep.subr.mxu0 %v3187
        %4845 = vmatpush1.msra.mxu0 %v3186
        %4846 = vmatprep.subr.mxu0 %v3189
        %4847 = vmatpush1.msra.mxu0 %v3188
        %4848 = vmatprep.subr.mxu0 %v3191
        %4849 = vmatpush1.msra.mxu0 %v3190
        %4850 = vmatprep.subr.mxu0 %v3193
        %4851 = vmatpush1.msra.mxu0 %v3192
        %4852 = vmatprep.subr.mxu0 %v3195
        %4853 = vmatpush1.msra.mxu0 %v3194
        %4854 = vmatprep.subr.mxu0 %v3197
        %4855 = vmatpush1.msra.mxu0 %v3196
        %4856 = vmatprep.subr.mxu0 %v3199
        %4857 = vmatpush1.msra.mxu0 %v3198
        %4858 = vmatprep.subr.mxu0 %v3201
        %4859 = vmatpush1.msra.mxu0 %v3200
        %4860 = vmatprep.subr.mxu0 %v3203
        %4861 = vmatpush1.msra.mxu0 %v3202
        %4862 = vmatprep.subr.mxu0 %v3205
        %4863 = vmatpush1.msra.mxu0 %v3204
        %4864 = vmatprep.subr.mxu0 %v3207
        %4865 = vmatpush1.msra.mxu0 %v3206
        %4866 = vmatprep.subr.mxu0 %v3209
        %4867 = vmatpush1.msra.mxu0 %v3208
        %4868 = vmatprep.subr.mxu0 %v3211
        %4869 = vmatpush1.msra.mxu0 %v3210
        %4870 = vmatprep.subr.mxu0 %v3213
        %4871 = vmatpush1.msra.mxu0 %v3212
        %4872 = vmatprep.subr.mxu0 0.0
        %4873 = vmatpush1.msra.mxu0 0.0
        %4874 = vmatprep.subr.mxu0 0.0
        %4875 = vmatpush1.msra.mxu0 0.0
        %4876 = vmatprep.subr.mxu0 0.0
        %4877 = vmatpush1.msra.mxu0 0.0
        %4878 = vmatprep.subr.mxu0 0.0
        %4879 = vmatpush1.msra.mxu0 0.0
        %4880 = vmatprep.subr.mxu0 0.0
        %4881 = vmatpush1.msra.mxu0 0.0
        %4882 = vmatprep.subr.mxu0 0.0
        %4883 = vmatpush1.msra.mxu0 0.0
        %4884 = vmatprep.subr.mxu0 0.0
        %4885 = vmatpush1.msra.mxu0 0.0
        %4886 = vmatprep.subr.mxu0 0.0
        %4887 = vmatpush1.msra.mxu0 0.0
        %4888 = vmatprep.subr.mxu0 0.0
        %4889 = vmatpush1.msra.mxu0 0.0
        %4890 = vmatprep.subr.mxu0 0.0
        %4891 = vmatpush1.msra.mxu0 0.0
        %4892 = vmatprep.subr.mxu0 0.0
        %4893 = vmatpush1.msra.mxu0 0.0
        %4894 = vmatprep.subr.mxu0 0.0
        %4895 = vmatpush1.msra.mxu0 0.0
        %4896 = vmatprep.subr.mxu0 0.0
        %4897 = vmatpush1.msra.mxu0 0.0
        %4898 = vmatprep.subr.mxu0 0.0
        %4899 = vmatpush1.msra.mxu0 0.0
        %4900 = vmatprep.subr.mxu0 0.0
        %4901 = vmatpush1.msra.mxu0 0.0
        %4902 = vmatprep.subr.mxu0 0.0
        %4903 = vmatpush1.msra.mxu0 0.0
        %4904 = vmatprep.mubr.f32.mxu0 0.0
        %4905 = vmatmul.mubr.f32.gmra.mrb[0].mxu0 %v4824
        %v4906 = vpop.f32.mrb[0].mxu0
        %v4907 = vadd.f32 0.0, %v4906
        %v4908 = vpop.f32.mrb[0].mxu0
        %v4909 = vadd.f32 0.0, %v4908
        %4910 = vmatprep.mubr.f32.mxu0 0.0
        %4911 = vmatmul.mubr.f32.gmra.mrb[0].mxu0 %v4825
        %v4912 = vpop.f32.mrb[0].mxu0
        %v4913 = vadd.f32 0.0, %v4912
        %v4914 = vpop.f32.mrb[0].mxu0
        %v4915 = vadd.f32 0.0, %v4914
        %4916 = vmatprep.mubr.f32.mxu0 0.0
        %4917 = vmatmul.mubr.f32.gmra.mrb[0].mxu0 %v4826
        %v4918 = vpop.f32.mrb[0].mxu0
        %v4919 = vadd.f32 0.0, %v4918
        %v4920 = vpop.f32.mrb[0].mxu0
        %v4921 = vadd.f32 0.0, %v4920
        %4922 = vmatprep.mubr.f32.mxu0 0.0
        %4923 = vmatmul.mubr.f32.gmra.mrb[0].mxu0 %v4827
        %v4924 = vpop.f32.mrb[0].mxu0
        %v4925 = vadd.f32 0.0, %v4924
        %v4926 = vpop.f32.mrb[0].mxu0
        %v4927 = vadd.f32 0.0, %v4926
        %4928 = vmatprep.mubr.f32.mxu0 0.0
        %4929 = vmatmul.mubr.f32.gmra.mrb[0].mxu0 %v4828
        %v4930 = vpop.f32.mrb[0].mxu0
        %v4931 = vadd.f32 0.0, %v4930
        %v4932 = vpop.f32.mrb[0].mxu0
        %v4933 = vadd.f32 0.0, %v4932
        %4934 = vmatprep.mubr.f32.mxu0 0.0
        %4935 = vmatmul.mubr.f32.gmra.mrb[0].mxu0 %v4829
        %v4936 = vpop.f32.mrb[0].mxu0
        %v4937 = vadd.f32 0.0, %v4936
        %v4938 = vpop.f32.mrb[0].mxu0
        %v4939 = vadd.f32 0.0, %v4938
        %4940 = vmatprep.mubr.f32.mxu0 0.0
        %4941 = vmatmul.mubr.f32.gmra.mrb[0].mxu0 %v4830
        %v4942 = vpop.f32.mrb[0].mxu0
        %v4943 = vadd.f32 0.0, %v4942
        %v4944 = vpop.f32.mrb[0].mxu0
        %v4945 = vadd.f32 0.0, %v4944
        %4946 = vmatprep.mubr.f32.mxu0 0.0
        %4947 = vmatmul.mubr.f32.gmra.mrb[0].mxu0 %v4831
        %v4948 = vpop.f32.mrb[0].mxu0
        %v4949 = vadd.f32 0.0, %v4948
        %v4950 = vpop.f32.mrb[0].mxu0
        %v4951 = vadd.f32 0.0, %v4950
        %4952 = vmatprep.mubr.f32.mxu0 0.0
        %4953 = vmatmul.mubr.f32.gmra.mrb[0].mxu0 %v4832
        %v4954 = vpop.f32.mrb[0].mxu0
        %v4955 = vadd.f32 0.0, %v4954
        %v4956 = vpop.f32.mrb[0].mxu0
        %v4957 = vadd.f32 0.0, %v4956
        %4958 = vmatprep.mubr.f32.mxu0 0.0
        %4959 = vmatmul.mubr.f32.gmra.mrb[0].mxu0 %v4833
        %v4960 = vpop.f32.mrb[0].mxu0
        %v4961 = vadd.f32 0.0, %v4960
        %v4962 = vpop.f32.mrb[0].mxu0
        %v4963 = vadd.f32 0.0, %v4962
        %4964 = vmatprep.mubr.f32.mxu0 0.0
        %4965 = vmatmul.mubr.f32.gmra.mrb[0].mxu0 %v4834
        %v4966 = vpop.f32.mrb[0].mxu0
        %v4967 = vadd.f32 0.0, %v4966
        %v4968 = vpop.f32.mrb[0].mxu0
        %v4969 = vadd.f32 0.0, %v4968
        %4970 = vmatprep.mubr.f32.mxu0 0.0
        %4971 = vmatmul.mubr.f32.gmra.mrb[0].mxu0 %v4835
        %v4972 = vpop.f32.mrb[0].mxu0
        %v4973 = vadd.f32 0.0, %v4972
        %v4974 = vpop.f32.mrb[0].mxu0
        %v4975 = vadd.f32 0.0, %v4974
        %4976 = vmatprep.mubr.f32.mxu0 0.0
        %4977 = vmatmul.mubr.f32.gmra.mrb[0].mxu0 %v4836
        %v4978 = vpop.f32.mrb[0].mxu0
        %v4979 = vadd.f32 0.0, %v4978
        %v4980 = vpop.f32.mrb[0].mxu0
        %v4981 = vadd.f32 0.0, %v4980
        %4982 = vmatprep.mubr.f32.mxu0 0.0
        %4983 = vmatmul.mubr.f32.gmra.mrb[0].mxu0 %v4837
        %v4984 = vpop.f32.mrb[0].mxu0
        %v4985 = vadd.f32 0.0, %v4984
        %v4986 = vpop.f32.mrb[0].mxu0
        %v4987 = vadd.f32 0.0, %v4986
        %4988 = vmatprep.mubr.f32.mxu0 0.0
        %4989 = vmatmul.mubr.f32.gmra.mrb[0].mxu0 %v4838
        %v4990 = vpop.f32.mrb[0].mxu0
        %v4991 = vadd.f32 0.0, %v4990
        %v4992 = vpop.f32.mrb[0].mxu0
        %v4993 = vadd.f32 0.0, %v4992
        %4994 = vmatprep.mubr.f32.mxu0 0.0
        %4995 = vmatmul.mubr.f32.gmra.mrb[0].mxu0 %v4839
        %v4996 = vpop.f32.mrb[0].mxu0
        %v4997 = vadd.f32 0.0, %v4996
        %v4998 = vpop.f32.mrb[0].mxu0
        %v4999 = vadd.f32 0.0, %v4998
        %5000 = vdwg.mxu0
        %5001 = vmatprep.subr.mxu0 %v3326
        %5002 = vmatpush1.msra.mxu0 %v3325
        %5003 = vmatprep.subr.mxu0 %v3328
        %5004 = vmatpush1.msra.mxu0 %v3327
        %5005 = vmatprep.subr.mxu0 %v3330
        %5006 = vmatpush1.msra.mxu0 %v3329
        %5007 = vmatprep.subr.mxu0 %v3332
        %5008 = vmatpush1.msra.mxu0 %v3331
        %5009 = vmatprep.subr.mxu0 %v3334
        %5010 = vmatpush1.msra.mxu0 %v3333
        %5011 = vmatprep.subr.mxu0 %v3336
        %5012 = vmatpush1.msra.mxu0 %v3335
        %5013 = vmatprep.subr.mxu0 %v3338
        %5014 = vmatpush1.msra.mxu0 %v3337
        %5015 = vmatprep.subr.mxu0 %v3340
        %5016 = vmatpush1.msra.mxu0 %v3339
        %5017 = vmatprep.subr.mxu0 %v3342
        %5018 = vmatpush1.msra.mxu0 %v3341
        %5019 = vmatprep.subr.mxu0 %v3344
        %5020 = vmatpush1.msra.mxu0 %v3343
        %5021 = vmatprep.subr.mxu0 %v3346
        %5022 = vmatpush1.msra.mxu0 %v3345
        %5023 = vmatprep.subr.mxu0 %v3348
        %5024 = vmatpush1.msra.mxu0 %v3347
        %5025 = vmatprep.subr.mxu0 %v3350
        %5026 = vmatpush1.msra.mxu0 %v3349
        %5027 = vmatprep.subr.mxu0 %v3352
        %5028 = vmatpush1.msra.mxu0 %v3351
        %5029 = vmatprep.subr.mxu0 %v3354
        %5030 = vmatpush1.msra.mxu0 %v3353
        %5031 = vmatprep.subr.mxu0 %v3356
        %5032 = vmatpush1.msra.mxu0 %v3355
        %5033 = vmatprep.subr.mxu0 0.0
        %5034 = vmatpush1.msra.mxu0 0.0
        %5035 = vmatprep.subr.mxu0 0.0
        %5036 = vmatpush1.msra.mxu0 0.0
        %5037 = vmatprep.subr.mxu0 0.0
        %5038 = vmatpush1.msra.mxu0 0.0
        %5039 = vmatprep.subr.mxu0 0.0
        %5040 = vmatpush1.msra.mxu0 0.0
        %5041 = vmatprep.subr.mxu0 0.0
        %5042 = vmatpush1.msra.mxu0 0.0
        %5043 = vmatprep.subr.mxu0 0.0
        %5044 = vmatpush1.msra.mxu0 0.0
        %5045 = vmatprep.subr.mxu0 0.0
        %5046 = vmatpush1.msra.mxu0 0.0
        %5047 = vmatprep.subr.mxu0 0.0
        %5048 = vmatpush1.msra.mxu0 0.0
        %5049 = vmatprep.subr.mxu0 0.0
        %5050 = vmatpush1.msra.mxu0 0.0
        %5051 = vmatprep.subr.mxu0 0.0
        %5052 = vmatpush1.msra.mxu0 0.0
        %5053 = vmatprep.subr.mxu0 0.0
        %5054 = vmatpush1.msra.mxu0 0.0
        %5055 = vmatprep.subr.mxu0 0.0
        %5056 = vmatpush1.msra.mxu0 0.0
        %5057 = vmatprep.subr.mxu0 0.0
        %5058 = vmatpush1.msra.mxu0 0.0
        %5059 = vmatprep.subr.mxu0 0.0
        %5060 = vmatpush1.msra.mxu0 0.0
        %5061 = vmatprep.subr.mxu0 0.0
        %5062 = vmatpush1.msra.mxu0 0.0
        %5063 = vmatprep.subr.mxu0 0.0
        %5064 = vmatpush1.msra.mxu0 0.0
        %5065 = vmatprep.mubr.f32.mxu0 0.0
        %5066 = vmatmul.mubr.f32.gmra.mrb[0].mxu0 %v4807
        %v5067 = vpop.f32.mrb[0].mxu0
        %v5068 = vadd.f32 %v4907, %v5067
        %v5069 = vpop.f32.mrb[0].mxu0
        %v5070 = vadd.f32 %v4909, %v5069
        %5071 = vmatprep.mubr.f32.mxu0 0.0
        %5072 = vmatmul.mubr.f32.gmra.mrb[0].mxu0 %v4808
        %v5073 = vpop.f32.mrb[0].mxu0
        %v5074 = vadd.f32 %v4913, %v5073
        %v5075 = vpop.f32.mrb[0].mxu0
        %v5076 = vadd.f32 %v4915, %v5075
        %5077 = vmatprep.mubr.f32.mxu0 0.0
        %5078 = vmatmul.mubr.f32.gmra.mrb[0].mxu0 %v4809
        %v5079 = vpop.f32.mrb[0].mxu0
        %v5080 = vadd.f32 %v4919, %v5079
        %v5081 = vpop.f32.mrb[0].mxu0
        %v5082 = vadd.f32 %v4921, %v5081
        %5083 = vmatprep.mubr.f32.mxu0 0.0
        %5084 = vmatmul.mubr.f32.gmra.mrb[0].mxu0 %v4810
        %v5085 = vpop.f32.mrb[0].mxu0
        %v5086 = vadd.f32 %v4925, %v5085
        %v5087 = vpop.f32.mrb[0].mxu0
        %v5088 = vadd.f32 %v4927, %v5087
        %5089 = vmatprep.mubr.f32.mxu0 0.0
        %5090 = vmatmul.mubr.f32.gmra.mrb[0].mxu0 %v4811
        %v5091 = vpop.f32.mrb[0].mxu0
        %v5092 = vadd.f32 %v4931, %v5091
        %v5093 = vpop.f32.mrb[0].mxu0
        %v5094 = vadd.f32 %v4933, %v5093
        %5095 = vmatprep.mubr.f32.mxu0 0.0
        %5096 = vmatmul.mubr.f32.gmra.mrb[0].mxu0 %v4812
        %v5097 = vpop.f32.mrb[0].mxu0
        %v5098 = vadd.f32 %v4937, %v5097
        %v5099 = vpop.f32.mrb[0].mxu0
        %v5100 = vadd.f32 %v4939, %v5099
        %5101 = vmatprep.mubr.f32.mxu0 0.0
        %5102 = vmatmul.mubr.f32.gmra.mrb[0].mxu0 %v4813
        %v5103 = vpop.f32.mrb[0].mxu0
        %v5104 = vadd.f32 %v4943, %v5103
        %v5105 = vpop.f32.mrb[0].mxu0
        %v5106 = vadd.f32 %v4945, %v5105
        %5107 = vmatprep.mubr.f32.mxu0 0.0
        %5108 = vmatmul.mubr.f32.gmra.mrb[0].mxu0 %v4814
        %v5109 = vpop.f32.mrb[0].mxu0
        %v5110 = vadd.f32 %v4949, %v5109
        %v5111 = vpop.f32.mrb[0].mxu0
        %v5112 = vadd.f32 %v4951, %v5111
        %5113 = vmatprep.mubr.f32.mxu0 0.0
        %5114 = vmatmul.mubr.f32.gmra.mrb[0].mxu0 %v4815
        %v5115 = vpop.f32.mrb[0].mxu0
        %v5116 = vadd.f32 %v4955, %v5115
        %v5117 = vpop.f32.mrb[0].mxu0
        %v5118 = vadd.f32 %v4957, %v5117
        %5119 = vmatprep.mubr.f32.mxu0 0.0
        %5120 = vmatmul.mubr.f32.gmra.mrb[0].mxu0 %v4816
        %v5121 = vpop.f32.mrb[0].mxu0
        %v5122 = vadd.f32 %v4961, %v5121
        %v5123 = vpop.f32.mrb[0].mxu0
        %v5124 = vadd.f32 %v4963, %v5123
        %5125 = vmatprep.mubr.f32.mxu0 0.0
        %5126 = vmatmul.mubr.f32.gmra.mrb[0].mxu0 %v4817
        %v5127 = vpop.f32.mrb[0].mxu0
        %v5128 = vadd.f32 %v4967, %v5127
        %v5129 = vpop.f32.mrb[0].mxu0
        %v5130 = vadd.f32 %v4969, %v5129
        %5131 = vmatprep.mubr.f32.mxu0 0.0
        %5132 = vmatmul.mubr.f32.gmra.mrb[0].mxu0 %v4818
        %v5133 = vpop.f32.mrb[0].mxu0
        %v5134 = vadd.f32 %v4973, %v5133
        %v5135 = vpop.f32.mrb[0].mxu0
        %v5136 = vadd.f32 %v4975, %v5135
        %5137 = vmatprep.mubr.f32.mxu0 0.0
        %5138 = vmatmul.mubr.f32.gmra.mrb[0].mxu0 %v4819
        %v5139 = vpop.f32.mrb[0].mxu0
        %v5140 = vadd.f32 %v4979, %v5139
        %v5141 = vpop.f32.mrb[0].mxu0
        %v5142 = vadd.f32 %v4981, %v5141
        %5143 = vmatprep.mubr.f32.mxu0 0.0
        %5144 = vmatmul.mubr.f32.gmra.mrb[0].mxu0 %v4820
        %v5145 = vpop.f32.mrb[0].mxu0
        %v5146 = vadd.f32 %v4985, %v5145
        %v5147 = vpop.f32.mrb[0].mxu0
        %v5148 = vadd.f32 %v4987, %v5147
        %5149 = vmatprep.mubr.f32.mxu0 0.0
        %5150 = vmatmul.mubr.f32.gmra.mrb[0].mxu0 %v4821
        %v5151 = vpop.f32.mrb[0].mxu0
        %v5152 = vadd.f32 %v4991, %v5151
        %v5153 = vpop.f32.mrb[0].mxu0
        %v5154 = vadd.f32 %v4993, %v5153
        %5155 = vmatprep.mubr.f32.mxu0 0.0
        %5156 = vmatmul.mubr.f32.gmra.mrb[0].mxu0 %v4822
        %v5157 = vpop.f32.mrb[0].mxu0
        %v5158 = vadd.f32 %v4997, %v5157
        %v5159 = vpop.f32.mrb[0].mxu0
        %v5160 = vadd.f32 %v4999, %v5159
        %5161 = vdwg.mxu0
        %s5162 = scalar_lea.vmem [#allocation7], 1024
        %v5163 = vld [vmem:[%s5162] sm:$0xff]
        %v5164 = vld [vmem:[%s5162 + $0x8] sm:$0xff]
        %v5165 = vld [vmem:[%s5162 + $0x10] sm:$0xff]
        %v5166 = vld [vmem:[%s5162 + $0x18] sm:$0xff]
        %v5167 = vld [vmem:[%s5162 + $0x20] sm:$0xff]
        %v5168 = vld [vmem:[%s5162 + $0x28] sm:$0xff]
        %v5169 = vld [vmem:[%s5162 + $0x30] sm:$0xff]
        %v5170 = vld [vmem:[%s5162 + $0x38] sm:$0xff]
        %v5171 = vld [vmem:[%s5162 + $0x40] sm:$0xff]
        %v5172 = vld [vmem:[%s5162 + $0x48] sm:$0xff]
        %v5173 = vld [vmem:[%s5162 + $0x50] sm:$0xff]
        %v5174 = vld [vmem:[%s5162 + $0x58] sm:$0xff]
        %v5175 = vld [vmem:[%s5162 + $0x60] sm:$0xff]
        %v5176 = vld [vmem:[%s5162 + $0x68] sm:$0xff]
        %v5177 = vld [vmem:[%s5162 + $0x70] sm:$0xff]
        %v5178 = vld [vmem:[%s5162 + $0x78] sm:$0xff]
        %5179 = vmatprep.subr.mxu0 %v3469
        %5180 = vmatpush1.msra.mxu0 %v3468
        %5181 = vmatprep.subr.mxu0 %v3471
        %5182 = vmatpush1.msra.mxu0 %v3470
        %5183 = vmatprep.subr.mxu0 %v3473
        %5184 = vmatpush1.msra.mxu0 %v3472
        %5185 = vmatprep.subr.mxu0 %v3475
        %5186 = vmatpush1.msra.mxu0 %v3474
        %5187 = vmatprep.subr.mxu0 %v3477
        %5188 = vmatpush1.msra.mxu0 %v3476
        %5189 = vmatprep.subr.mxu0 %v3479
        %5190 = vmatpush1.msra.mxu0 %v3478
        %5191 = vmatprep.subr.mxu0 %v3481
        %5192 = vmatpush1.msra.mxu0 %v3480
        %5193 = vmatprep.subr.mxu0 %v3483
        %5194 = vmatpush1.msra.mxu0 %v3482
        %5195 = vmatprep.subr.mxu0 %v3485
        %5196 = vmatpush1.msra.mxu0 %v3484
        %5197 = vmatprep.subr.mxu0 %v3487
        %5198 = vmatpush1.msra.mxu0 %v3486
        %5199 = vmatprep.subr.mxu0 %v3489
        %5200 = vmatpush1.msra.mxu0 %v3488
        %5201 = vmatprep.subr.mxu0 %v3491
        %5202 = vmatpush1.msra.mxu0 %v3490
        %5203 = vmatprep.subr.mxu0 %v3493
        %5204 = vmatpush1.msra.mxu0 %v3492
        %5205 = vmatprep.subr.mxu0 %v3495
        %5206 = vmatpush1.msra.mxu0 %v3494
        %5207 = vmatprep.subr.mxu0 %v3497
        %5208 = vmatpush1.msra.mxu0 %v3496
        %5209 = vmatprep.subr.mxu0 %v3499
        %5210 = vmatpush1.msra.mxu0 %v3498
        %5211 = vmatprep.subr.mxu0 0.0
        %5212 = vmatpush1.msra.mxu0 0.0
        %5213 = vmatprep.subr.mxu0 0.0
        %5214 = vmatpush1.msra.mxu0 0.0
        %5215 = vmatprep.subr.mxu0 0.0
        %5216 = vmatpush1.msra.mxu0 0.0
        %5217 = vmatprep.subr.mxu0 0.0
        %5218 = vmatpush1.msra.mxu0 0.0
        %5219 = vmatprep.subr.mxu0 0.0
        %5220 = vmatpush1.msra.mxu0 0.0
        %5221 = vmatprep.subr.mxu0 0.0
        %5222 = vmatpush1.msra.mxu0 0.0
        %5223 = vmatprep.subr.mxu0 0.0
        %5224 = vmatpush1.msra.mxu0 0.0
        %5225 = vmatprep.subr.mxu0 0.0
        %5226 = vmatpush1.msra.mxu0 0.0
        %5227 = vmatprep.subr.mxu0 0.0
        %5228 = vmatpush1.msra.mxu0 0.0
        %5229 = vmatprep.subr.mxu0 0.0
        %5230 = vmatpush1.msra.mxu0 0.0
        %5231 = vmatprep.subr.mxu0 0.0
        %5232 = vmatpush1.msra.mxu0 0.0
        %5233 = vmatprep.subr.mxu0 0.0
        %5234 = vmatpush1.msra.mxu0 0.0
        %5235 = vmatprep.subr.mxu0 0.0
        %5236 = vmatpush1.msra.mxu0 0.0
        %5237 = vmatprep.subr.mxu0 0.0
        %5238 = vmatpush1.msra.mxu0 0.0
        %5239 = vmatprep.subr.mxu0 0.0
        %5240 = vmatpush1.msra.mxu0 0.0
        %5241 = vmatprep.subr.mxu0 0.0
        %5242 = vmatpush1.msra.mxu0 0.0
        %5243 = vmatprep.mubr.f32.mxu0 0.0
        %5244 = vmatmul.mubr.f32.gmra.mrb[0].mxu0 %v5163
        %v5245 = vpop.f32.mrb[0].mxu0
        %v5246 = vadd.f32 0.0, %v5245
        %v5247 = vpop.f32.mrb[0].mxu0
        %v5248 = vadd.f32 0.0, %v5247
        %5249 = vmatprep.mubr.f32.mxu0 0.0
        %5250 = vmatmul.mubr.f32.gmra.mrb[0].mxu0 %v5164
        %v5251 = vpop.f32.mrb[0].mxu0
        %v5252 = vadd.f32 0.0, %v5251
        %v5253 = vpop.f32.mrb[0].mxu0
        %v5254 = vadd.f32 0.0, %v5253
        %5255 = vmatprep.mubr.f32.mxu0 0.0
        %5256 = vmatmul.mubr.f32.gmra.mrb[0].mxu0 %v5165
        %v5257 = vpop.f32.mrb[0].mxu0
        %v5258 = vadd.f32 0.0, %v5257
        %v5259 = vpop.f32.mrb[0].mxu0
        %v5260 = vadd.f32 0.0, %v5259
        %5261 = vmatprep.mubr.f32.mxu0 0.0
        %5262 = vmatmul.mubr.f32.gmra.mrb[0].mxu0 %v5166
        %v5263 = vpop.f32.mrb[0].mxu0
        %v5264 = vadd.f32 0.0, %v5263
        %v5265 = vpop.f32.mrb[0].mxu0
        %v5266 = vadd.f32 0.0, %v5265
        %5267 = vmatprep.mubr.f32.mxu0 0.0
        %5268 = vmatmul.mubr.f32.gmra.mrb[0].mxu0 %v5167
        %v5269 = vpop.f32.mrb[0].mxu0
        %v5270 = vadd.f32 0.0, %v5269
        %v5271 = vpop.f32.mrb[0].mxu0
        %v5272 = vadd.f32 0.0, %v5271
        %5273 = vmatprep.mubr.f32.mxu0 0.0
        %5274 = vmatmul.mubr.f32.gmra.mrb[0].mxu0 %v5168
        %v5275 = vpop.f32.mrb[0].mxu0
        %v5276 = vadd.f32 0.0, %v5275
        %v5277 = vpop.f32.mrb[0].mxu0
        %v5278 = vadd.f32 0.0, %v5277
        %5279 = vmatprep.mubr.f32.mxu0 0.0
        %5280 = vmatmul.mubr.f32.gmra.mrb[0].mxu0 %v5169
        %v5281 = vpop.f32.mrb[0].mxu0
        %v5282 = vadd.f32 0.0, %v5281
        %v5283 = vpop.f32.mrb[0].mxu0
        %v5284 = vadd.f32 0.0, %v5283
        %5285 = vmatprep.mubr.f32.mxu0 0.0
        %5286 = vmatmul.mubr.f32.gmra.mrb[0].mxu0 %v5170
        %v5287 = vpop.f32.mrb[0].mxu0
        %v5288 = vadd.f32 0.0, %v5287
        %v5289 = vpop.f32.mrb[0].mxu0
        %v5290 = vadd.f32 0.0, %v5289
        %5291 = vmatprep.mubr.f32.mxu0 0.0
        %5292 = vmatmul.mubr.f32.gmra.mrb[0].mxu0 %v5171
        %v5293 = vpop.f32.mrb[0].mxu0
        %v5294 = vadd.f32 0.0, %v5293
        %v5295 = vpop.f32.mrb[0].mxu0
        %v5296 = vadd.f32 0.0, %v5295
        %5297 = vmatprep.mubr.f32.mxu0 0.0
        %5298 = vmatmul.mubr.f32.gmra.mrb[0].mxu0 %v5172
        %v5299 = vpop.f32.mrb[0].mxu0
        %v5300 = vadd.f32 0.0, %v5299
        %v5301 = vpop.f32.mrb[0].mxu0
        %v5302 = vadd.f32 0.0, %v5301
        %5303 = vmatprep.mubr.f32.mxu0 0.0
        %5304 = vmatmul.mubr.f32.gmra.mrb[0].mxu0 %v5173
        %v5305 = vpop.f32.mrb[0].mxu0
        %v5306 = vadd.f32 0.0, %v5305
        %v5307 = vpop.f32.mrb[0].mxu0
        %v5308 = vadd.f32 0.0, %v5307
        %5309 = vmatprep.mubr.f32.mxu0 0.0
        %5310 = vmatmul.mubr.f32.gmra.mrb[0].mxu0 %v5174
        %v5311 = vpop.f32.mrb[0].mxu0
        %v5312 = vadd.f32 0.0, %v5311
        %v5313 = vpop.f32.mrb[0].mxu0
        %v5314 = vadd.f32 0.0, %v5313
        %5315 = vmatprep.mubr.f32.mxu0 0.0
        %5316 = vmatmul.mubr.f32.gmra.mrb[0].mxu0 %v5175
        %v5317 = vpop.f32.mrb[0].mxu0
        %v5318 = vadd.f32 0.0, %v5317
        %v5319 = vpop.f32.mrb[0].mxu0
        %v5320 = vadd.f32 0.0, %v5319
        %5321 = vmatprep.mubr.f32.mxu0 0.0
        %5322 = vmatmul.mubr.f32.gmra.mrb[0].mxu0 %v5176
        %v5323 = vpop.f32.mrb[0].mxu0
        %v5324 = vadd.f32 0.0, %v5323
        %v5325 = vpop.f32.mrb[0].mxu0
        %v5326 = vadd.f32 0.0, %v5325
        %5327 = vmatprep.mubr.f32.mxu0 0.0
        %5328 = vmatmul.mubr.f32.gmra.mrb[0].mxu0 %v5177
        %v5329 = vpop.f32.mrb[0].mxu0
        %v5330 = vadd.f32 0.0, %v5329
        %v5331 = vpop.f32.mrb[0].mxu0
        %v5332 = vadd.f32 0.0, %v5331
        %5333 = vmatprep.mubr.f32.mxu0 0.0
        %5334 = vmatmul.mubr.f32.gmra.mrb[0].mxu0 %v5178
        %v5335 = vpop.f32.mrb[0].mxu0
        %v5336 = vadd.f32 0.0, %v5335
        %v5337 = vpop.f32.mrb[0].mxu0
        %v5338 = vadd.f32 0.0, %v5337
        %5339 = vdwg.mxu0
        %v5340 = vadd.f32 %v5068, %v5246
        %v5341 = vadd.f32 %v5070, %v5248
        %v5342 = vadd.f32 %v5074, %v5252
        %v5343 = vadd.f32 %v5076, %v5254
        %v5344 = vadd.f32 %v5080, %v5258
        %v5345 = vadd.f32 %v5082, %v5260
        %v5346 = vadd.f32 %v5086, %v5264
        %v5347 = vadd.f32 %v5088, %v5266
        %v5348 = vadd.f32 %v5092, %v5270
        %v5349 = vadd.f32 %v5094, %v5272
        %v5350 = vadd.f32 %v5098, %v5276
        %v5351 = vadd.f32 %v5100, %v5278
        %v5352 = vadd.f32 %v5104, %v5282
        %v5353 = vadd.f32 %v5106, %v5284
        %v5354 = vadd.f32 %v5110, %v5288
        %v5355 = vadd.f32 %v5112, %v5290
        %v5356 = vadd.f32 %v5116, %v5294
        %v5357 = vadd.f32 %v5118, %v5296
        %v5358 = vadd.f32 %v5122, %v5300
        %v5359 = vadd.f32 %v5124, %v5302
        %v5360 = vadd.f32 %v5128, %v5306
        %v5361 = vadd.f32 %v5130, %v5308
        %v5362 = vadd.f32 %v5134, %v5312
        %v5363 = vadd.f32 %v5136, %v5314
        %v5364 = vadd.f32 %v5140, %v5318
        %v5365 = vadd.f32 %v5142, %v5320
        %v5366 = vadd.f32 %v5146, %v5324
        %v5367 = vadd.f32 %v5148, %v5326
        %v5368 = vadd.f32 %v5152, %v5330
        %v5369 = vadd.f32 %v5154, %v5332
        %v5370 = vadd.f32 %v5158, %v5336
        %v5371 = vadd.f32 %v5160, %v5338
        %5372 = vrot.lane.b32.xlu0 %v5340, 96
        %v5373 = vpop.permute.xlu0 %5372
        %5374 = vrot.lane.b32.xlu0 %v5342, 96
        %v5375 = vpop.permute.xlu0 %5374
        %5376 = vrot.lane.b32.xlu0 %v5344, 96
        %v5377 = vpop.permute.xlu0 %5376
        %5378 = vrot.lane.b32.xlu0 %v5346, 96
        %v5379 = vpop.permute.xlu0 %5378
        %5380 = vrot.lane.b32.xlu0 %v5348, 96
        %v5381 = vpop.permute.xlu0 %5380
        %5382 = vrot.lane.b32.xlu0 %v5350, 96
        %v5383 = vpop.permute.xlu0 %5382
        %5384 = vrot.lane.b32.xlu0 %v5352, 96
        %v5385 = vpop.permute.xlu0 %5384
        %5386 = vrot.lane.b32.xlu0 %v5354, 96
        %v5387 = vpop.permute.xlu0 %5386
        %5388 = vrot.lane.b32.xlu0 %v5356, 96
        %v5389 = vpop.permute.xlu0 %5388
        %5390 = vrot.lane.b32.xlu0 %v5358, 96
        %v5391 = vpop.permute.xlu0 %5390
        %5392 = vrot.lane.b32.xlu0 %v5360, 96
        %v5393 = vpop.permute.xlu0 %5392
        %5394 = vrot.lane.b32.xlu0 %v5362, 96
        %v5395 = vpop.permute.xlu0 %5394
        %5396 = vrot.lane.b32.xlu0 %v5364, 96
        %v5397 = vpop.permute.xlu0 %5396
        %5398 = vrot.lane.b32.xlu0 %v5366, 96
        %v5399 = vpop.permute.xlu0 %5398
        %5400 = vrot.lane.b32.xlu0 %v5368, 96
        %v5401 = vpop.permute.xlu0 %5400
        %5402 = vrot.lane.b32.xlu0 %v5370, 96
        %v5403 = vpop.permute.xlu0 %5402
        %5404 = vrot.lane.b32.xlu0 %v5341, 96
        %v5405 = vpop.permute.xlu0 %5404
        %5406 = vrot.lane.b32.xlu0 %v5343, 96
        %v5407 = vpop.permute.xlu0 %5406
        %5408 = vrot.lane.b32.xlu0 %v5345, 96
        %v5409 = vpop.permute.xlu0 %5408
        %5410 = vrot.lane.b32.xlu0 %v5347, 96
        %v5411 = vpop.permute.xlu0 %5410
        %5412 = vrot.lane.b32.xlu0 %v5349, 96
        %v5413 = vpop.permute.xlu0 %5412
        %5414 = vrot.lane.b32.xlu0 %v5351, 96
        %v5415 = vpop.permute.xlu0 %5414
        %5416 = vrot.lane.b32.xlu0 %v5353, 96
        %v5417 = vpop.permute.xlu0 %5416
        %5418 = vrot.lane.b32.xlu0 %v5355, 96
        %v5419 = vpop.permute.xlu0 %5418
        %5420 = vrot.lane.b32.xlu0 %v5357, 96
        %v5421 = vpop.permute.xlu0 %5420
        %5422 = vrot.lane.b32.xlu0 %v5359, 96
        %v5423 = vpop.permute.xlu0 %5422
        %5424 = vrot.lane.b32.xlu0 %v5361, 96
        %v5425 = vpop.permute.xlu0 %5424
        %5426 = vrot.lane.b32.xlu0 %v5363, 96
        %v5427 = vpop.permute.xlu0 %5426
        %5428 = vrot.lane.b32.xlu0 %v5365, 96
        %v5429 = vpop.permute.xlu0 %5428
        %5430 = vrot.lane.b32.xlu0 %v5367, 96
        %v5431 = vpop.permute.xlu0 %5430
        %5432 = vrot.lane.b32.xlu0 %v5369, 96
        %v5433 = vpop.permute.xlu0 %5432
        %5434 = vrot.lane.b32.xlu0 %v5371, 96
        %v5435 = vpop.permute.xlu0 %5434
        %vm5436 = vcmp.lt.s32.totalorder %v784, 96
        %v5437 = vsel %vm5436, %v5373, %v5405
        %v5438 = vsel %vm5436, %v5375, %v5407
        %v5439 = vsel %vm5436, %v5377, %v5409
        %v5440 = vsel %vm5436, %v5379, %v5411
        %v5441 = vsel %vm5436, %v5381, %v5413
        %v5442 = vsel %vm5436, %v5383, %v5415
        %v5443 = vsel %vm5436, %v5385, %v5417
        %v5444 = vsel %vm5436, %v5387, %v5419
        %v5445 = vsel %vm5436, %v5389, %v5421
        %v5446 = vsel %vm5436, %v5391, %v5423
        %v5447 = vsel %vm5436, %v5393, %v5425
        %v5448 = vsel %vm5436, %v5395, %v5427
        %v5449 = vsel %vm5436, %v5397, %v5429
        %v5450 = vsel %vm5436, %v5399, %v5431
        %v5451 = vsel %vm5436, %v5401, %v5433
        %v5452 = vsel %vm5436, %v5403, %v5435
        %v5453 = vsel %vm5436, %v5405, %v5373
        %v5454 = vsel %vm5436, %v5407, %v5375
        %v5455 = vsel %vm5436, %v5409, %v5377
        %v5456 = vsel %vm5436, %v5411, %v5379
        %v5457 = vsel %vm5436, %v5413, %v5381
        %v5458 = vsel %vm5436, %v5415, %v5383
        %v5459 = vsel %vm5436, %v5417, %v5385
        %v5460 = vsel %vm5436, %v5419, %v5387
        %v5461 = vsel %vm5436, %v5421, %v5389
        %v5462 = vsel %vm5436, %v5423, %v5391
        %v5463 = vsel %vm5436, %v5425, %v5393
        %v5464 = vsel %vm5436, %v5427, %v5395
        %v5465 = vsel %vm5436, %v5429, %v5397
        %v5466 = vsel %vm5436, %v5431, %v5399
        %v5467 = vsel %vm5436, %v5433, %v5401
        %v5468 = vsel %vm5436, %v5435, %v5403
        %vm5469 = vcmp.lt.s32.totalorder %v380, 14
        %v5470 = vsel %vm5469, 1, 0
        %v5471 = vcvt.s32.f32 %v5470
        %v5473 = vlaneseq
        %v5474 = vshrl.u32 %v5473, 7
        %v5475 = vsub.s32 0, %v5474
        %v5476 = vrot.slane %v5471, %v5475
        %v5477 = vlaneseq
        %v5478 = vshrl.u32 %v5477, 7
        %v5479 = vsub.s32 1, %v5478
        %v5480 = vrot.slane %v5471, %v5479
        %v5483 = vmul.f32 %v5437, %v5476
        %v5484 = vmul.f32 %v5453, %v5480
        %v5485 = vmul.f32 %v5438, %v5476
        %v5486 = vmul.f32 %v5454, %v5480
        %v5487 = vmul.f32 %v5439, %v5476
        %v5488 = vmul.f32 %v5455, %v5480
        %v5489 = vmul.f32 %v5440, %v5476
        %v5490 = vmul.f32 %v5456, %v5480
        %v5491 = vmul.f32 %v5441, %v5476
        %v5492 = vmul.f32 %v5457, %v5480
        %v5493 = vmul.f32 %v5442, %v5476
        %v5494 = vmul.f32 %v5458, %v5480
        %v5495 = vmul.f32 %v5443, %v5476
        %v5496 = vmul.f32 %v5459, %v5480
        %v5497 = vmul.f32 %v5444, %v5476
        %v5498 = vmul.f32 %v5460, %v5480
        %v5499 = vmul.f32 %v5445, %v5476
        %v5500 = vmul.f32 %v5461, %v5480
        %v5501 = vmul.f32 %v5446, %v5476
        %v5502 = vmul.f32 %v5462, %v5480
        %v5503 = vmul.f32 %v5447, %v5476
        %v5504 = vmul.f32 %v5463, %v5480
        %v5505 = vmul.f32 %v5448, %v5476
        %v5506 = vmul.f32 %v5464, %v5480
        %v5507 = vmul.f32 %v5449, %v5476
        %v5508 = vmul.f32 %v5465, %v5480
        %v5509 = vmul.f32 %v5450, %v5476
        %v5510 = vmul.f32 %v5466, %v5480
        %v5511 = vmul.f32 %v5451, %v5476
        %v5512 = vmul.f32 %v5467, %v5480
        %v5513 = vmul.f32 %v5452, %v5476
        %v5514 = vmul.f32 %v5468, %v5480
        %v5515 = vadd.f32 %v4774, %v5483
        %v5516 = vadd.f32 %v4775, %v5484
        %v5517 = vadd.f32 %v4776, %v5485
        %v5518 = vadd.f32 %v4777, %v5486
        %v5519 = vadd.f32 %v4778, %v5487
        %v5520 = vadd.f32 %v4779, %v5488
        %v5521 = vadd.f32 %v4780, %v5489
        %v5522 = vadd.f32 %v4781, %v5490
        %v5523 = vadd.f32 %v4782, %v5491
        %v5524 = vadd.f32 %v4783, %v5492
        %v5525 = vadd.f32 %v4784, %v5493
        %v5526 = vadd.f32 %v4785, %v5494
        %v5527 = vadd.f32 %v4786, %v5495
        %v5528 = vadd.f32 %v4787, %v5496
        %v5529 = vadd.f32 %v4788, %v5497
        %v5530 = vadd.f32 %v4789, %v5498
        %v5531 = vadd.f32 %v4790, %v5499
        %v5532 = vadd.f32 %v4791, %v5500
        %v5533 = vadd.f32 %v4792, %v5501
        %v5534 = vadd.f32 %v4793, %v5502
        %v5535 = vadd.f32 %v4794, %v5503
        %v5536 = vadd.f32 %v4795, %v5504
        %v5537 = vadd.f32 %v4796, %v5505
        %v5538 = vadd.f32 %v4797, %v5506
        %v5539 = vadd.f32 %v4798, %v5507
        %v5540 = vadd.f32 %v4799, %v5508
        %v5541 = vadd.f32 %v4800, %v5509
        %v5542 = vadd.f32 %v4801, %v5510
        %v5543 = vadd.f32 %v4802, %v5511
        %v5544 = vadd.f32 %v4803, %v5512
        %v5545 = vadd.f32 %v4804, %v5513
        %v5546 = vadd.f32 %v4805, %v5514
        %v5547 = vld [vmem:[%s8] sm:$0xff]
        %v5548 = vld [vmem:[%s8 + $0x8] sm:$0xff]
        %v5549 = vld [vmem:[%s8 + $0x10] sm:$0xff]
        %v5550 = vld [vmem:[%s8 + $0x18] sm:$0xff]
        %v5551 = vld [vmem:[%s8 + $0x20] sm:$0xff]
        %v5552 = vld [vmem:[%s8 + $0x28] sm:$0xff]
        %v5553 = vld [vmem:[%s8 + $0x30] sm:$0xff]
        %v5554 = vld [vmem:[%s8 + $0x38] sm:$0xff]
        %v5555 = vld [vmem:[%s8 + $0x40] sm:$0xff]
        %v5556 = vld [vmem:[%s8 + $0x48] sm:$0xff]
        %v5557 = vld [vmem:[%s8 + $0x50] sm:$0xff]
        %v5558 = vld [vmem:[%s8 + $0x58] sm:$0xff]
        %v5559 = vld [vmem:[%s8 + $0x60] sm:$0xff]
        %v5560 = vld [vmem:[%s8 + $0x68] sm:$0xff]
        %v5561 = vld [vmem:[%s8 + $0x70] sm:$0xff]
        %v5562 = vld [vmem:[%s8 + $0x78] sm:$0xff]
        %5564 = vset.pattern.permute.xlu0 0
        %5565 = vperm.xlu0 %5564, %v5547
        %v5566 = vpop.permute.xlu0 %5565
        %5569 = vset.pattern.permute.xlu0 0
        %5570 = vperm.xlu0 %5569, %v5548
        %v5571 = vpop.permute.xlu0 %5570
        %5574 = vset.pattern.permute.xlu0 0
        %5575 = vperm.xlu0 %5574, %v5549
        %v5576 = vpop.permute.xlu0 %5575
        %5579 = vset.pattern.permute.xlu0 0
        %5580 = vperm.xlu0 %5579, %v5550
        %v5581 = vpop.permute.xlu0 %5580
        %5584 = vset.pattern.permute.xlu0 0
        %5585 = vperm.xlu0 %5584, %v5551
        %v5586 = vpop.permute.xlu0 %5585
        %5589 = vset.pattern.permute.xlu0 0
        %5590 = vperm.xlu0 %5589, %v5552
        %v5591 = vpop.permute.xlu0 %5590
        %5594 = vset.pattern.permute.xlu0 0
        %5595 = vperm.xlu0 %5594, %v5553
        %v5596 = vpop.permute.xlu0 %5595
        %5599 = vset.pattern.permute.xlu0 0
        %5600 = vperm.xlu0 %5599, %v5554
        %v5601 = vpop.permute.xlu0 %5600
        %5604 = vset.pattern.permute.xlu0 0
        %5605 = vperm.xlu0 %5604, %v5555
        %v5606 = vpop.permute.xlu0 %5605
        %5609 = vset.pattern.permute.xlu0 0
        %5610 = vperm.xlu0 %5609, %v5556
        %v5611 = vpop.permute.xlu0 %5610
        %5614 = vset.pattern.permute.xlu0 0
        %5615 = vperm.xlu0 %5614, %v5557
        %v5616 = vpop.permute.xlu0 %5615
        %5619 = vset.pattern.permute.xlu0 0
        %5620 = vperm.xlu0 %5619, %v5558
        %v5621 = vpop.permute.xlu0 %5620
        %5624 = vset.pattern.permute.xlu0 0
        %5625 = vperm.xlu0 %5624, %v5559
        %v5626 = vpop.permute.xlu0 %5625
        %5629 = vset.pattern.permute.xlu0 0
        %5630 = vperm.xlu0 %5629, %v5560
        %v5631 = vpop.permute.xlu0 %5630
        %5634 = vset.pattern.permute.xlu0 0
        %5635 = vperm.xlu0 %5634, %v5561
        %v5636 = vpop.permute.xlu0 %5635
        %5639 = vset.pattern.permute.xlu0 0
        %5640 = vperm.xlu0 %5639, %v5562
        %v5641 = vpop.permute.xlu0 %5640
        %v5643 = vadd.f32 %v5515, %v5566
        %v5644 = vadd.f32 %v5516, %v5566
        %v5645 = vadd.f32 %v5517, %v5571
        %v5646 = vadd.f32 %v5518, %v5571
        %v5647 = vadd.f32 %v5519, %v5576
        %v5648 = vadd.f32 %v5520, %v5576
        %v5649 = vadd.f32 %v5521, %v5581
        %v5650 = vadd.f32 %v5522, %v5581
        %v5651 = vadd.f32 %v5523, %v5586
        %v5652 = vadd.f32 %v5524, %v5586
        %v5653 = vadd.f32 %v5525, %v5591
        %v5654 = vadd.f32 %v5526, %v5591
        %v5655 = vadd.f32 %v5527, %v5596
        %v5656 = vadd.f32 %v5528, %v5596
        %v5657 = vadd.f32 %v5529, %v5601
        %v5658 = vadd.f32 %v5530, %v5601
        %v5659 = vadd.f32 %v5531, %v5606
        %v5660 = vadd.f32 %v5532, %v5606
        %v5661 = vadd.f32 %v5533, %v5611
        %v5662 = vadd.f32 %v5534, %v5611
        %v5663 = vadd.f32 %v5535, %v5616
        %v5664 = vadd.f32 %v5536, %v5616
        %v5665 = vadd.f32 %v5537, %v5621
        %v5666 = vadd.f32 %v5538, %v5621
        %v5667 = vadd.f32 %v5539, %v5626
        %v5668 = vadd.f32 %v5540, %v5626
        %v5669 = vadd.f32 %v5541, %v5631
        %v5670 = vadd.f32 %v5542, %v5631
        %v5671 = vadd.f32 %v5543, %v5636
        %v5672 = vadd.f32 %v5544, %v5636
        %v5673 = vadd.f32 %v5545, %v5641
        %v5674 = vadd.f32 %v5546, %v5641
        %v5675 = vmax.f32 %v5643, 0.0
        %v5676 = vmax.f32 %v5644, 0.0
        %v5677 = vmax.f32 %v5645, 0.0
        %v5678 = vmax.f32 %v5646, 0.0
        %v5679 = vmax.f32 %v5647, 0.0
        %v5680 = vmax.f32 %v5648, 0.0
        %v5681 = vmax.f32 %v5649, 0.0
        %v5682 = vmax.f32 %v5650, 0.0
        %v5683 = vmax.f32 %v5651, 0.0
        %v5684 = vmax.f32 %v5652, 0.0
        %v5685 = vmax.f32 %v5653, 0.0
        %v5686 = vmax.f32 %v5654, 0.0
        %v5687 = vmax.f32 %v5655, 0.0
        %v5688 = vmax.f32 %v5656, 0.0
        %v5689 = vmax.f32 %v5657, 0.0
        %v5690 = vmax.f32 %v5658, 0.0
        %v5691 = vmax.f32 %v5659, 0.0
        %v5692 = vmax.f32 %v5660, 0.0
        %v5693 = vmax.f32 %v5661, 0.0
        %v5694 = vmax.f32 %v5662, 0.0
        %v5695 = vmax.f32 %v5663, 0.0
        %v5696 = vmax.f32 %v5664, 0.0
        %v5697 = vmax.f32 %v5665, 0.0
        %v5698 = vmax.f32 %v5666, 0.0
        %v5699 = vmax.f32 %v5667, 0.0
        %v5700 = vmax.f32 %v5668, 0.0
        %v5701 = vmax.f32 %v5669, 0.0
        %v5702 = vmax.f32 %v5670, 0.0
        %v5703 = vmax.f32 %v5671, 0.0
        %v5704 = vmax.f32 %v5672, 0.0
        %v5705 = vmax.f32 %v5673, 0.0
        %v5706 = vmax.f32 %v5674, 0.0
        %v5707 = vadd.f32 %v687, %v5675
        %v5708 = vadd.f32 %v688, %v5676
        %v5709 = vadd.f32 %v689, %v5677
        %v5710 = vadd.f32 %v690, %v5678
        %v5711 = vadd.f32 %v691, %v5679
        %v5712 = vadd.f32 %v692, %v5680
        %v5713 = vadd.f32 %v693, %v5681
        %v5714 = vadd.f32 %v694, %v5682
        %v5715 = vadd.f32 %v695, %v5683
        %v5716 = vadd.f32 %v696, %v5684
        %v5717 = vadd.f32 %v697, %v5685
        %v5718 = vadd.f32 %v698, %v5686
        %v5719 = vadd.f32 %v699, %v5687
        %v5720 = vadd.f32 %v700, %v5688
        %v5721 = vadd.f32 %v701, %v5689
        %v5722 = vadd.f32 %v702, %v5690
        %v5723 = vadd.f32 %v703, %v5691
        %v5724 = vadd.f32 %v704, %v5692
        %v5725 = vadd.f32 %v705, %v5693
        %v5726 = vadd.f32 %v706, %v5694
        %v5727 = vadd.f32 %v707, %v5695
        %v5728 = vadd.f32 %v708, %v5696
        %v5729 = vadd.f32 %v709, %v5697
        %v5730 = vadd.f32 %v710, %v5698
        %v5731 = vadd.f32 %v711, %v5699
        %v5732 = vadd.f32 %v712, %v5700
        %v5733 = vadd.f32 %v713, %v5701
        %v5734 = vadd.f32 %v714, %v5702
        %v5735 = vadd.f32 %v715, %v5703
        %v5736 = vadd.f32 %v716, %v5704
        %v5737 = vadd.f32 %v717, %v5705
        %v5738 = vadd.f32 %v718, %v5706
        %5739 = vst [vmem:[%s379] sm:$0xff] %v5707
        %5740 = vst [vmem:[%s379 + $0x8] sm:$0xff] %v5708
        %5741 = vst [vmem:[%s379 + $0x10] sm:$0xff] %v5709
        %5742 = vst [vmem:[%s379 + $0x18] sm:$0xff] %v5710
        %5743 = vst [vmem:[%s379 + $0x20] sm:$0xff] %v5711
        %5744 = vst [vmem:[%s379 + $0x28] sm:$0xff] %v5712
        %5745 = vst [vmem:[%s379 + $0x30] sm:$0xff] %v5713
        %5746 = vst [vmem:[%s379 + $0x38] sm:$0xff] %v5714
        %5747 = vst [vmem:[%s379 + $0x40] sm:$0xff] %v5715
        %5748 = vst [vmem:[%s379 + $0x48] sm:$0xff] %v5716
        %5749 = vst [vmem:[%s379 + $0x50] sm:$0xff] %v5717
        %5750 = vst [vmem:[%s379 + $0x58] sm:$0xff] %v5718
        %5751 = vst [vmem:[%s379 + $0x60] sm:$0xff] %v5719
        %5752 = vst [vmem:[%s379 + $0x68] sm:$0xff] %v5720
        %5753 = vst [vmem:[%s379 + $0x70] sm:$0xff] %v5721
        %5754 = vst [vmem:[%s379 + $0x78] sm:$0xff] %v5722
        %5755 = vst [vmem:[%s379 + $0x80] sm:$0xff] %v5723
        %5756 = vst [vmem:[%s379 + $0x88] sm:$0xff] %v5724
        %5757 = vst [vmem:[%s379 + $0x90] sm:$0xff] %v5725
        %5758 = vst [vmem:[%s379 + $0x98] sm:$0xff] %v5726
        %5759 = vst [vmem:[%s379 + $0xa0] sm:$0xff] %v5727
        %5760 = vst [vmem:[%s379 + $0xa8] sm:$0xff] %v5728
        %5761 = vst [vmem:[%s379 + $0xb0] sm:$0xff] %v5729
        %5762 = vst [vmem:[%s379 + $0xb8] sm:$0xff] %v5730
        %5763 = vst [vmem:[%s379 + $0xc0] sm:$0xff] %v5731
        %5764 = vst [vmem:[%s379 + $0xc8] sm:$0xff] %v5732
        %5765 = vst [vmem:[%s379 + $0xd0] sm:$0xff] %v5733
        %5766 = vst [vmem:[%s379 + $0xd8] sm:$0xff] %v5734
        %5767 = vst [vmem:[%s379 + $0xe0] sm:$0xff] %v5735
        %5768 = vst [vmem:[%s379 + $0xe8] sm:$0xff] %v5736
        %5769 = vst [vmem:[%s379 + $0xf0] sm:$0xff] %v5737
        %5770 = vst [vmem:[%s379 + $0xf8] sm:$0xff] %v5738
        %s5771 = sand.u32 %s229, 1
        %s5772 = scalar_lea.sflag [#allocation4], %s5771
        %s5773 = sand.u32 %s229, 1
        %s5774 = smul.addr %s5773, 256
        %s5775 = scalar_lea.vmem [#allocation8], %s5774
        // Predicated region
        $region69: #{tpu_custom_call.1} parent=55 // pred_check
          %p5776 = pneg %p239
        $region70: #{tpu_custom_call.1} parent=55 // pred_check_branch
          %5778 = sbr.rel (%p5776) target = $region72
        $region71: #{tpu_custom_call.1} parent=55 // pred_region
          %s5780 = ssub.s32 4096, 4096
          %5781 = vsyncadd %s5772, %s5780
          %s5782 = smul.addr %s27, 32
          %s5783 = smul.addr %s5782, 128
          %s5784 = scalar_lea.hbm %s9, %s5783
          %s5785 = sshll.u32 %s5775, 4
          %s5786 = int_to_ptr.vmem [resolvable:$true] %s5785
          %5791 = dma.vmem_to_hbm [thread:$0]  %s5786, 4096, %s5784, %s5772, 256, 256, 16
        $region72: #{tpu_custom_call.1} parent=55 // pred_fallthru
          _
      $region56: #{tpu_custom_call.1} parent=5 // pred_fallthru
        _
      %p5792 = scmp.le.s32.totalorder 2, %s22
      // Predicated region
      $region73: #{tpu_custom_call.1} parent=5 // pred_check
        %p5793 = pneg %p5792
      $region74: #{tpu_custom_call.1} parent=5 // pred_check_branch
        %5795 = sbr.rel (%p5793) target = $region76
      $region75: #{tpu_custom_call.1} parent=5 // pred_region
        %s5796 = ssub.s32 %s22, 2
        // Predicated region
        $region77: #{tpu_custom_call.1} parent=75 // pred_check
          %p5797 = pneg %p245
        $region78: #{tpu_custom_call.1} parent=75 // pred_check_branch
          %5799 = sbr.rel (%p5797) target = $region80
        $region79: #{tpu_custom_call.1} parent=75 // pred_region
          %s5800 = sand.u32 %s230, 1
          %s5801 = scalar_lea.sflag [#allocation4], %s5800
          %s5802 = sand.u32 %s230, 1
          %s5803 = smul.addr %s5802, 256
          %s5804 = scalar_lea.vmem [#allocation8], %s5803
          %5805 = dma.done %s5801, 4096
        $region80: #{tpu_custom_call.1} parent=75 // pred_fallthru
          _
      $region76: #{tpu_custom_call.1} parent=5 // pred_fallthru
        _
    $region6: #{tpu_custom_call.1} parent=1 // loop_footer
      %s26 = sadd.s32 1, %s22
    $region7: #{tpu_custom_call.1} parent=1 // loop_footer_branch
      %21 = sbr.rel target = $region3
    $region8: #{tpu_custom_call.1} parent=1 // loop_exit
      _
    %5806 = vsyncpa [#allocation3], 1
    %s5807 = scalar_lea.sflag [#allocation3], 1
    %5808 = vsyncpa %s5807, 1
    %5809 = vsyncpa [#allocation6], 1
    %5810 = vsyncpa [#allocation4], 1
    %s5811 = scalar_lea.sflag [#allocation4], 1
    %5812 = vsyncpa %s5811, 1

</llo_original>
